<compile_context>
chip_gen: v7x
topology: tpu7x:2x2x1
jax: 0.10.0
libtpu: 0.0.40
codegen_flags: <defaults>
</compile_context>

<pallas_src>
import functools

import jax
import jax.numpy as jnp
from jax import lax
from jax.experimental import pallas as pl
from jax.experimental.pallas import tpu as pltpu

EPS = 1e-5
LANES = 128
VMEM_LIMIT = 48 * 1024 * 1024  # bytes; safe on v5e/v6e, headroom on v7x (64 MiB)


def _round_up(x, m):
    return ((x + m - 1) // m) * m


# ----------------------------- Pallas kernels ------------------------------


def _conv1_kernel(x_ref, w_ref, b_ref, y_ref, sum_ref, sq_ref,
                  *, ho, wo, nwr, nwc):
    """Stride-s conv with phases packed into the lane dim + bias + BN partials.

    Taps are grouped by spatial window offset (i//s, j//s); each group is one
    MXU dot with K = s*s*Cin (phase-expanded weights hold zeros for phases a
    tap does not touch), so kh*kw dots collapse to nwr*nwc dots.

    x_ref  : (1, Hq, Wq, cpk)      bf16, cpk = round_up(s*s*Cin, 8)
    w_ref  : (nwr*nwc, cpk, OCp)   bf16
    b_ref  : (1, OCp)              f32
    y_ref  : (1, ho*wo, OCp)       bf16
    sum_ref/sq_ref : (1, 1, OCp)   f32 per-image partial BN stats
    """
    cpk = x_ref.shape[-1]
    acc = None
    for r0 in range(nwr):
        for c0 in range(nwc):
            xs = x_ref[0, r0:r0 + ho, c0:c0 + wo, :].reshape(ho * wo, cpk)
            d = jnp.dot(xs, w_ref[r0 * nwc + c0],
                        preferred_element_type=jnp.float32)
            acc = d if acc is None else acc + d
    y = acc + b_ref[...]                                   # f32
    sum_ref[0] = jnp.sum(y, axis=0, keepdims=True)
    sq_ref[0] = jnp.sum(y * y, axis=0, keepdims=True)
    y_ref[0] = y.astype(y_ref.dtype)


def _bnrelu_conv2_kernel(y1_ref, s_ref, t_ref, w_ref, b_ref,
                         y2_ref, sum_ref, sq_ref, zbuf_ref,
                         *, ho, wo, kh, kw, pad):
    """Fused BN1-affine + ReLU -> bf16 halo buffer -> stride-1 conv + bias
    + BN partial stats.  Only the halo ring of zbuf is re-zeroed each step."""
    c = zbuf_ref.shape[-1]
    hp, wp = ho + 2 * pad, wo + 2 * pad
    z = jnp.maximum(y1_ref[0].astype(jnp.float32) * s_ref[...] + t_ref[...],
                    0.0)                                    # (ho*wo, C) f32
    if pad > 0:  # zero the ring only; interior is fully overwritten below
        zrow = jnp.zeros((pad, wp, c), zbuf_ref.dtype)
        zbuf_ref[0:pad, :, :] = zrow
        zbuf_ref[pad + ho:hp, :, :] = zrow
        zcol = jnp.zeros((ho, pad, c), zbuf_ref.dtype)
        zbuf_ref[pad:pad + ho, 0:pad, :] = zcol
        zbuf_ref[pad:pad + ho, pad + wo:wp, :] = zcol
    zbuf_ref[pad:pad + ho, pad:pad + wo, :] = (
        z.astype(zbuf_ref.dtype).reshape(ho, wo, c))
    ho2 = hp - kh + 1
    wo2 = wp - kw + 1
    acc = None
    for i in range(kh):
        for j in range(kw):
            xs = zbuf_ref[i:i + ho2, j:j + wo2, :].reshape(ho2 * wo2, c)
            d = jnp.dot(xs, w_ref[i * kw + j],
                        preferred_element_type=jnp.float32)
            acc = d if acc is None else acc + d
    y = acc + b_ref[...]                                    # f32
    sum_ref[0] = jnp.sum(y, axis=0, keepdims=True)
    sq_ref[0] = jnp.sum(y * y, axis=0, keepdims=True)
    y2_ref[0] = y.astype(y2_ref.dtype)


def _bn_relu_add_kernel(y1_ref, y2_ref, s1_ref, t1_ref, s2_ref, t2_ref, o_ref,
                        *, oc):
    """out = relu(bn1(y1)) + relu(bn2(y2)); only the true oc channels stored."""
    z1 = jnp.maximum(y1_ref[0].astype(jnp.float32) * s1_ref[...] + t1_ref[...],
                     0.0)
    z2 = jnp.maximum(y2_ref[0].astype(jnp.float32) * s2_ref[...] + t2_ref[...],
                     0.0)
    o_ref[0] = (z1 + z2)[:, :oc]


# ----------------------------- pallas_call wrappers -------------------------


def conv1_call(xpk, w_win, bias_row, ho, wo, nwr, nwc):
    n, hq, wq, cpk = xpk.shape
    nwin, _, ocp = w_win.shape
    kernel = functools.partial(_conv1_kernel, ho=ho, wo=wo, nwr=nwr, nwc=nwc)
    return pl.pallas_call(
        kernel,
        out_shape=(jax.ShapeDtypeStruct((n, ho * wo, ocp), jnp.bfloat16),
                   jax.ShapeDtypeStruct((n, 1, ocp), jnp.float32),
                   jax.ShapeDtypeStruct((n, 1, ocp), jnp.float32)),
        grid=(n,),
        in_specs=[
            pl.BlockSpec((1, hq, wq, cpk), lambda i: (i, 0, 0, 0)),
            pl.BlockSpec((nwin, cpk, ocp), lambda i: (0, 0, 0)),
            pl.BlockSpec((1, ocp), lambda i: (0, 0)),
        ],
        out_specs=(
            pl.BlockSpec((1, ho * wo, ocp), lambda i: (i, 0, 0)),
            pl.BlockSpec((1, 1, ocp), lambda i: (i, 0, 0)),
            pl.BlockSpec((1, 1, ocp), lambda i: (i, 0, 0)),
        ),
        compiler_params=pltpu.CompilerParams(
            dimension_semantics=("parallel",),
            vmem_limit_bytes=VMEM_LIMIT),
    )(xpk, w_win, bias_row)


def bnrelu_conv2_call(y1, scale1, shift1, w_taps, bias_row, ho, wo, kh, kw, pad):
    n, hw, c = y1.shape
    ocp = w_taps.shape[-1]
    ho2 = ho + 2 * pad - kh + 1
    wo2 = wo + 2 * pad - kw + 1
    kernel = functools.partial(_bnrelu_conv2_kernel, ho=ho, wo=wo, kh=kh, kw=kw,
                               pad=pad)
    return pl.pallas_call(
        kernel,
        out_shape=(jax.ShapeDtypeStruct((n, ho2 * wo2, ocp), jnp.bfloat16),
                   jax.ShapeDtypeStruct((n, 1, ocp), jnp.float32),
                   jax.ShapeDtypeStruct((n, 1, ocp), jnp.float32)),
        grid=(n,),
        in_specs=[
            pl.BlockSpec((1, hw, c), lambda i: (i, 0, 0)),
            pl.BlockSpec((1, c), lambda i: (0, 0)),
            pl.BlockSpec((1, c), lambda i: (0, 0)),
            pl.BlockSpec((kh * kw, c, ocp), lambda i: (0, 0, 0)),
            pl.BlockSpec((1, ocp), lambda i: (0, 0)),
        ],
        out_specs=(
            pl.BlockSpec((1, ho2 * wo2, ocp), lambda i: (i, 0, 0)),
            pl.BlockSpec((1, 1, ocp), lambda i: (i, 0, 0)),
            pl.BlockSpec((1, 1, ocp), lambda i: (i, 0, 0)),
        ),
        scratch_shapes=[pltpu.VMEM((ho + 2 * pad, wo + 2 * pad, c),
                                   jnp.bfloat16)],
        compiler_params=pltpu.CompilerParams(
            dimension_semantics=("parallel",),
            vmem_limit_bytes=VMEM_LIMIT),
    )(y1, scale1, shift1, w_taps, bias_row)


def bn_relu_add_call(y1, y2, s1, t1, s2, t2, oc):
    n, hw, c = y1.shape
    kernel = functools.partial(_bn_relu_add_kernel, oc=oc)
    return pl.pallas_call(
        kernel,
        out_shape=jax.ShapeDtypeStruct((n, hw, oc), jnp.float32),
        grid=(n,),
        in_specs=[
            pl.BlockSpec((1, hw, c), lambda i: (i, 0, 0)),
            pl.BlockSpec((1, hw, c), lambda i: (i, 0, 0)),
            pl.BlockSpec((1, c), lambda i: (0, 0)),
            pl.BlockSpec((1, c), lambda i: (0, 0)),
            pl.BlockSpec((1, c), lambda i: (0, 0)),
            pl.BlockSpec((1, c), lambda i: (0, 0)),
        ],
        out_specs=pl.BlockSpec((1, hw, oc), lambda i: (i, 0, 0)),
        compiler_params=pltpu.CompilerParams(
            dimension_semantics=("parallel",),
            vmem_limit_bytes=VMEM_LIMIT),
    )(y1, y2, s1, t1, s2, t2)


# ----------------------------- host-side glue -------------------------------


def _phase_pack(xp, s, cpk):
    """(N, Hp, Wp, C) padded image -> (N, ceil(Hp/s), ceil(Wp/s), cpk) with the
    s*s spatial phases packed (lane-dense) into the channel dim."""
    n, hp, wp, c = xp.shape
    hq, wq = -(-hp // s), -(-wp // s)
    out = jnp.zeros((n, hq, wq, cpk), xp.dtype)
    for pr in range(s):
        for pc in range(s):
            ph = pr * s + pc
            blk = xp[:, pr::s, pc::s, :]
            out = out.at[:, :blk.shape[1], :blk.shape[2],
                         ph * c:(ph + 1) * c].set(blk)
    return out


def _w1_window_groups(w, s, cpk, ocp):
    """(OC, Cin, kh, kw) torch layout -> (nwr*nwc, cpk, ocp) bf16; taps grouped
    by spatial window (i//s, j//s) at phase offset ((i%s)*s + j%s)*Cin in K."""
    oc, cin, kh, kw = w.shape
    nwr, nwc = -(-kh // s), -(-kw // s)
    wt = jnp.zeros((nwr * nwc, cpk, ocp), jnp.float32)
    for i in range(kh):
        for j in range(kw):
            win = (i // s) * nwc + (j // s)
            ph = (i % s) * s + (j % s)
            wt = wt.at[win, ph * cin:(ph + 1) * cin, :oc].set(w[:, :, i, j].T)
    return wt.astype(jnp.bfloat16)


def _w_to_taps(w, cin_pad, oc_pad):
    """(OC, Cin, kh, kw) torch layout -> (kh*kw, cin_pad, oc_pad) bf16."""
    oc, cin, kh, kw = w.shape
    wt = jnp.transpose(w, (2, 3, 1, 0)).reshape(kh * kw, cin, oc)
    wt = jnp.pad(wt, ((0, 0), (0, cin_pad - cin), (0, oc_pad - oc)))
    return wt.astype(jnp.bfloat16)


def _pad_row(v, width):
    return jnp.pad(v, (0, width - v.shape[0])).reshape(1, width)


def _finalize_bn(sum_p, sq_p, count, gamma_row, beta_row, eps=EPS):
    """Tiny reduction of per-image partials into folded BN scale/shift (f32)."""
    s = jnp.sum(sum_p[:, 0, :], axis=0, keepdims=True)
    q = jnp.sum(sq_p[:, 0, :], axis=0, keepdims=True)
    mean = s / count
    # TODO(synk): E[y^2]-E[y]^2 cancels catastrophically if |mean| >> std;
    # switch to a two-pass / Welford-style reduction for deep-layer use.
    var = jnp.maximum(q / count - mean * mean, 0.0)
    scale = gamma_row / jnp.sqrt(var + eps)
    shift = beta_row - mean * scale
    return scale, shift


def convblock_forward(x_nchw, p, ks=3, padding=1):
    """ConvBlock forward (repeats=2, residual_link=True, train-mode BatchNorm)."""
    n, ic, h, w = x_nchw.shape
    oc = p["w1"].shape[0]
    ocp = _round_up(oc, LANES)
    kh = kw = ks
    s0 = 2
    nwr, nwc = -(-kh // s0), -(-kw // s0)
    cpk = _round_up(s0 * s0 * ic, 8)
    ho = (h + 2 * padding - kh) // s0 + 1
    wo = (w + 2 * padding - kw) // s0 + 1

    x = jnp.transpose(x_nchw, (0, 2, 3, 1)).astype(jnp.bfloat16)        # NHWC
    xp = jnp.pad(x, ((0, 0), (padding, padding), (padding, padding), (0, 0)))
    xpk = _phase_pack(xp, s0, cpk)

    # --- repeat 0: conv stride 2 (+ bias + fused BN partial stats) ---
    y1, s1p, q1p = conv1_call(xpk, _w1_window_groups(p["w1"], s0, cpk, ocp),
                              _pad_row(p["b1"], ocp), ho, wo, nwr, nwc)
    scale1, shift1 = _finalize_bn(s1p, q1p, n * ho * wo,
                                  _pad_row(p["g1"], ocp), _pad_row(p["be1"], ocp))

    # --- repeat 1: BN1+ReLU fused into conv stride 1 (+ bias + stats) ---
    ho2 = ho + 2 * padding - kh + 1
    wo2 = wo + 2 * padding - kw + 1
    assert (ho2, wo2) == (ho, wo), "residual link needs kh == 2*padding + 1"
    y2, s2p, q2p = bnrelu_conv2_call(y1, scale1, shift1,
                                     _w_to_taps(p["w2"], ocp, ocp),
                                     _pad_row(p["b2"], ocp),
                                     ho, wo, kh, kw, padding)
    scale2, shift2 = _finalize_bn(s2p, q2p, n * ho * wo,
                                  _pad_row(p["g2"], ocp), _pad_row(p["be2"], ocp))

    # --- fused BN1*ReLU (recomputed) + BN2*ReLU + residual add ---
    out = bn_relu_add_call(y1, y2, scale1, shift1, scale2, shift2, oc)
    out = out.reshape(n, ho, wo, oc)
    return jnp.transpose(out, (0, 3, 1, 2))                             # NCHW


# ----------------------------- reference & init -----------------------------


def reference_convblock(x, p, ks=3, padding=1, eps=EPS):
    def conv(x_, w_, b_, s_):
        y = lax.conv_general_dilated(
            x_, w_, (s_, s_), [(padding, padding), (padding, padding)],
            dimension_numbers=("NCHW", "OIHW", "NCHW"))
        return y + b_[None, :, None, None]

    def bn(x_, g_, b_):
        m = jnp.mean(x_, axis=(0, 2, 3), keepdims=True)
        v = jnp.mean((x_ - m) ** 2, axis=(0, 2, 3), keepdims=True)
        return g_[None, :, None, None] * (x_ - m) / jnp.sqrt(v + eps) \
            + b_[None, :, None, None]

    x1 = jax.nn.relu(bn(conv(x, p["w1"], p["b1"], 2), p["g1"], p["be1"]))
    x2 = x1 + jax.nn.relu(bn(conv(x1, p["w2"], p["b2"], 1), p["g2"], p["be2"]))
    return x2


def init_params(key, ic, oc, ks):
    keys = jax.random.split(key, 8)

    def nrm(k, shape, s=0.1):
        return s * jax.random.normal(k, shape, jnp.float32)

    return dict(
        w1=nrm(keys[0], (oc, ic, ks, ks)), b1=nrm(keys[1], (oc,)),
        g1=1.0 + nrm(keys[2], (oc,)), be1=nrm(keys[3], (oc,)),
        w2=nrm(keys[4], (oc, oc, ks, ks)), b2=nrm(keys[5], (oc,)),
        g2=1.0 + nrm(keys[6], (oc,)), be2=nrm(keys[7], (oc,)),
    )


if __name__ == "__main__":
    key = jax.random.PRNGKey(0)
    k_x, k_p = jax.random.split(key)
    N, IC, OC, H, W = 2, 4, 8, 16, 16
    KS, PAD = 3, 1

    x = jax.random.normal(k_x, (N, IC, H, W), jnp.float32)
    params = init_params(k_p, IC, OC, KS)

    fwd = jax.jit(functools.partial(convblock_forward, ks=KS, padding=PAD))
    out = jax.block_until_ready(fwd(x, params))

    ref = reference_convblock(x, params, KS, PAD)
    assert out.shape == ref.shape, (out.shape, ref.shape)
    err = float(jnp.max(jnp.abs(out - ref)))
    # bf16 activations/weights + bf16 y1/y2 storage (f32 accumulation & stats):
    # ~1e-2 worst-case abs error vs the pure-f32 reference is expected.
    assert jnp.allclose(out, ref, rtol=2e-2, atol=2e-2), f"max abs err {err}"
    print("KERNEL_OK")
</pallas_src>

<mosaic_0001>
module attributes {stable_mosaic.version = 11 : i64} {
  func.func @_conv1_kernel(%arg0: i32, %arg1: memref<1x9x9x16xbf16, #tpu.memory_space<vmem>>, %arg2: memref<4x16x128xbf16, #tpu.memory_space<vmem>>, %arg3: memref<1x128xf32, #tpu.memory_space<vmem>>, %arg4: memref<1x64x128xbf16, #tpu.memory_space<vmem>>, %arg5: memref<1x1x128xf32, #tpu.memory_space<vmem>>, %arg6: memref<1x1x128xf32, #tpu.memory_space<vmem>>) attributes {dimension_semantics = [#tpu.dimension_semantics<parallel>], iteration_bounds = array<i64: 2>, scalar_prefetch = 0 : i64, scratch_operands = 0 : i64, tpu.core_type = #tpu.core_type<tc>, window_params = [{transform_indices = @transform_0, window_bounds = array<i64: 1, 9, 9, 16>}, {pipeline_mode = #tpu.pipeline_mode<synchronous>, transform_indices = @transform_1, window_bounds = array<i64: 4, 16, 128>}, {pipeline_mode = #tpu.pipeline_mode<synchronous>, transform_indices = @transform_2, window_bounds = array<i64: 1, 128>}, {transform_indices = @transform_3, window_bounds = array<i64: 1, 64, 128>}, {transform_indices = @transform_4, window_bounds = array<i64: 1, 1, 128>}, {transform_indices = @transform_5, window_bounds = array<i64: 1, 1, 128>}]} {
    %c0 = arith.constant 0 : index
    %c0_0 = arith.constant 0 : index
    %c0_1 = arith.constant 0 : index
    %c0_2 = arith.constant 0 : index
    %0 = vector.load %arg1[%c0, %c0_0, %c0_1, %c0_2] : memref<1x9x9x16xbf16, #tpu.memory_space<vmem>>, vector<1x8x8x16xbf16>
    %1 = vector.shape_cast %0 : vector<1x8x8x16xbf16> to vector<8x8x16xbf16>
    %2 = vector.shape_cast %1 : vector<8x8x16xbf16> to vector<64x16xbf16>
    %c0_3 = arith.constant 0 : index
    %c0_4 = arith.constant 0 : index
    %c0_5 = arith.constant 0 : index
    %3 = vector.load %arg2[%c0_3, %c0_4, %c0_5] : memref<4x16x128xbf16, #tpu.memory_space<vmem>>, vector<1x16x128xbf16>
    %4 = vector.shape_cast %3 : vector<1x16x128xbf16> to vector<16x128xbf16>
    %cst = arith.constant dense<0.000000e+00> : vector<64x128xf32>
    %5 = tpu.matmul %2, %4, %cst {dimension_numbers = #tpu.dot_dimension_numbers<[1], [0], [0], [1], [0, 0, 1, 1], [], []>} : vector<64x16xbf16>, vector<16x128xbf16>, vector<64x128xf32> -> vector<64x128xf32>
    %c0_6 = arith.constant 0 : index
    %c0_7 = arith.constant 0 : index
    %c1 = arith.constant 1 : index
    %c0_8 = arith.constant 0 : index
    %6 = vector.load %arg1[%c0_6, %c0_7, %c1, %c0_8] : memref<1x9x9x16xbf16, #tpu.memory_space<vmem>>, vector<1x8x8x16xbf16>
    %7 = vector.shape_cast %6 : vector<1x8x8x16xbf16> to vector<8x8x16xbf16>
    %8 = vector.shape_cast %7 : vector<8x8x16xbf16> to vector<64x16xbf16>
    %c1_9 = arith.constant 1 : index
    %c0_10 = arith.constant 0 : index
    %c0_11 = arith.constant 0 : index
    %9 = vector.load %arg2[%c1_9, %c0_10, %c0_11] : memref<4x16x128xbf16, #tpu.memory_space<vmem>>, vector<1x16x128xbf16>
    %10 = vector.shape_cast %9 : vector<1x16x128xbf16> to vector<16x128xbf16>
    %cst_12 = arith.constant dense<0.000000e+00> : vector<64x128xf32>
    %11 = tpu.matmul %8, %10, %cst_12 {dimension_numbers = #tpu.dot_dimension_numbers<[1], [0], [0], [1], [0, 0, 1, 1], [], []>} : vector<64x16xbf16>, vector<16x128xbf16>, vector<64x128xf32> -> vector<64x128xf32>
    %12 = arith.addf %5, %11 : vector<64x128xf32>
    %c0_13 = arith.constant 0 : index
    %c1_14 = arith.constant 1 : index
    %c0_15 = arith.constant 0 : index
    %c0_16 = arith.constant 0 : index
    %13 = vector.load %arg1[%c0_13, %c1_14, %c0_15, %c0_16] : memref<1x9x9x16xbf16, #tpu.memory_space<vmem>>, vector<1x8x8x16xbf16>
    %14 = vector.shape_cast %13 : vector<1x8x8x16xbf16> to vector<8x8x16xbf16>
    %15 = vector.shape_cast %14 : vector<8x8x16xbf16> to vector<64x16xbf16>
    %c2 = arith.constant 2 : index
    %c0_17 = arith.constant 0 : index
    %c0_18 = arith.constant 0 : index
    %16 = vector.load %arg2[%c2, %c0_17, %c0_18] : memref<4x16x128xbf16, #tpu.memory_space<vmem>>, vector<1x16x128xbf16>
    %17 = vector.shape_cast %16 : vector<1x16x128xbf16> to vector<16x128xbf16>
    %cst_19 = arith.constant dense<0.000000e+00> : vector<64x128xf32>
    %18 = tpu.matmul %15, %17, %cst_19 {dimension_numbers = #tpu.dot_dimension_numbers<[1], [0], [0], [1], [0, 0, 1, 1], [], []>} : vector<64x16xbf16>, vector<16x128xbf16>, vector<64x128xf32> -> vector<64x128xf32>
    %19 = arith.addf %12, %18 : vector<64x128xf32>
    %c0_20 = arith.constant 0 : index
    %c1_21 = arith.constant 1 : index
    %c1_22 = arith.constant 1 : index
    %c0_23 = arith.constant 0 : index
    %20 = vector.load %arg1[%c0_20, %c1_21, %c1_22, %c0_23] : memref<1x9x9x16xbf16, #tpu.memory_space<vmem>>, vector<1x8x8x16xbf16>
    %21 = vector.shape_cast %20 : vector<1x8x8x16xbf16> to vector<8x8x16xbf16>
    %22 = vector.shape_cast %21 : vector<8x8x16xbf16> to vector<64x16xbf16>
    %c3 = arith.constant 3 : index
    %c0_24 = arith.constant 0 : index
    %c0_25 = arith.constant 0 : index
    %23 = vector.load %arg2[%c3, %c0_24, %c0_25] : memref<4x16x128xbf16, #tpu.memory_space<vmem>>, vector<1x16x128xbf16>
    %24 = vector.shape_cast %23 : vector<1x16x128xbf16> to vector<16x128xbf16>
    %cst_26 = arith.constant dense<0.000000e+00> : vector<64x128xf32>
    %25 = tpu.matmul %22, %24, %cst_26 {dimension_numbers = #tpu.dot_dimension_numbers<[1], [0], [0], [1], [0, 0, 1, 1], [], []>} : vector<64x16xbf16>, vector<16x128xbf16>, vector<64x128xf32> -> vector<64x128xf32>
    %26 = arith.addf %19, %25 : vector<64x128xf32>
    %c0_27 = arith.constant 0 : index
    %c0_28 = arith.constant 0 : index
    %27 = vector.load %arg3[%c0_27, %c0_28] : memref<1x128xf32, #tpu.memory_space<vmem>>, vector<1x128xf32>
    %28 = vector.broadcast %27 : vector<1x128xf32> to vector<64x128xf32>
    %29 = arith.addf %26, %28 : vector<64x128xf32>
    %cst_29 = arith.constant dense<0.000000e+00> : vector<128xf32>
    %30 = vector.multi_reduction <add>, %29, %cst_29 [0] : vector<64x128xf32> to vector<128xf32>
    %31 = vector.shape_cast %30 : vector<128xf32> to vector<1x128xf32>
    %c0_30 = arith.constant 0 : index
    %c0_31 = arith.constant 0 : index
    %c0_32 = arith.constant 0 : index
    %32 = vector.load %arg5[%c0_30, %c0_31, %c0_32] : memref<1x1x128xf32, #tpu.memory_space<vmem>>, vector<1x1x128xf32>
    %33 = vector.shape_cast %32 : vector<1x1x128xf32> to vector<1x128xf32>
    %34 = vector.shape_cast %31 : vector<1x128xf32> to vector<1x1x128xf32>
    tpu.vector_store %arg5[%c0_30, %c0_31, %c0_32], %34 {strides = array<i32>} : memref<1x1x128xf32, #tpu.memory_space<vmem>>, vector<1x1x128xf32>,
    %35 = arith.mulf %29, %29 : vector<64x128xf32>
    %cst_33 = arith.constant dense<0.000000e+00> : vector<128xf32>
    %36 = vector.multi_reduction <add>, %35, %cst_33 [0] : vector<64x128xf32> to vector<128xf32>
    %37 = vector.shape_cast %36 : vector<128xf32> to vector<1x128xf32>
    %c0_34 = arith.constant 0 : index
    %c0_35 = arith.constant 0 : index
    %c0_36 = arith.constant 0 : index
    %38 = vector.load %arg6[%c0_34, %c0_35, %c0_36] : memref<1x1x128xf32, #tpu.memory_space<vmem>>, vector<1x1x128xf32>
    %39 = vector.shape_cast %38 : vector<1x1x128xf32> to vector<1x128xf32>
    %40 = vector.shape_cast %37 : vector<1x128xf32> to vector<1x1x128xf32>
    tpu.vector_store %arg6[%c0_34, %c0_35, %c0_36], %40 {strides = array<i32>} : memref<1x1x128xf32, #tpu.memory_space<vmem>>, vector<1x1x128xf32>,
    %41 = arith.truncf %29 : vector<64x128xf32> to vector<64x128xbf16>
    %c0_37 = arith.constant 0 : index
    %c0_38 = arith.constant 0 : index
    %c0_39 = arith.constant 0 : index
    %42 = vector.load %arg4[%c0_37, %c0_38, %c0_39] : memref<1x64x128xbf16, #tpu.memory_space<vmem>>, vector<1x64x128xbf16>
    %43 = vector.shape_cast %42 : vector<1x64x128xbf16> to vector<64x128xbf16>
    %44 = vector.shape_cast %41 : vector<64x128xbf16> to vector<1x64x128xbf16>
    tpu.vector_store %arg4[%c0_37, %c0_38, %c0_39], %44 {strides = array<i32>} : memref<1x64x128xbf16, #tpu.memory_space<vmem>>, vector<1x64x128xbf16>,
    return
  }
  func.func @transform_0(%arg0: i32) -> (i32, i32, i32, i32) {
    %c0_i32 = arith.constant 0 : i32
    %c0_i32_0 = arith.constant 0 : i32
    %c0_i32_1 = arith.constant 0 : i32
    %c0_i32_2 = arith.constant 0 : i32
    return %arg0, %c0_i32, %c0_i32_0, %c0_i32_1 : i32, i32, i32, i32
  }
  func.func @transform_1(%arg0: i32) -> (i32, i32, i32) {
    %c0_i32 = arith.constant 0 : i32
    %c0_i32_0 = arith.constant 0 : i32
    %c0_i32_1 = arith.constant 0 : i32
    %c0_i32_2 = arith.constant 0 : i32
    return %c0_i32, %c0_i32_0, %c0_i32_1 : i32, i32, i32
  }
  func.func @transform_2(%arg0: i32) -> (i32, i32) {
    %c0_i32 = arith.constant 0 : i32
    %c0_i32_0 = arith.constant 0 : i32
    %c0_i32_1 = arith.constant 0 : i32
    return %c0_i32, %c0_i32_0 : i32, i32
  }
  func.func @transform_3(%arg0: i32) -> (i32, i32, i32) {
    %c0_i32 = arith.constant 0 : i32
    %c0_i32_0 = arith.constant 0 : i32
    %c0_i32_1 = arith.constant 0 : i32
    return %arg0, %c0_i32, %c0_i32_0 : i32, i32, i32
  }
  func.func @transform_4(%arg0: i32) -> (i32, i32, i32) {
    %c0_i32 = arith.constant 0 : i32
    %c0_i32_0 = arith.constant 0 : i32
    %c0_i32_1 = arith.constant 0 : i32
    return %arg0, %c0_i32, %c0_i32_0 : i32, i32, i32
  }
  func.func @transform_5(%arg0: i32) -> (i32, i32, i32) {
    %c0_i32 = arith.constant 0 : i32
    %c0_i32_0 = arith.constant 0 : i32
    %c0_i32_1 = arith.constant 0 : i32
    return %arg0, %c0_i32, %c0_i32_0 : i32, i32, i32
  }
}

module attributes {stable_mosaic.version = 11 : i64} {
  func.func @_bn_relu_add_kernel(%arg0: i32, %arg1: memref<1x64x128xbf16, #tpu.memory_space<vmem>>, %arg2: memref<1x64x128xbf16, #tpu.memory_space<vmem>>, %arg3: memref<1x128xf32, #tpu.memory_space<vmem>>, %arg4: memref<1x128xf32, #tpu.memory_space<vmem>>, %arg5: memref<1x128xf32, #tpu.memory_space<vmem>>, %arg6: memref<1x128xf32, #tpu.memory_space<vmem>>, %arg7: memref<1x64x8xf32, #tpu.memory_space<vmem>>) attributes {dimension_semantics = [#tpu.dimension_semantics<parallel>], iteration_bounds = array<i64: 2>, scalar_prefetch = 0 : i64, scratch_operands = 0 : i64, tpu.core_type = #tpu.core_type<tc>, window_params = [{transform_indices = @transform_0, window_bounds = array<i64: 1, 64, 128>}, {transform_indices = @transform_1, window_bounds = array<i64: 1, 64, 128>}, {pipeline_mode = #tpu.pipeline_mode<synchronous>, transform_indices = @transform_2, window_bounds = array<i64: 1, 128>}, {pipeline_mode = #tpu.pipeline_mode<synchronous>, transform_indices = @transform_3, window_bounds = array<i64: 1, 128>}, {pipeline_mode = #tpu.pipeline_mode<synchronous>, transform_indices = @transform_4, window_bounds = array<i64: 1, 128>}, {pipeline_mode = #tpu.pipeline_mode<synchronous>, transform_indices = @transform_5, window_bounds = array<i64: 1, 128>}, {transform_indices = @transform_6, window_bounds = array<i64: 1, 64, 8>}]} {
    %c0 = arith.constant 0 : index
    %c0_0 = arith.constant 0 : index
    %c0_1 = arith.constant 0 : index
    %0 = vector.load %arg1[%c0, %c0_0, %c0_1] : memref<1x64x128xbf16, #tpu.memory_space<vmem>>, vector<1x64x128xbf16>
    %1 = vector.shape_cast %0 : vector<1x64x128xbf16> to vector<64x128xbf16>
    %2 = arith.extf %1 : vector<64x128xbf16> to vector<64x128xf32>
    %c0_2 = arith.constant 0 : index
    %c0_3 = arith.constant 0 : index
    %3 = vector.load %arg3[%c0_2, %c0_3] : memref<1x128xf32, #tpu.memory_space<vmem>>, vector<1x128xf32>
    %4 = vector.broadcast %3 : vector<1x128xf32> to vector<64x128xf32>
    %5 = arith.mulf %2, %4 : vector<64x128xf32>
    %c0_4 = arith.constant 0 : index
    %c0_5 = arith.constant 0 : index
    %6 = vector.load %arg4[%c0_4, %c0_5] : memref<1x128xf32, #tpu.memory_space<vmem>>, vector<1x128xf32>
    %7 = vector.broadcast %6 : vector<1x128xf32> to vector<64x128xf32>
    %8 = arith.addf %5, %7 : vector<64x128xf32>
    %cst = arith.constant 0.000000e+00 : f32
    %9 = vector.broadcast %cst : f32 to vector<64x128xf32>
    %10 = arith.maximumf %8, %9 : vector<64x128xf32>
    %c0_6 = arith.constant 0 : index
    %c0_7 = arith.constant 0 : index
    %c0_8 = arith.constant 0 : index
    %11 = vector.load %arg2[%c0_6, %c0_7, %c0_8] : memref<1x64x128xbf16, #tpu.memory_space<vmem>>, vector<1x64x128xbf16>
    %12 = vector.shape_cast %11 : vector<1x64x128xbf16> to vector<64x128xbf16>
    %13 = arith.extf %12 : vector<64x128xbf16> to vector<64x128xf32>
    %c0_9 = arith.constant 0 : index
    %c0_10 = arith.constant 0 : index
    %14 = vector.load %arg5[%c0_9, %c0_10] : memref<1x128xf32, #tpu.memory_space<vmem>>, vector<1x128xf32>
    %15 = vector.broadcast %14 : vector<1x128xf32> to vector<64x128xf32>
    %16 = arith.mulf %13, %15 : vector<64x128xf32>
    %c0_11 = arith.constant 0 : index
    %c0_12 = arith.constant 0 : index
    %17 = vector.load %arg6[%c0_11, %c0_12] : memref<1x128xf32, #tpu.memory_space<vmem>>, vector<1x128xf32>
    %18 = vector.broadcast %17 : vector<1x128xf32> to vector<64x128xf32>
    %19 = arith.addf %16, %18 : vector<64x128xf32>
    %cst_13 = arith.constant 0.000000e+00 : f32
    %20 = vector.broadcast %cst_13 : f32 to vector<64x128xf32>
    %21 = arith.maximumf %19, %20 : vector<64x128xf32>
    %22 = arith.addf %10, %21 : vector<64x128xf32>
    %23 = vector.extract_strided_slice %22 {offsets = [0, 0], sizes = [64, 8], strides = [1, 1]} : vector<64x128xf32> to vector<64x8xf32>
    %c0_14 = arith.constant 0 : index
    %c0_15 = arith.constant 0 : index
    %c0_16 = arith.constant 0 : index
    %24 = vector.load %arg7[%c0_14, %c0_15, %c0_16] : memref<1x64x8xf32, #tpu.memory_space<vmem>>, vector<1x64x8xf32>
    %25 = vector.shape_cast %24 : vector<1x64x8xf32> to vector<64x8xf32>
    %26 = vector.shape_cast %23 : vector<64x8xf32> to vector<1x64x8xf32>
    tpu.vector_store %arg7[%c0_14, %c0_15, %c0_16], %26 {strides = array<i32>} : memref<1x64x8xf32, #tpu.memory_space<vmem>>, vector<1x64x8xf32>,
    return
  }
  func.func @transform_0(%arg0: i32) -> (i32, i32, i32) {
    %c0_i32 = arith.constant 0 : i32
    %c0_i32_0 = arith.constant 0 : i32
    %c0_i32_1 = arith.constant 0 : i32
    return %arg0, %c0_i32, %c0_i32_0 : i32, i32, i32
  }
  func.func @transform_1(%arg0: i32) -> (i32, i32, i32) {
    %c0_i32 = arith.constant 0 : i32
    %c0_i32_0 = arith.constant 0 : i32
    %c0_i32_1 = arith.constant 0 : i32
    return %arg0, %c0_i32, %c0_i32_0 : i32, i32, i32
  }
  func.func @transform_2(%arg0: i32) -> (i32, i32) {
    %c0_i32 = arith.constant 0 : i32
    %c0_i32_0 = arith.constant 0 : i32
    %c0_i32_1 = arith.constant 0 : i32
    return %c0_i32, %c0_i32_0 : i32, i32
  }
  func.func @transform_3(%arg0: i32) -> (i32, i32) {
    %c0_i32 = arith.constant 0 : i32
    %c0_i32_0 = arith.constant 0 : i32
    %c0_i32_1 = arith.constant 0 : i32
    return %c0_i32, %c0_i32_0 : i32, i32
  }
  func.func @transform_4(%arg0: i32) -> (i32, i32) {
    %c0_i32 = arith.constant 0 : i32
    %c0_i32_0 = arith.constant 0 : i32
    %c0_i32_1 = arith.constant 0 : i32
    return %c0_i32, %c0_i32_0 : i32, i32
  }
  func.func @transform_5(%arg0: i32) -> (i32, i32) {
    %c0_i32 = arith.constant 0 : i32
    %c0_i32_0 = arith.constant 0 : i32
    %c0_i32_1 = arith.constant 0 : i32
    return %c0_i32, %c0_i32_0 : i32, i32
  }
  func.func @transform_6(%arg0: i32) -> (i32, i32, i32) {
    %c0_i32 = arith.constant 0 : i32
    %c0_i32_0 = arith.constant 0 : i32
    %c0_i32_1 = arith.constant 0 : i32
    return %arg0, %c0_i32, %c0_i32_0 : i32, i32, i32
  }
}

module attributes {stable_mosaic.version = 11 : i64} {
  func.func @_bnrelu_conv2_kernel(%arg0: i32, %arg1: memref<1x64x128xbf16, #tpu.memory_space<vmem>>, %arg2: memref<1x128xf32, #tpu.memory_space<vmem>>, %arg3: memref<1x128xf32, #tpu.memory_space<vmem>>, %arg4: memref<9x128x128xbf16, #tpu.memory_space<vmem>>, %arg5: memref<1x128xf32, #tpu.memory_space<vmem>>, %arg6: memref<1x64x128xbf16, #tpu.memory_space<vmem>>, %arg7: memref<1x1x128xf32, #tpu.memory_space<vmem>>, %arg8: memref<1x1x128xf32, #tpu.memory_space<vmem>>, %arg9: memref<10x10x128xbf16, #tpu.memory_space<vmem>>) attributes {dimension_semantics = [#tpu.dimension_semantics<parallel>], iteration_bounds = array<i64: 2>, scalar_prefetch = 0 : i64, scratch_operands = 1 : i64, tpu.core_type = #tpu.core_type<tc>, window_params = [{transform_indices = @transform_0, window_bounds = array<i64: 1, 64, 128>}, {pipeline_mode = #tpu.pipeline_mode<synchronous>, transform_indices = @transform_1, window_bounds = array<i64: 1, 128>}, {pipeline_mode = #tpu.pipeline_mode<synchronous>, transform_indices = @transform_2, window_bounds = array<i64: 1, 128>}, {pipeline_mode = #tpu.pipeline_mode<synchronous>, transform_indices = @transform_3, window_bounds = array<i64: 9, 128, 128>}, {pipeline_mode = #tpu.pipeline_mode<synchronous>, transform_indices = @transform_4, window_bounds = array<i64: 1, 128>}, {transform_indices = @transform_5, window_bounds = array<i64: 1, 64, 128>}, {transform_indices = @transform_6, window_bounds = array<i64: 1, 1, 128>}, {transform_indices = @transform_7, window_bounds = array<i64: 1, 1, 128>}]} {
    %c0 = arith.constant 0 : index
    %c0_0 = arith.constant 0 : index
    %c0_1 = arith.constant 0 : index
    %0 = vector.load %arg1[%c0, %c0_0, %c0_1] : memref<1x64x128xbf16, #tpu.memory_space<vmem>>, vector<1x64x128xbf16>
    %1 = vector.shape_cast %0 : vector<1x64x128xbf16> to vector<64x128xbf16>
    %2 = arith.extf %1 : vector<64x128xbf16> to vector<64x128xf32>
    %c0_2 = arith.constant 0 : index
    %c0_3 = arith.constant 0 : index
    %3 = vector.load %arg2[%c0_2, %c0_3] : memref<1x128xf32, #tpu.memory_space<vmem>>, vector<1x128xf32>
    %4 = vector.broadcast %3 : vector<1x128xf32> to vector<64x128xf32>
    %5 = arith.mulf %2, %4 : vector<64x128xf32>
    %c0_4 = arith.constant 0 : index
    %c0_5 = arith.constant 0 : index
    %6 = vector.load %arg3[%c0_4, %c0_5] : memref<1x128xf32, #tpu.memory_space<vmem>>, vector<1x128xf32>
    %7 = vector.broadcast %6 : vector<1x128xf32> to vector<64x128xf32>
    %8 = arith.addf %5, %7 : vector<64x128xf32>
    %cst = arith.constant 0.000000e+00 : f32
    %9 = vector.broadcast %cst : f32 to vector<64x128xf32>
    %10 = arith.maximumf %8, %9 : vector<64x128xf32>
    %cst_6 = arith.constant 0.000000e+00 : bf16
    %11 = vector.broadcast %cst_6 : bf16 to vector<1x10x128xbf16>
    %c0_7 = arith.constant 0 : index
    %c0_8 = arith.constant 0 : index
    %c0_9 = arith.constant 0 : index
    %12 = vector.load %arg9[%c0_7, %c0_8, %c0_9] : memref<10x10x128xbf16, #tpu.memory_space<vmem>>, vector<1x10x128xbf16>
    tpu.vector_store %arg9[%c0_7, %c0_8, %c0_9], %11 {strides = array<i32>} : memref<10x10x128xbf16, #tpu.memory_space<vmem>>, vector<1x10x128xbf16>,
    %c9 = arith.constant 9 : index
    %c0_10 = arith.constant 0 : index
    %c0_11 = arith.constant 0 : index
    %13 = vector.load %arg9[%c9, %c0_10, %c0_11] : memref<10x10x128xbf16, #tpu.memory_space<vmem>>, vector<1x10x128xbf16>
    tpu.vector_store %arg9[%c9, %c0_10, %c0_11], %11 {strides = array<i32>} : memref<10x10x128xbf16, #tpu.memory_space<vmem>>, vector<1x10x128xbf16>,
    %cst_12 = arith.constant 0.000000e+00 : bf16
    %14 = vector.broadcast %cst_12 : bf16 to vector<8x1x128xbf16>
    %c1 = arith.constant 1 : index
    %c0_13 = arith.constant 0 : index
    %c0_14 = arith.constant 0 : index
    %15 = vector.load %arg9[%c1, %c0_13, %c0_14] : memref<10x10x128xbf16, #tpu.memory_space<vmem>>, vector<8x1x128xbf16>
    tpu.vector_store %arg9[%c1, %c0_13, %c0_14], %14 {strides = array<i32>} : memref<10x10x128xbf16, #tpu.memory_space<vmem>>, vector<8x1x128xbf16>,
    %c1_15 = arith.constant 1 : index
    %c9_16 = arith.constant 9 : index
    %c0_17 = arith.constant 0 : index
    %16 = vector.load %arg9[%c1_15, %c9_16, %c0_17] : memref<10x10x128xbf16, #tpu.memory_space<vmem>>, vector<8x1x128xbf16>
    tpu.vector_store %arg9[%c1_15, %c9_16, %c0_17], %14 {strides = array<i32>} : memref<10x10x128xbf16, #tpu.memory_space<vmem>>, vector<8x1x128xbf16>,
    %17 = arith.truncf %10 : vector<64x128xf32> to vector<64x128xbf16>
    %18 = vector.shape_cast %17 : vector<64x128xbf16> to vector<8x8x128xbf16>
    %c1_18 = arith.constant 1 : index
    %c1_19 = arith.constant 1 : index
    %c0_20 = arith.constant 0 : index
    %19 = vector.load %arg9[%c1_18, %c1_19, %c0_20] : memref<10x10x128xbf16, #tpu.memory_space<vmem>>, vector<8x8x128xbf16>
    tpu.vector_store %arg9[%c1_18, %c1_19, %c0_20], %18 {strides = array<i32>} : memref<10x10x128xbf16, #tpu.memory_space<vmem>>, vector<8x8x128xbf16>,
    %c0_21 = arith.constant 0 : index
    %c0_22 = arith.constant 0 : index
    %c0_23 = arith.constant 0 : index
    %20 = vector.load %arg9[%c0_21, %c0_22, %c0_23] : memref<10x10x128xbf16, #tpu.memory_space<vmem>>, vector<8x8x128xbf16>
    %21 = vector.shape_cast %20 : vector<8x8x128xbf16> to vector<64x128xbf16>
    %c0_24 = arith.constant 0 : index
    %c0_25 = arith.constant 0 : index
    %c0_26 = arith.constant 0 : index
    %22 = vector.load %arg4[%c0_24, %c0_25, %c0_26] : memref<9x128x128xbf16, #tpu.memory_space<vmem>>, vector<1x128x128xbf16>
    %23 = vector.shape_cast %22 : vector<1x128x128xbf16> to vector<128x128xbf16>
    %cst_27 = arith.constant dense<0.000000e+00> : vector<64x128xf32>
    %24 = tpu.matmul %21, %23, %cst_27 {dimension_numbers = #tpu.dot_dimension_numbers<[1], [0], [0], [1], [0, 0, 1, 1], [], []>} : vector<64x128xbf16>, vector<128x128xbf16>, vector<64x128xf32> -> vector<64x128xf32>
    %c0_28 = arith.constant 0 : index
    %c1_29 = arith.constant 1 : index
    %c0_30 = arith.constant 0 : index
    %25 = vector.load %arg9[%c0_28, %c1_29, %c0_30] : memref<10x10x128xbf16, #tpu.memory_space<vmem>>, vector<8x8x128xbf16>
    %26 = vector.shape_cast %25 : vector<8x8x128xbf16> to vector<64x128xbf16>
    %c1_31 = arith.constant 1 : index
    %c0_32 = arith.constant 0 : index
    %c0_33 = arith.constant 0 : index
    %27 = vector.load %arg4[%c1_31, %c0_32, %c0_33] : memref<9x128x128xbf16, #tpu.memory_space<vmem>>, vector<1x128x128xbf16>
    %28 = vector.shape_cast %27 : vector<1x128x128xbf16> to vector<128x128xbf16>
    %cst_34 = arith.constant dense<0.000000e+00> : vector<64x128xf32>
    %29 = tpu.matmul %26, %28, %cst_34 {dimension_numbers = #tpu.dot_dimension_numbers<[1], [0], [0], [1], [0, 0, 1, 1], [], []>} : vector<64x128xbf16>, vector<128x128xbf16>, vector<64x128xf32> -> vector<64x128xf32>
    %30 = arith.addf %24, %29 : vector<64x128xf32>
    %c0_35 = arith.constant 0 : index
    %c2 = arith.constant 2 : index
    %c0_36 = arith.constant 0 : index
    %31 = vector.load %arg9[%c0_35, %c2, %c0_36] : memref<10x10x128xbf16, #tpu.memory_space<vmem>>, vector<8x8x128xbf16>
    %32 = vector.shape_cast %31 : vector<8x8x128xbf16> to vector<64x128xbf16>
    %c2_37 = arith.constant 2 : index
    %c0_38 = arith.constant 0 : index
    %c0_39 = arith.constant 0 : index
    %33 = vector.load %arg4[%c2_37, %c0_38, %c0_39] : memref<9x128x128xbf16, #tpu.memory_space<vmem>>, vector<1x128x128xbf16>
    %34 = vector.shape_cast %33 : vector<1x128x128xbf16> to vector<128x128xbf16>
    %cst_40 = arith.constant dense<0.000000e+00> : vector<64x128xf32>
    %35 = tpu.matmul %32, %34, %cst_40 {dimension_numbers = #tpu.dot_dimension_numbers<[1], [0], [0], [1], [0, 0, 1, 1], [], []>} : vector<64x128xbf16>, vector<128x128xbf16>, vector<64x128xf32> -> vector<64x128xf32>
    %36 = arith.addf %30, %35 : vector<64x128xf32>
    %c1_41 = arith.constant 1 : index
    %c0_42 = arith.constant 0 : index
    %c0_43 = arith.constant 0 : index
    %37 = vector.load %arg9[%c1_41, %c0_42, %c0_43] : memref<10x10x128xbf16, #tpu.memory_space<vmem>>, vector<8x8x128xbf16>
    %38 = vector.shape_cast %37 : vector<8x8x128xbf16> to vector<64x128xbf16>
    %c3 = arith.constant 3 : index
    %c0_44 = arith.constant 0 : index
    %c0_45 = arith.constant 0 : index
    %39 = vector.load %arg4[%c3, %c0_44, %c0_45] : memref<9x128x128xbf16, #tpu.memory_space<vmem>>, vector<1x128x128xbf16>
    %40 = vector.shape_cast %39 : vector<1x128x128xbf16> to vector<128x128xbf16>
    %cst_46 = arith.constant dense<0.000000e+00> : vector<64x128xf32>
    %41 = tpu.matmul %38, %40, %cst_46 {dimension_numbers = #tpu.dot_dimension_numbers<[1], [0], [0], [1], [0, 0, 1, 1], [], []>} : vector<64x128xbf16>, vector<128x128xbf16>, vector<64x128xf32> -> vector<64x128xf32>
    %42 = arith.addf %36, %41 : vector<64x128xf32>
    %c1_47 = arith.constant 1 : index
    %c1_48 = arith.constant 1 : index
    %c0_49 = arith.constant 0 : index
    %43 = vector.load %arg9[%c1_47, %c1_48, %c0_49] : memref<10x10x128xbf16, #tpu.memory_space<vmem>>, vector<8x8x128xbf16>
    %44 = vector.shape_cast %43 : vector<8x8x128xbf16> to vector<64x128xbf16>
    %c4 = arith.constant 4 : index
    %c0_50 = arith.constant 0 : index
    %c0_51 = arith.constant 0 : index
    %45 = vector.load %arg4[%c4, %c0_50, %c0_51] : memref<9x128x128xbf16, #tpu.memory_space<vmem>>, vector<1x128x128xbf16>
    %46 = vector.shape_cast %45 : vector<1x128x128xbf16> to vector<128x128xbf16>
    %cst_52 = arith.constant dense<0.000000e+00> : vector<64x128xf32>
    %47 = tpu.matmul %44, %46, %cst_52 {dimension_numbers = #tpu.dot_dimension_numbers<[1], [0], [0], [1], [0, 0, 1, 1], [], []>} : vector<64x128xbf16>, vector<128x128xbf16>, vector<64x128xf32> -> vector<64x128xf32>
    %48 = arith.addf %42, %47 : vector<64x128xf32>
    %c1_53 = arith.constant 1 : index
    %c2_54 = arith.constant 2 : index
    %c0_55 = arith.constant 0 : index
    %49 = vector.load %arg9[%c1_53, %c2_54, %c0_55] : memref<10x10x128xbf16, #tpu.memory_space<vmem>>, vector<8x8x128xbf16>
    %50 = vector.shape_cast %49 : vector<8x8x128xbf16> to vector<64x128xbf16>
    %c5 = arith.constant 5 : index
    %c0_56 = arith.constant 0 : index
    %c0_57 = arith.constant 0 : index
    %51 = vector.load %arg4[%c5, %c0_56, %c0_57] : memref<9x128x128xbf16, #tpu.memory_space<vmem>>, vector<1x128x128xbf16>
    %52 = vector.shape_cast %51 : vector<1x128x128xbf16> to vector<128x128xbf16>
    %cst_58 = arith.constant dense<0.000000e+00> : vector<64x128xf32>
    %53 = tpu.matmul %50, %52, %cst_58 {dimension_numbers = #tpu.dot_dimension_numbers<[1], [0], [0], [1], [0, 0, 1, 1], [], []>} : vector<64x128xbf16>, vector<128x128xbf16>, vector<64x128xf32> -> vector<64x128xf32>
    %54 = arith.addf %48, %53 : vector<64x128xf32>
    %c2_59 = arith.constant 2 : index
    %c0_60 = arith.constant 0 : index
    %c0_61 = arith.constant 0 : index
    %55 = vector.load %arg9[%c2_59, %c0_60, %c0_61] : memref<10x10x128xbf16, #tpu.memory_space<vmem>>, vector<8x8x128xbf16>
    %56 = vector.shape_cast %55 : vector<8x8x128xbf16> to vector<64x128xbf16>
    %c6 = arith.constant 6 : index
    %c0_62 = arith.constant 0 : index
    %c0_63 = arith.constant 0 : index
    %57 = vector.load %arg4[%c6, %c0_62, %c0_63] : memref<9x128x128xbf16, #tpu.memory_space<vmem>>, vector<1x128x128xbf16>
    %58 = vector.shape_cast %57 : vector<1x128x128xbf16> to vector<128x128xbf16>
    %cst_64 = arith.constant dense<0.000000e+00> : vector<64x128xf32>
    %59 = tpu.matmul %56, %58, %cst_64 {dimension_numbers = #tpu.dot_dimension_numbers<[1], [0], [0], [1], [0, 0, 1, 1], [], []>} : vector<64x128xbf16>, vector<128x128xbf16>, vector<64x128xf32> -> vector<64x128xf32>
    %60 = arith.addf %54, %59 : vector<64x128xf32>
    %c2_65 = arith.constant 2 : index
    %c1_66 = arith.constant 1 : index
    %c0_67 = arith.constant 0 : index
    %61 = vector.load %arg9[%c2_65, %c1_66, %c0_67] : memref<10x10x128xbf16, #tpu.memory_space<vmem>>, vector<8x8x128xbf16>
    %62 = vector.shape_cast %61 : vector<8x8x128xbf16> to vector<64x128xbf16>
    %c7 = arith.constant 7 : index
    %c0_68 = arith.constant 0 : index
    %c0_69 = arith.constant 0 : index
    %63 = vector.load %arg4[%c7, %c0_68, %c0_69] : memref<9x128x128xbf16, #tpu.memory_space<vmem>>, vector<1x128x128xbf16>
    %64 = vector.shape_cast %63 : vector<1x128x128xbf16> to vector<128x128xbf16>
    %cst_70 = arith.constant dense<0.000000e+00> : vector<64x128xf32>
    %65 = tpu.matmul %62, %64, %cst_70 {dimension_numbers = #tpu.dot_dimension_numbers<[1], [0], [0], [1], [0, 0, 1, 1], [], []>} : vector<64x128xbf16>, vector<128x128xbf16>, vector<64x128xf32> -> vector<64x128xf32>
    %66 = arith.addf %60, %65 : vector<64x128xf32>
    %c2_71 = arith.constant 2 : index
    %c2_72 = arith.constant 2 : index
    %c0_73 = arith.constant 0 : index
    %67 = vector.load %arg9[%c2_71, %c2_72, %c0_73] : memref<10x10x128xbf16, #tpu.memory_space<vmem>>, vector<8x8x128xbf16>
    %68 = vector.shape_cast %67 : vector<8x8x128xbf16> to vector<64x128xbf16>
    %c8 = arith.constant 8 : index
    %c0_74 = arith.constant 0 : index
    %c0_75 = arith.constant 0 : index
    %69 = vector.load %arg4[%c8, %c0_74, %c0_75] : memref<9x128x128xbf16, #tpu.memory_space<vmem>>, vector<1x128x128xbf16>
    %70 = vector.shape_cast %69 : vector<1x128x128xbf16> to vector<128x128xbf16>
    %cst_76 = arith.constant dense<0.000000e+00> : vector<64x128xf32>
    %71 = tpu.matmul %68, %70, %cst_76 {dimension_numbers = #tpu.dot_dimension_numbers<[1], [0], [0], [1], [0, 0, 1, 1], [], []>} : vector<64x128xbf16>, vector<128x128xbf16>, vector<64x128xf32> -> vector<64x128xf32>
    %72 = arith.addf %66, %71 : vector<64x128xf32>
    %c0_77 = arith.constant 0 : index
    %c0_78 = arith.constant 0 : index
    %73 = vector.load %arg5[%c0_77, %c0_78] : memref<1x128xf32, #tpu.memory_space<vmem>>, vector<1x128xf32>
    %74 = vector.broadcast %73 : vector<1x128xf32> to vector<64x128xf32>
    %75 = arith.addf %72, %74 : vector<64x128xf32>
    %cst_79 = arith.constant dense<0.000000e+00> : vector<128xf32>
    %76 = vector.multi_reduction <add>, %75, %cst_79 [0] : vector<64x128xf32> to vector<128xf32>
    %77 = vector.shape_cast %76 : vector<128xf32> to vector<1x128xf32>
    %c0_80 = arith.constant 0 : index
    %c0_81 = arith.constant 0 : index
    %c0_82 = arith.constant 0 : index
    %78 = vector.load %arg7[%c0_80, %c0_81, %c0_82] : memref<1x1x128xf32, #tpu.memory_space<vmem>>, vector<1x1x128xf32>
    %79 = vector.shape_cast %78 : vector<1x1x128xf32> to vector<1x128xf32>
    %80 = vector.shape_cast %77 : vector<1x128xf32> to vector<1x1x128xf32>
    tpu.vector_store %arg7[%c0_80, %c0_81, %c0_82], %80 {strides = array<i32>} : memref<1x1x128xf32, #tpu.memory_space<vmem>>, vector<1x1x128xf32>,
    %81 = arith.mulf %75, %75 : vector<64x128xf32>
    %cst_83 = arith.constant dense<0.000000e+00> : vector<128xf32>
    %82 = vector.multi_reduction <add>, %81, %cst_83 [0] : vector<64x128xf32> to vector<128xf32>
    %83 = vector.shape_cast %82 : vector<128xf32> to vector<1x128xf32>
    %c0_84 = arith.constant 0 : index
    %c0_85 = arith.constant 0 : index
    %c0_86 = arith.constant 0 : index
    %84 = vector.load %arg8[%c0_84, %c0_85, %c0_86] : memref<1x1x128xf32, #tpu.memory_space<vmem>>, vector<1x1x128xf32>
    %85 = vector.shape_cast %84 : vector<1x1x128xf32> to vector<1x128xf32>
    %86 = vector.shape_cast %83 : vector<1x128xf32> to vector<1x1x128xf32>
    tpu.vector_store %arg8[%c0_84, %c0_85, %c0_86], %86 {strides = array<i32>} : memref<1x1x128xf32, #tpu.memory_space<vmem>>, vector<1x1x128xf32>,
    %87 = arith.truncf %75 : vector<64x128xf32> to vector<64x128xbf16>
    %c0_87 = arith.constant 0 : index
    %c0_88 = arith.constant 0 : index
    %c0_89 = arith.constant 0 : index
    %88 = vector.load %arg6[%c0_87, %c0_88, %c0_89] : memref<1x64x128xbf16, #tpu.memory_space<vmem>>, vector<1x64x128xbf16>
    %89 = vector.shape_cast %88 : vector<1x64x128xbf16> to vector<64x128xbf16>
    %90 = vector.shape_cast %87 : vector<64x128xbf16> to vector<1x64x128xbf16>
    tpu.vector_store %arg6[%c0_87, %c0_88, %c0_89], %90 {strides = array<i32>} : memref<1x64x128xbf16, #tpu.memory_space<vmem>>, vector<1x64x128xbf16>,
    return
  }
  func.func @transform_0(%arg0: i32) -> (i32, i32, i32) {
    %c0_i32 = arith.constant 0 : i32
    %c0_i32_0 = arith.constant 0 : i32
    %c0_i32_1 = arith.constant 0 : i32
    return %arg0, %c0_i32, %c0_i32_0 : i32, i32, i32
  }
  func.func @transform_1(%arg0: i32) -> (i32, i32) {
    %c0_i32 = arith.constant 0 : i32
    %c0_i32_0 = arith.constant 0 : i32
    %c0_i32_1 = arith.constant 0 : i32
    return %c0_i32, %c0_i32_0 : i32, i32
  }
  func.func @transform_2(%arg0: i32) -> (i32, i32) {
    %c0_i32 = arith.constant 0 : i32
    %c0_i32_0 = arith.constant 0 : i32
    %c0_i32_1 = arith.constant 0 : i32
    return %c0_i32, %c0_i32_0 : i32, i32
  }
  func.func @transform_3(%arg0: i32) -> (i32, i32, i32) {
    %c0_i32 = arith.constant 0 : i32
    %c0_i32_0 = arith.constant 0 : i32
    %c0_i32_1 = arith.constant 0 : i32
    %c0_i32_2 = arith.constant 0 : i32
    return %c0_i32, %c0_i32_0, %c0_i32_1 : i32, i32, i32
  }
  func.func @transform_4(%arg0: i32) -> (i32, i32) {
    %c0_i32 = arith.constant 0 : i32
    %c0_i32_0 = arith.constant 0 : i32
    %c0_i32_1 = arith.constant 0 : i32
    return %c0_i32, %c0_i32_0 : i32, i32
  }
  func.func @transform_5(%arg0: i32) -> (i32, i32, i32) {
    %c0_i32 = arith.constant 0 : i32
    %c0_i32_0 = arith.constant 0 : i32
    %c0_i32_1 = arith.constant 0 : i32
    return %arg0, %c0_i32, %c0_i32_0 : i32, i32, i32
  }
  func.func @transform_6(%arg0: i32) -> (i32, i32, i32) {
    %c0_i32 = arith.constant 0 : i32
    %c0_i32_0 = arith.constant 0 : i32
    %c0_i32_1 = arith.constant 0 : i32
    return %arg0, %c0_i32, %c0_i32_0 : i32, i32, i32
  }
  func.func @transform_7(%arg0: i32) -> (i32, i32, i32) {
    %c0_i32 = arith.constant 0 : i32
    %c0_i32_0 = arith.constant 0 : i32
    %c0_i32_1 = arith.constant 0 : i32
    return %arg0, %c0_i32, %c0_i32_0 : i32, i32, i32
  }
}

</mosaic_0001>

<llo_original>
// kernel: convblock_forward.5
$region0: #{convblock_forward.5}
  #allocation0 [shape = 'u32[]', space=smem, size = 0x4, offset = 0x4, fixed_abs, tag = 'smem constant byte address 0x4 - core index']
  #allocation1 [shape = 'u32[144,128]{1,0:T(1,128)}', space=vmem, size = 0x12000, scoped, tag = 'internal scratch']
  %s0 = inlined_call_operand.vmem [shape: bf16[2,64,128], index: 0, kind: input, shape index: {}]
  %s1 = inlined_call_operand.vmem [shape: bf16[2,64,128], index: 1, kind: input, shape index: {}]
  %s2 = inlined_call_operand.vmem [shape: f32[1,128], index: 2, kind: input, shape index: {}]
  %s3 = inlined_call_operand.vmem [shape: f32[1,128], index: 3, kind: input, shape index: {}]
  %s4 = inlined_call_operand.vmem [shape: f32[1,128], index: 4, kind: input, shape index: {}]
  %s5 = inlined_call_operand.vmem [shape: f32[1,128], index: 5, kind: input, shape index: {}]
  %s6 = inlined_call_operand.vmem [shape: f32[2,64,8], index: 6, kind: output, shape index: {}]
  %s7 = sld [smem:[#allocation0]]
  $region57: #{convblock_forward.5} parent=0
    _
  %s9 = ssub.s32 1, %s7
  %s10 = scalar_select 0, %s9, %s7
  loop: start=0, step=1, limit=4
  $region2: #{convblock_forward.5} parent=0 // loop_pre_header
    _
  $region3: #{convblock_forward.5} parent=0 // loop_header
    %s12 = sphi 0, %s16
    %p13 = scmp.ge.s32.totalorder %s12, 4
    %s22 = sphi 0, %s24
    %s25 = sphi 0, %s22
    %s26 = sphi 0, %s25
    %s42 = sphi 0, %s26
    %s48 = sphi 0, %s50
    %s51 = sphi 0, %s48
    %s52 = sphi 0, %s51
    %s68 = sphi 0, %s52
    %s72 = sphi 0, %s72
    %s74 = sphi 0, %s72
    %s75 = sphi 0, %s74
    %s89 = sphi 0, %s75
    %s93 = sphi 0, %s93
    %s95 = sphi 0, %s93
    %s96 = sphi 0, %s95
    %s110 = sphi 0, %s96
    %s114 = sphi 0, %s114
    %s116 = sphi 0, %s114
    %s117 = sphi 0, %s116
    %s131 = sphi 0, %s117
    %s135 = sphi 0, %s135
    %s137 = sphi 0, %s135
    %s138 = sphi 0, %s137
    %s152 = sphi 0, %s138
    %s158 = sphi 0, %s160
    %s161 = sphi 0, %s158
    %s162 = sphi 0, %s161
    %s178 = sphi 0, %s162
  $region4: #{convblock_forward.5} parent=0 // loop_header_branch
    %15 = sbr.rel (%p13) target = $region8
  $region5: #{convblock_forward.5} parent=0 // loop_body
    %s17 = ssub.s32 %s12, 1
    %s18 = ssub.s32 %s12, 2
    %s19 = sadd.s32 %s12, 1
    %s20 = ssub.s32 %s12, %s19
    %p21 = scmp.eq.s32.totalorder %s20, 0
    %s23 = sadd.s32 %s22, 1
    %s24 = scalar_select %p21, %s22, %s23
    %p27 = pneg %p21
    %p28 = scmp.eq.s32.totalorder %s12, 1
    %p29 = por %p27, %p28
    %p30 = scmp.ne.s32.totalorder %s22, %s25
    %p31 = scmp.eq.s32.totalorder %s12, 0
    %p32 = por %p30, %p31
    %p33 = scmp.ne.s32.totalorder %s22, %s25
    %p34 = scmp.eq.s32.totalorder %s17, 1
    %p35 = por %p33, %p34
    %p36 = scmp.ne.s32.totalorder %s25, %s26
    %p37 = scmp.eq.s32.totalorder %s17, 0
    %p38 = por %p36, %p37
    %p39 = scmp.ne.s32.totalorder %s25, %s26
    %p40 = scmp.eq.s32.totalorder %s18, 1
    %p41 = por %p39, %p40
    %p43 = scmp.ne.s32.totalorder %s26, %s42
    %p44 = scmp.eq.s32.totalorder %s18, 0
    %p45 = por %p43, %p44
    %s46 = ssub.s32 %s12, %s19
    %p47 = scmp.eq.s32.totalorder %s46, 0
    %s49 = sadd.s32 %s48, 1
    %s50 = scalar_select %p47, %s48, %s49
    %p53 = pneg %p47
    %p54 = scmp.eq.s32.totalorder %s12, 1
    %p55 = por %p53, %p54
    %p56 = scmp.ne.s32.totalorder %s48, %s51
    %p57 = scmp.eq.s32.totalorder %s12, 0
    %p58 = por %p56, %p57
    %p59 = scmp.ne.s32.totalorder %s48, %s51
    %p60 = scmp.eq.s32.totalorder %s17, 1
    %p61 = por %p59, %p60
    %p62 = scmp.ne.s32.totalorder %s51, %s52
    %p63 = scmp.eq.s32.totalorder %s17, 0
    %p64 = por %p62, %p63
    %p65 = scmp.ne.s32.totalorder %s51, %s52
    %p66 = scmp.eq.s32.totalorder %s18, 1
    %p67 = por %p65, %p66
    %p69 = scmp.ne.s32.totalorder %s52, %s68
    %p70 = scmp.eq.s32.totalorder %s18, 0
    %p71 = por %p69, %p70
    %s73 = sadd.s32 %s72, 1
    %p76 = scmp.eq.s32.totalorder %s12, 1
    %p77 = scmp.ne.s32.totalorder %s72, %s74
    %p78 = scmp.eq.s32.totalorder %s12, 0
    %p79 = por %p77, %p78
    %p80 = scmp.ne.s32.totalorder %s72, %s74
    %p81 = scmp.eq.s32.totalorder %s17, 1
    %p82 = por %p80, %p81
    %p83 = scmp.ne.s32.totalorder %s74, %s75
    %p84 = scmp.eq.s32.totalorder %s17, 0
    %p85 = por %p83, %p84
    %p86 = scmp.ne.s32.totalorder %s74, %s75
    %p87 = scmp.eq.s32.totalorder %s18, 1
    %p88 = por %p86, %p87
    %p90 = scmp.ne.s32.totalorder %s75, %s89
    %p91 = scmp.eq.s32.totalorder %s18, 0
    %p92 = por %p90, %p91
    %s94 = sadd.s32 %s93, 1
    %p97 = scmp.eq.s32.totalorder %s12, 1
    %p98 = scmp.ne.s32.totalorder %s93, %s95
    %p99 = scmp.eq.s32.totalorder %s12, 0
    %p100 = por %p98, %p99
    %p101 = scmp.ne.s32.totalorder %s93, %s95
    %p102 = scmp.eq.s32.totalorder %s17, 1
    %p103 = por %p101, %p102
    %p104 = scmp.ne.s32.totalorder %s95, %s96
    %p105 = scmp.eq.s32.totalorder %s17, 0
    %p106 = por %p104, %p105
    %p107 = scmp.ne.s32.totalorder %s95, %s96
    %p108 = scmp.eq.s32.totalorder %s18, 1
    %p109 = por %p107, %p108
    %p111 = scmp.ne.s32.totalorder %s96, %s110
    %p112 = scmp.eq.s32.totalorder %s18, 0
    %p113 = por %p111, %p112
    %s115 = sadd.s32 %s114, 1
    %p118 = scmp.eq.s32.totalorder %s12, 1
    %p119 = scmp.ne.s32.totalorder %s114, %s116
    %p120 = scmp.eq.s32.totalorder %s12, 0
    %p121 = por %p119, %p120
    %p122 = scmp.ne.s32.totalorder %s114, %s116
    %p123 = scmp.eq.s32.totalorder %s17, 1
    %p124 = por %p122, %p123
    %p125 = scmp.ne.s32.totalorder %s116, %s117
    %p126 = scmp.eq.s32.totalorder %s17, 0
    %p127 = por %p125, %p126
    %p128 = scmp.ne.s32.totalorder %s116, %s117
    %p129 = scmp.eq.s32.totalorder %s18, 1
    %p130 = por %p128, %p129
    %p132 = scmp.ne.s32.totalorder %s117, %s131
    %p133 = scmp.eq.s32.totalorder %s18, 0
    %p134 = por %p132, %p133
    %s136 = sadd.s32 %s135, 1
    %p139 = scmp.eq.s32.totalorder %s12, 1
    %p140 = scmp.ne.s32.totalorder %s135, %s137
    %p141 = scmp.eq.s32.totalorder %s12, 0
    %p142 = por %p140, %p141
    %p143 = scmp.ne.s32.totalorder %s135, %s137
    %p144 = scmp.eq.s32.totalorder %s17, 1
    %p145 = por %p143, %p144
    %p146 = scmp.ne.s32.totalorder %s137, %s138
    %p147 = scmp.eq.s32.totalorder %s17, 0
    %p148 = por %p146, %p147
    %p149 = scmp.ne.s32.totalorder %s137, %s138
    %p150 = scmp.eq.s32.totalorder %s18, 1
    %p151 = por %p149, %p150
    %p153 = scmp.ne.s32.totalorder %s138, %s152
    %p154 = scmp.eq.s32.totalorder %s18, 0
    %p155 = por %p153, %p154
    %s156 = ssub.s32 %s12, %s19
    %p157 = scmp.eq.s32.totalorder %s156, 0
    %s159 = sadd.s32 %s158, 1
    %s160 = scalar_select %p157, %s158, %s159
    %p163 = pneg %p157
    %p164 = scmp.eq.s32.totalorder %s12, 1
    %p165 = por %p163, %p164
    %p166 = scmp.ne.s32.totalorder %s158, %s161
    %p167 = scmp.eq.s32.totalorder %s12, 0
    %p168 = por %p166, %p167
    %p169 = scmp.ne.s32.totalorder %s158, %s161
    %p170 = scmp.eq.s32.totalorder %s17, 1
    %p171 = por %p169, %p170
    %p172 = scmp.ne.s32.totalorder %s161, %s162
    %p173 = scmp.eq.s32.totalorder %s17, 0
    %p174 = por %p172, %p173
    %p175 = scmp.ne.s32.totalorder %s161, %s162
    %p176 = scmp.eq.s32.totalorder %s18, 1
    %p177 = por %p175, %p176
    %p179 = scmp.ne.s32.totalorder %s162, %s178
    %p180 = scmp.eq.s32.totalorder %s18, 0
    %p181 = por %p179, %p180
    %p182 = scmp.le.s32.totalorder 1, %s12
    %p183 = scmp.lt.s32.totalorder %s12, 3
    %p184 = pnand %p182, %p183
    %p185 = pneg %p184
    // Predicated region
    $region9: #{convblock_forward.5} parent=5 // pred_check
      _
    $region10: #{convblock_forward.5} parent=5 // pred_check_branch
      %187 = sbr.rel (%p184) target = $region12
    $region11: #{convblock_forward.5} parent=5 // pred_region
      %s188 = ssub.s32 %s12, 1
      // Predicated region
      $region13: #{convblock_forward.5} parent=11 // pred_check
        %p189 = pneg %p85
      $region14: #{convblock_forward.5} parent=11 // pred_check_branch
        %191 = sbr.rel (%p189) target = $region16
      $region15: #{convblock_forward.5} parent=11 // pred_region
        _
      $region16: #{convblock_forward.5} parent=11 // pred_fallthru
        _
      // Predicated region
      $region17: #{convblock_forward.5} parent=11 // pred_check
        %p192 = pneg %p106
      $region18: #{convblock_forward.5} parent=11 // pred_check_branch
        %194 = sbr.rel (%p192) target = $region20
      $region19: #{convblock_forward.5} parent=11 // pred_region
        _
      $region20: #{convblock_forward.5} parent=11 // pred_fallthru
        _
      // Predicated region
      $region21: #{convblock_forward.5} parent=11 // pred_check
        %p195 = pneg %p127
      $region22: #{convblock_forward.5} parent=11 // pred_check_branch
        %197 = sbr.rel (%p195) target = $region24
      $region23: #{convblock_forward.5} parent=11 // pred_region
        _
      $region24: #{convblock_forward.5} parent=11 // pred_fallthru
        _
      // Predicated region
      $region25: #{convblock_forward.5} parent=11 // pred_check
        %p198 = pneg %p148
      $region26: #{convblock_forward.5} parent=11 // pred_check_branch
        %200 = sbr.rel (%p198) target = $region28
      $region27: #{convblock_forward.5} parent=11 // pred_region
        _
      $region28: #{convblock_forward.5} parent=11 // pred_fallthru
        _
    $region12: #{convblock_forward.5} parent=5 // pred_fallthru
      _
    %p201 = scmp.lt.s32.totalorder %s12, 2
    // Predicated region
    $region29: #{convblock_forward.5} parent=5 // pred_check
      %p202 = pneg %p201
    $region30: #{convblock_forward.5} parent=5 // pred_check_branch
      %204 = sbr.rel (%p202) target = $region32
    $region31: #{convblock_forward.5} parent=5 // pred_region
      // Predicated region
      $region33: #{convblock_forward.5} parent=31 // pred_check
        %p205 = pneg %p32
      $region34: #{convblock_forward.5} parent=31 // pred_check_branch
        %207 = sbr.rel (%p205) target = $region36
      $region35: #{convblock_forward.5} parent=31 // pred_region
        %p208 = scmp.lt.s32.totalorder %s12, 1
        %s209 = scalar_select %p208, %s12, 1
        %s210 = smul.addr %s209, 8
        %s211 = smul.addr %s210, 4
        %s212 = scalar_lea.vmem %s0, %s211
      $region36: #{convblock_forward.5} parent=31 // pred_fallthru
        _
      // Predicated region
      $region37: #{convblock_forward.5} parent=31 // pred_check
        %p213 = pneg %p58
      $region38: #{convblock_forward.5} parent=31 // pred_check_branch
        %215 = sbr.rel (%p213) target = $region40
      $region39: #{convblock_forward.5} parent=31 // pred_region
        %p216 = scmp.lt.s32.totalorder %s12, 1
        %s217 = scalar_select %p216, %s12, 1
        %s218 = smul.addr %s217, 8
        %s219 = smul.addr %s218, 4
        %s220 = scalar_lea.vmem %s1, %s219
      $region40: #{convblock_forward.5} parent=31 // pred_fallthru
        _
    $region32: #{convblock_forward.5} parent=5 // pred_fallthru
      _
    %p221 = scmp.le.s32.totalorder 1, %s12
    %p222 = scmp.lt.s32.totalorder %s12, 3
    %p223 = pnand %p221, %p222
    %p224 = pneg %p223
    // Predicated region
    $region41: #{convblock_forward.5} parent=5 // pred_check
      _
    $region42: #{convblock_forward.5} parent=5 // pred_check_branch
      %226 = sbr.rel (%p223) target = $region44
    $region43: #{convblock_forward.5} parent=5 // pred_region
      %s227 = ssub.s32 %s12, 1
      %p228 = scmp.lt.s32.totalorder %s17, 1
      %s229 = scalar_select %p228, %s17, 1
      %s230 = smul.addr %s229, 8
      %s231 = smul.addr %s230, 4
      %s232 = scalar_lea.vmem %s0, %s231
      %p233 = pneg %p38
      %p234 = pneg %p35
      %p235 = scmp.lt.s32.totalorder %s17, 1
      %s236 = scalar_select %p235, %s17, 1
      %s237 = smul.addr %s236, 8
      %s238 = smul.addr %s237, 4
      %s239 = scalar_lea.vmem %s1, %s238
      %p240 = pneg %p64
      %p241 = pneg %p61
      %p242 = pneg %p85
      %p243 = pneg %p82
      %p244 = pneg %p106
      %p245 = pneg %p103
      %p246 = pneg %p127
      %p247 = pneg %p124
      %p248 = pneg %p148
      %p249 = pneg %p145
      %p250 = pneg %p174
      %p251 = pneg %p171
      %p252 = scmp.lt.s32.totalorder %s17, 1
      %s253 = scalar_select %p252, %s17, 1
      %s254 = smul.addr %s253, 8
      %s255 = smul.addr %s254, 8
      %s256 = scalar_lea.vmem %s6, %s255
      %p257 = scmp.lt.s32.totalorder %s17, 1
      %s258 = scalar_select %p257, %s17, 1
      %s259 = smul.addr %s258, 8
      %s260 = smul.addr %s259, 4
      %s261 = scalar_lea.vmem %s0, %s260
      %p262 = scmp.lt.s32.totalorder %s17, 1
      %s263 = scalar_select %p262, %s17, 1
      %s264 = smul.addr %s263, 8
      %s265 = smul.addr %s264, 4
      %s266 = scalar_lea.vmem %s1, %s265
      %p267 = scmp.lt.s32.totalorder %s17, 1
      %s268 = scalar_select %p267, %s17, 1
      %s269 = smul.addr %s268, 8
      %s270 = smul.addr %s269, 8
      %s271 = scalar_lea.vmem %s6, %s270
      %v272 = vld [vmem:[%s261] sm:$0xf]
      %v273 = vld [vmem:[%s261 + $0x4] sm:$0xf]
      %v274 = vld [vmem:[%s261 + $0x8] sm:$0xf]
      %v275 = vld [vmem:[%s261 + $0xc] sm:$0xf]
      %v276 = vld [vmem:[%s261 + $0x10] sm:$0xf]
      %v277 = vld [vmem:[%s261 + $0x14] sm:$0xf]
      %v278 = vld [vmem:[%s261 + $0x18] sm:$0xf]
      %v279 = vld [vmem:[%s261 + $0x1c] sm:$0xf]
      %v280 = vunpack.c.l.bf16 %v272
      %v281 = vunpack.c.l.bf16 %v273
      %v282 = vunpack.c.l.bf16 %v274
      %v283 = vunpack.c.l.bf16 %v275
      %v284 = vunpack.c.l.bf16 %v276
      %v285 = vunpack.c.l.bf16 %v277
      %v286 = vunpack.c.l.bf16 %v278
      %v287 = vunpack.c.l.bf16 %v279
      %v288 = vld [vmem:[%s2] sm:$0x1]
      %v290 = vlaneseq
      %v291 = vshrl.u32 %v290, 7
      %v292 = vsub.s32 0, %v291
      %v293 = vrot.slane %v288, %v292
      %v295 = vmul.f32 %v280, %v293
      %v296 = vmul.f32 %v281, %v293
      %v297 = vmul.f32 %v282, %v293
      %v298 = vmul.f32 %v283, %v293
      %v299 = vmul.f32 %v284, %v293
      %v300 = vmul.f32 %v285, %v293
      %v301 = vmul.f32 %v286, %v293
      %v302 = vmul.f32 %v287, %v293
      %v303 = vld [vmem:[%s3] sm:$0x1]
      %v305 = vlaneseq
      %v306 = vshrl.u32 %v305, 7
      %v307 = vsub.s32 0, %v306
      %v308 = vrot.slane %v303, %v307
      %v310 = vadd.f32 %v295, %v308
      %v311 = vadd.f32 %v296, %v308
      %v312 = vadd.f32 %v297, %v308
      %v313 = vadd.f32 %v298, %v308
      %v314 = vadd.f32 %v299, %v308
      %v315 = vadd.f32 %v300, %v308
      %v316 = vadd.f32 %v301, %v308
      %v317 = vadd.f32 %v302, %v308
      %v318 = vmax.f32 %v310, 0.0
      %v319 = vmax.f32 %v311, 0.0
      %v320 = vmax.f32 %v312, 0.0
      %v321 = vmax.f32 %v313, 0.0
      %v322 = vmax.f32 %v314, 0.0
      %v323 = vmax.f32 %v315, 0.0
      %v324 = vmax.f32 %v316, 0.0
      %v325 = vmax.f32 %v317, 0.0
      %v326 = vld [vmem:[%s266] sm:$0xf]
      %v327 = vld [vmem:[%s266 + $0x4] sm:$0xf]
      %v328 = vld [vmem:[%s266 + $0x8] sm:$0xf]
      %v329 = vld [vmem:[%s266 + $0xc] sm:$0xf]
      %v330 = vld [vmem:[%s266 + $0x10] sm:$0xf]
      %v331 = vld [vmem:[%s266 + $0x14] sm:$0xf]
      %v332 = vld [vmem:[%s266 + $0x18] sm:$0xf]
      %v333 = vld [vmem:[%s266 + $0x1c] sm:$0xf]
      %v334 = vunpack.c.l.bf16 %v326
      %v335 = vunpack.c.l.bf16 %v327
      %v336 = vunpack.c.l.bf16 %v328
      %v337 = vunpack.c.l.bf16 %v329
      %v338 = vunpack.c.l.bf16 %v330
      %v339 = vunpack.c.l.bf16 %v331
      %v340 = vunpack.c.l.bf16 %v332
      %v341 = vunpack.c.l.bf16 %v333
      %v342 = vld [vmem:[%s4] sm:$0x1]
      %v344 = vlaneseq
      %v345 = vshrl.u32 %v344, 7
      %v346 = vsub.s32 0, %v345
      %v347 = vrot.slane %v342, %v346
      %v349 = vmul.f32 %v334, %v347
      %v350 = vmul.f32 %v335, %v347
      %v351 = vmul.f32 %v336, %v347
      %v352 = vmul.f32 %v337, %v347
      %v353 = vmul.f32 %v338, %v347
      %v354 = vmul.f32 %v339, %v347
      %v355 = vmul.f32 %v340, %v347
      %v356 = vmul.f32 %v341, %v347
      %v357 = vld [vmem:[%s5] sm:$0x1]
      %v359 = vlaneseq
      %v360 = vshrl.u32 %v359, 7
      %v361 = vsub.s32 0, %v360
      %v362 = vrot.slane %v357, %v361
      %v364 = vadd.f32 %v349, %v362
      %v365 = vadd.f32 %v350, %v362
      %v366 = vadd.f32 %v351, %v362
      %v367 = vadd.f32 %v352, %v362
      %v368 = vadd.f32 %v353, %v362
      %v369 = vadd.f32 %v354, %v362
      %v370 = vadd.f32 %v355, %v362
      %v371 = vadd.f32 %v356, %v362
      %v372 = vmax.f32 %v364, 0.0
      %v373 = vmax.f32 %v365, 0.0
      %v374 = vmax.f32 %v366, 0.0
      %v375 = vmax.f32 %v367, 0.0
      %v376 = vmax.f32 %v368, 0.0
      %v377 = vmax.f32 %v369, 0.0
      %v378 = vmax.f32 %v370, 0.0
      %v379 = vmax.f32 %v371, 0.0
      %v380 = vadd.f32 %v318, %v372
      %v381 = vadd.f32 %v319, %v373
      %v382 = vadd.f32 %v320, %v374
      %v383 = vadd.f32 %v321, %v375
      %v384 = vadd.f32 %v322, %v376
      %v385 = vadd.f32 %v323, %v377
      %v386 = vadd.f32 %v324, %v378
      %v387 = vadd.f32 %v325, %v379
      %vm388 = vcmask 64512
      %389 = vst.msk [vmem:[%s271] sm:$0xff] %vm388, %v380
      %390 = vst.msk [vmem:[%s271 + $0x8] sm:$0xff] %vm388, %v381
      %391 = vst.msk [vmem:[%s271 + $0x10] sm:$0xff] %vm388, %v382
      %392 = vst.msk [vmem:[%s271 + $0x18] sm:$0xff] %vm388, %v383
      %393 = vst.msk [vmem:[%s271 + $0x20] sm:$0xff] %vm388, %v384
      %394 = vst.msk [vmem:[%s271 + $0x28] sm:$0xff] %vm388, %v385
      %395 = vst.msk [vmem:[%s271 + $0x30] sm:$0xff] %vm388, %v386
      %396 = vst.msk [vmem:[%s271 + $0x38] sm:$0xff] %vm388, %v387
      %p397 = scmp.lt.s32.totalorder %s17, 1
      %s398 = scalar_select %p397, %s17, 1
      %s399 = smul.addr %s398, 8
      %s400 = smul.addr %s399, 8
      %s401 = scalar_lea.vmem %s6, %s400
      // Predicated region
      $region45: #{convblock_forward.5} parent=43 // pred_check
        %p402 = pneg %p171
      $region46: #{convblock_forward.5} parent=43 // pred_check_branch
        %404 = sbr.rel (%p402) target = $region48
      $region47: #{convblock_forward.5} parent=43 // pred_region
        _
      $region48: #{convblock_forward.5} parent=43 // pred_fallthru
        _
    $region44: #{convblock_forward.5} parent=5 // pred_fallthru
      _
    %p405 = scmp.le.s32.totalorder 2, %s12
    // Predicated region
    $region49: #{convblock_forward.5} parent=5 // pred_check
      %p406 = pneg %p405
    $region50: #{convblock_forward.5} parent=5 // pred_check_branch
      %408 = sbr.rel (%p406) target = $region52
    $region51: #{convblock_forward.5} parent=5 // pred_region
      %s409 = ssub.s32 %s12, 2
      // Predicated region
      $region53: #{convblock_forward.5} parent=51 // pred_check
        %p410 = pneg %p177
      $region54: #{convblock_forward.5} parent=51 // pred_check_branch
        %412 = sbr.rel (%p410) target = $region56
      $region55: #{convblock_forward.5} parent=51 // pred_region
        %p413 = scmp.lt.s32.totalorder %s18, 1
        %s414 = scalar_select %p413, %s18, 1
        %s415 = smul.addr %s414, 8
        %s416 = smul.addr %s415, 8
        %s417 = scalar_lea.vmem %s6, %s416
      $region56: #{convblock_forward.5} parent=51 // pred_fallthru
        _
    $region52: #{convblock_forward.5} parent=5 // pred_fallthru
      _
  $region6: #{convblock_forward.5} parent=0 // loop_footer
    %s16 = sadd.s32 1, %s12
  $region7: #{convblock_forward.5} parent=0 // loop_footer_branch
    %11 = sbr.rel target = $region3
  $region8: #{convblock_forward.5} parent=0 // loop_exit
    _

// kernel: convblock_forward.3
$region0: #{convblock_forward.3}
  #allocation0 [shape = 'u32[]', space=smem, size = 0x4, offset = 0x4, fixed_abs, tag = 'smem constant byte address 0x4 - core index']
  #allocation1 [shape = 'u32[144,128]{1,0:T(1,128)}', space=vmem, size = 0x12000, scoped, tag = 'internal scratch']
  %s0 = inlined_call_operand.vmem [shape: bf16[2,9,9,16], index: 0, kind: input, shape index: {}]
  %s1 = inlined_call_operand.vmem [shape: bf16[4,16,128], index: 1, kind: input, shape index: {}]
  %s2 = inlined_call_operand.vmem [shape: f32[1,128], index: 2, kind: input, shape index: {}]
  %s3 = inlined_call_operand.vmem [shape: bf16[2,64,128], index: 3, kind: output, shape index: {0}]
  %s4 = inlined_call_operand.vmem [shape: f32[2,1,128], index: 4, kind: output, shape index: {1}]
  %s5 = inlined_call_operand.vmem [shape: f32[2,1,128], index: 5, kind: output, shape index: {2}]
  %6 = xla_tuple %s3, %s4, %s5
  %s7 = sld [smem:[#allocation0]]
  $region61: #{convblock_forward.3} parent=0
    _
  %s9 = ssub.s32 1, %s7
  %s10 = scalar_select 0, %s9, %s7
  loop: start=0, step=1, limit=4
  $region2: #{convblock_forward.3} parent=0 // loop_pre_header
    _
  $region3: #{convblock_forward.3} parent=0 // loop_header
    %s12 = sphi 0, %s16
    %p13 = scmp.ge.s32.totalorder %s12, 4
    %s22 = sphi 0, %s24
    %s25 = sphi 0, %s22
    %s26 = sphi 0, %s25
    %s42 = sphi 0, %s26
    %s46 = sphi 0, %s46
    %s48 = sphi 0, %s46
    %s49 = sphi 0, %s48
    %s63 = sphi 0, %s49
    %s67 = sphi 0, %s67
    %s69 = sphi 0, %s67
    %s70 = sphi 0, %s69
    %s84 = sphi 0, %s70
    %s90 = sphi 0, %s92
    %s93 = sphi 0, %s90
    %s94 = sphi 0, %s93
    %s110 = sphi 0, %s94
    %s116 = sphi 0, %s118
    %s119 = sphi 0, %s116
    %s120 = sphi 0, %s119
    %s136 = sphi 0, %s120
    %s142 = sphi 0, %s144
    %s145 = sphi 0, %s142
    %s146 = sphi 0, %s145
    %s162 = sphi 0, %s146
  $region4: #{convblock_forward.3} parent=0 // loop_header_branch
    %15 = sbr.rel (%p13) target = $region8
  $region5: #{convblock_forward.3} parent=0 // loop_body
    %s17 = ssub.s32 %s12, 1
    %s18 = ssub.s32 %s12, 2
    %s19 = sadd.s32 %s12, 1
    %s20 = ssub.s32 %s12, %s19
    %p21 = scmp.eq.s32.totalorder %s20, 0
    %s23 = sadd.s32 %s22, 1
    %s24 = scalar_select %p21, %s22, %s23
    %p27 = pneg %p21
    %p28 = scmp.eq.s32.totalorder %s12, 1
    %p29 = por %p27, %p28
    %p30 = scmp.ne.s32.totalorder %s22, %s25
    %p31 = scmp.eq.s32.totalorder %s12, 0
    %p32 = por %p30, %p31
    %p33 = scmp.ne.s32.totalorder %s22, %s25
    %p34 = scmp.eq.s32.totalorder %s17, 1
    %p35 = por %p33, %p34
    %p36 = scmp.ne.s32.totalorder %s25, %s26
    %p37 = scmp.eq.s32.totalorder %s17, 0
    %p38 = por %p36, %p37
    %p39 = scmp.ne.s32.totalorder %s25, %s26
    %p40 = scmp.eq.s32.totalorder %s18, 1
    %p41 = por %p39, %p40
    %p43 = scmp.ne.s32.totalorder %s26, %s42
    %p44 = scmp.eq.s32.totalorder %s18, 0
    %p45 = por %p43, %p44
    %s47 = sadd.s32 %s46, 1
    %p50 = scmp.eq.s32.totalorder %s12, 1
    %p51 = scmp.ne.s32.totalorder %s46, %s48
    %p52 = scmp.eq.s32.totalorder %s12, 0
    %p53 = por %p51, %p52
    %p54 = scmp.ne.s32.totalorder %s46, %s48
    %p55 = scmp.eq.s32.totalorder %s17, 1
    %p56 = por %p54, %p55
    %p57 = scmp.ne.s32.totalorder %s48, %s49
    %p58 = scmp.eq.s32.totalorder %s17, 0
    %p59 = por %p57, %p58
    %p60 = scmp.ne.s32.totalorder %s48, %s49
    %p61 = scmp.eq.s32.totalorder %s18, 1
    %p62 = por %p60, %p61
    %p64 = scmp.ne.s32.totalorder %s49, %s63
    %p65 = scmp.eq.s32.totalorder %s18, 0
    %p66 = por %p64, %p65
    %s68 = sadd.s32 %s67, 1
    %p71 = scmp.eq.s32.totalorder %s12, 1
    %p72 = scmp.ne.s32.totalorder %s67, %s69
    %p73 = scmp.eq.s32.totalorder %s12, 0
    %p74 = por %p72, %p73
    %p75 = scmp.ne.s32.totalorder %s67, %s69
    %p76 = scmp.eq.s32.totalorder %s17, 1
    %p77 = por %p75, %p76
    %p78 = scmp.ne.s32.totalorder %s69, %s70
    %p79 = scmp.eq.s32.totalorder %s17, 0
    %p80 = por %p78, %p79
    %p81 = scmp.ne.s32.totalorder %s69, %s70
    %p82 = scmp.eq.s32.totalorder %s18, 1
    %p83 = por %p81, %p82
    %p85 = scmp.ne.s32.totalorder %s70, %s84
    %p86 = scmp.eq.s32.totalorder %s18, 0
    %p87 = por %p85, %p86
    %s88 = ssub.s32 %s12, %s19
    %p89 = scmp.eq.s32.totalorder %s88, 0
    %s91 = sadd.s32 %s90, 1
    %s92 = scalar_select %p89, %s90, %s91
    %p95 = pneg %p89
    %p96 = scmp.eq.s32.totalorder %s12, 1
    %p97 = por %p95, %p96
    %p98 = scmp.ne.s32.totalorder %s90, %s93
    %p99 = scmp.eq.s32.totalorder %s12, 0
    %p100 = por %p98, %p99
    %p101 = scmp.ne.s32.totalorder %s90, %s93
    %p102 = scmp.eq.s32.totalorder %s17, 1
    %p103 = por %p101, %p102
    %p104 = scmp.ne.s32.totalorder %s93, %s94
    %p105 = scmp.eq.s32.totalorder %s17, 0
    %p106 = por %p104, %p105
    %p107 = scmp.ne.s32.totalorder %s93, %s94
    %p108 = scmp.eq.s32.totalorder %s18, 1
    %p109 = por %p107, %p108
    %p111 = scmp.ne.s32.totalorder %s94, %s110
    %p112 = scmp.eq.s32.totalorder %s18, 0
    %p113 = por %p111, %p112
    %s114 = ssub.s32 %s12, %s19
    %p115 = scmp.eq.s32.totalorder %s114, 0
    %s117 = sadd.s32 %s116, 1
    %s118 = scalar_select %p115, %s116, %s117
    %p121 = pneg %p115
    %p122 = scmp.eq.s32.totalorder %s12, 1
    %p123 = por %p121, %p122
    %p124 = scmp.ne.s32.totalorder %s116, %s119
    %p125 = scmp.eq.s32.totalorder %s12, 0
    %p126 = por %p124, %p125
    %p127 = scmp.ne.s32.totalorder %s116, %s119
    %p128 = scmp.eq.s32.totalorder %s17, 1
    %p129 = por %p127, %p128
    %p130 = scmp.ne.s32.totalorder %s119, %s120
    %p131 = scmp.eq.s32.totalorder %s17, 0
    %p132 = por %p130, %p131
    %p133 = scmp.ne.s32.totalorder %s119, %s120
    %p134 = scmp.eq.s32.totalorder %s18, 1
    %p135 = por %p133, %p134
    %p137 = scmp.ne.s32.totalorder %s120, %s136
    %p138 = scmp.eq.s32.totalorder %s18, 0
    %p139 = por %p137, %p138
    %s140 = ssub.s32 %s12, %s19
    %p141 = scmp.eq.s32.totalorder %s140, 0
    %s143 = sadd.s32 %s142, 1
    %s144 = scalar_select %p141, %s142, %s143
    %p147 = pneg %p141
    %p148 = scmp.eq.s32.totalorder %s12, 1
    %p149 = por %p147, %p148
    %p150 = scmp.ne.s32.totalorder %s142, %s145
    %p151 = scmp.eq.s32.totalorder %s12, 0
    %p152 = por %p150, %p151
    %p153 = scmp.ne.s32.totalorder %s142, %s145
    %p154 = scmp.eq.s32.totalorder %s17, 1
    %p155 = por %p153, %p154
    %p156 = scmp.ne.s32.totalorder %s145, %s146
    %p157 = scmp.eq.s32.totalorder %s17, 0
    %p158 = por %p156, %p157
    %p159 = scmp.ne.s32.totalorder %s145, %s146
    %p160 = scmp.eq.s32.totalorder %s18, 1
    %p161 = por %p159, %p160
    %p163 = scmp.ne.s32.totalorder %s146, %s162
    %p164 = scmp.eq.s32.totalorder %s18, 0
    %p165 = por %p163, %p164
    %p166 = scmp.le.s32.totalorder 1, %s12
    %p167 = scmp.lt.s32.totalorder %s12, 3
    %p168 = pnand %p166, %p167
    %p169 = pneg %p168
    // Predicated region
    $region9: #{convblock_forward.3} parent=5 // pred_check
      _
    $region10: #{convblock_forward.3} parent=5 // pred_check_branch
      %171 = sbr.rel (%p168) target = $region12
    $region11: #{convblock_forward.3} parent=5 // pred_region
      %s172 = ssub.s32 %s12, 1
      // Predicated region
      $region13: #{convblock_forward.3} parent=11 // pred_check
        %p173 = pneg %p59
      $region14: #{convblock_forward.3} parent=11 // pred_check_branch
        %175 = sbr.rel (%p173) target = $region16
      $region15: #{convblock_forward.3} parent=11 // pred_region
        _
      $region16: #{convblock_forward.3} parent=11 // pred_fallthru
        _
      // Predicated region
      $region17: #{convblock_forward.3} parent=11 // pred_check
        %p176 = pneg %p80
      $region18: #{convblock_forward.3} parent=11 // pred_check_branch
        %178 = sbr.rel (%p176) target = $region20
      $region19: #{convblock_forward.3} parent=11 // pred_region
        _
      $region20: #{convblock_forward.3} parent=11 // pred_fallthru
        _
    $region12: #{convblock_forward.3} parent=5 // pred_fallthru
      _
    %p179 = scmp.lt.s32.totalorder %s12, 2
    // Predicated region
    $region21: #{convblock_forward.3} parent=5 // pred_check
      %p180 = pneg %p179
    $region22: #{convblock_forward.3} parent=5 // pred_check_branch
      %182 = sbr.rel (%p180) target = $region24
    $region23: #{convblock_forward.3} parent=5 // pred_region
      // Predicated region
      $region25: #{convblock_forward.3} parent=23 // pred_check
        %p183 = pneg %p32
      $region26: #{convblock_forward.3} parent=23 // pred_check_branch
        %185 = sbr.rel (%p183) target = $region28
      $region27: #{convblock_forward.3} parent=23 // pred_region
        %p186 = scmp.lt.s32.totalorder %s12, 1
        %s187 = scalar_select %p186, %s12, 1
        %s188 = smul.addr %s187, 18
        %s189 = smul.addr %s188, 4
        %s190 = scalar_lea.vmem %s0, %s189
      $region28: #{convblock_forward.3} parent=23 // pred_fallthru
        _
    $region24: #{convblock_forward.3} parent=5 // pred_fallthru
      _
    %p191 = scmp.le.s32.totalorder 1, %s12
    %p192 = scmp.lt.s32.totalorder %s12, 3
    %p193 = pnand %p191, %p192
    %p194 = pneg %p193
    // Predicated region
    $region29: #{convblock_forward.3} parent=5 // pred_check
      _
    $region30: #{convblock_forward.3} parent=5 // pred_check_branch
      %196 = sbr.rel (%p193) target = $region32
    $region31: #{convblock_forward.3} parent=5 // pred_region
      %s197 = ssub.s32 %s12, 1
      %p198 = scmp.lt.s32.totalorder %s17, 1
      %s199 = scalar_select %p198, %s17, 1
      %s200 = smul.addr %s199, 18
      %s201 = smul.addr %s200, 4
      %s202 = scalar_lea.vmem %s0, %s201
      %p203 = pneg %p38
      %p204 = pneg %p35
      %p205 = pneg %p59
      %p206 = pneg %p56
      %p207 = pneg %p80
      %p208 = pneg %p77
      %p209 = pneg %p106
      %p210 = pneg %p103
      %p211 = scmp.lt.s32.totalorder %s17, 1
      %s212 = scalar_select %p211, %s17, 1
      %s213 = smul.addr %s212, 8
      %s214 = smul.addr %s213, 4
      %s215 = scalar_lea.vmem %s3, %s214
      %p216 = pneg %p132
      %p217 = pneg %p129
      %p218 = scmp.lt.s32.totalorder %s17, 1
      %s219 = scalar_select %p218, %s17, 1
      %s220 = scalar_lea.vmem %s4, %s219
      %p221 = pneg %p158
      %p222 = pneg %p155
      %p223 = scmp.lt.s32.totalorder %s17, 1
      %s224 = scalar_select %p223, %s17, 1
      %s225 = scalar_lea.vmem %s5, %s224
      %p226 = scmp.lt.s32.totalorder %s17, 1
      %s227 = scalar_select %p226, %s17, 1
      %s228 = smul.addr %s227, 18
      %s229 = smul.addr %s228, 4
      %s230 = scalar_lea.vmem %s0, %s229
      %p231 = scmp.lt.s32.totalorder %s17, 1
      %s232 = scalar_select %p231, %s17, 1
      %s233 = smul.addr %s232, 8
      %s234 = smul.addr %s233, 4
      %s235 = scalar_lea.vmem %s3, %s234
      %p236 = scmp.lt.s32.totalorder %s17, 1
      %s237 = scalar_select %p236, %s17, 1
      %s238 = scalar_lea.vmem %s4, %s237
      %p239 = scmp.lt.s32.totalorder %s17, 1
      %s240 = scalar_select %p239, %s17, 1
      %s241 = scalar_lea.vmem %s5, %s240
      %v243 = vld [vmem:[%s230] sm:$0xf]
      %v244 = vld [vmem:[%s230 + $0x8] sm:$0xf]
      %v245 = vld [vmem:[%s230 + $0x10] sm:$0xf]
      %v246 = vld [vmem:[%s230 + $0x18] sm:$0xf]
      %v247 = vld [vmem:[%s230 + $0x20] sm:$0xf]
      %v248 = vld [vmem:[%s230 + $0x28] sm:$0xf]
      %v249 = vld [vmem:[%s230 + $0x30] sm:$0xf]
      %v250 = vld [vmem:[%s230 + $0x38] sm:$0xf]
      %v251 = vld [vmem:[%s1] sm:$0xf]
      %v252 = vld [vmem:[%s1 + $0x4] sm:$0xf]
      %v253 = vld [vmem:[%s230 + $0x4] sm:$0x1]
      %v254 = vld [vmem:[%s230 + $0xc] sm:$0x1]
      %v255 = vld [vmem:[%s230 + $0x14] sm:$0x1]
      %v256 = vld [vmem:[%s230 + $0x1c] sm:$0x1]
      %v257 = vld [vmem:[%s230 + $0x24] sm:$0x1]
      %v258 = vld [vmem:[%s230 + $0x2c] sm:$0x1]
      %v259 = vld [vmem:[%s230 + $0x34] sm:$0x1]
      %v260 = vld [vmem:[%s230 + $0x3c] sm:$0x1]
      %vm261 = vsmask.f32 3328
      %vm262 = vsmask.f32 7440
      %vm263 = vmor %vm261, %vm262
      %v265 = vshrl.u32 %v243, 16
      %v267 = vrot.slane %v265, 4
      %v268 = vshll.u32 %v243, 16
      %v270 = vrot.slane %v268, 5
      %v271 = vor.u32 %v267, %v270
      %v272 = vrot.slane %v271, 4
      %v274 = vshll.u32 %v253, 16
      %v276 = vrot.slane %v274, 5
      %v277 = vsel %vm263, %v272, %v276
      %v279 = vshrl.u32 %v244, 16
      %v281 = vrot.slane %v279, 4
      %v282 = vshll.u32 %v244, 16
      %v284 = vrot.slane %v282, 5
      %v285 = vor.u32 %v281, %v284
      %v286 = vrot.slane %v285, 4
      %v288 = vshll.u32 %v254, 16
      %v290 = vrot.slane %v288, 5
      %v291 = vsel %vm263, %v286, %v290
      %v293 = vshrl.u32 %v245, 16
      %v295 = vrot.slane %v293, 4
      %v296 = vshll.u32 %v245, 16
      %v298 = vrot.slane %v296, 5
      %v299 = vor.u32 %v295, %v298
      %v300 = vrot.slane %v299, 4
      %v302 = vshll.u32 %v255, 16
      %v304 = vrot.slane %v302, 5
      %v305 = vsel %vm263, %v300, %v304
      %v307 = vshrl.u32 %v246, 16
      %v309 = vrot.slane %v307, 4
      %v310 = vshll.u32 %v246, 16
      %v312 = vrot.slane %v310, 5
      %v313 = vor.u32 %v309, %v312
      %v314 = vrot.slane %v313, 4
      %v316 = vshll.u32 %v256, 16
      %v318 = vrot.slane %v316, 5
      %v319 = vsel %vm263, %v314, %v318
      %v321 = vshrl.u32 %v247, 16
      %v323 = vrot.slane %v321, 4
      %v324 = vshll.u32 %v247, 16
      %v326 = vrot.slane %v324, 5
      %v327 = vor.u32 %v323, %v326
      %v328 = vrot.slane %v327, 4
      %v330 = vshll.u32 %v257, 16
      %v332 = vrot.slane %v330, 5
      %v333 = vsel %vm263, %v328, %v332
      %v335 = vshrl.u32 %v248, 16
      %v337 = vrot.slane %v335, 4
      %v338 = vshll.u32 %v248, 16
      %v340 = vrot.slane %v338, 5
      %v341 = vor.u32 %v337, %v340
      %v342 = vrot.slane %v341, 4
      %v344 = vshll.u32 %v258, 16
      %v346 = vrot.slane %v344, 5
      %v347 = vsel %vm263, %v342, %v346
      %v349 = vshrl.u32 %v249, 16
      %v351 = vrot.slane %v349, 4
      %v352 = vshll.u32 %v249, 16
      %v354 = vrot.slane %v352, 5
      %v355 = vor.u32 %v351, %v354
      %v356 = vrot.slane %v355, 4
      %v358 = vshll.u32 %v259, 16
      %v360 = vrot.slane %v358, 5
      %v361 = vsel %vm263, %v356, %v360
      %v363 = vshrl.u32 %v250, 16
      %v365 = vrot.slane %v363, 4
      %v366 = vshll.u32 %v250, 16
      %v368 = vrot.slane %v366, 5
      %v369 = vor.u32 %v365, %v368
      %v370 = vrot.slane %v369, 4
      %v372 = vshll.u32 %v260, 16
      %v374 = vrot.slane %v372, 5
      %v375 = vsel %vm263, %v370, %v374
      %s376 = scalar_lea.vmem %s1, 8
      %v377 = vld [vmem:[%s376] sm:$0xf]
      %v378 = vld [vmem:[%s376 + $0x4] sm:$0xf]
      %v379 = vunpack.c.l.b16 %v277
      %v380 = vunpack.c.l.b16 %v291
      %v381 = vunpack.c.l.b16 %v305
      %v382 = vunpack.c.l.b16 %v319
      %v383 = vunpack.c.l.b16 %v333
      %v384 = vunpack.c.l.b16 %v347
      %v385 = vunpack.c.l.b16 %v361
      %v386 = vunpack.c.l.b16 %v375
      %v387 = vpack.c.b16 %v380, %v379
      %v388 = vpack.c.b16 %v382, %v381
      %v389 = vpack.c.b16 %v384, %v383
      %v390 = vpack.c.b16 %v386, %v385
      %v393 = vunpack.c.l.b16 %v377
      %v394 = vunpack.c.l.b16 %v378
      %v395 = vpack.c.b16 %v394, %v393
      %vm397 = vcmask 130048
      %v399 = vsel %vm397, %v387, 0
      %v402 = vsel %vm397, %v388, 0
      %v405 = vsel %vm397, %v389, 0
      %v408 = vsel %vm397, %v390, 0
      %410 = vmatprep.subr.bf16.mxu0 0
      %411 = vmatpush1.bf16.msra.mxu0 %v395
      %412 = vmatprep.subr.bf16.mxu0 0
      %413 = vmatpush1.bf16.msra.mxu0 0
      %414 = vmatprep.subr.bf16.mxu0 0
      %415 = vmatpush1.bf16.msra.mxu0 0
      %416 = vmatprep.subr.bf16.mxu0 0
      %417 = vmatpush1.bf16.msra.mxu0 0
      %418 = vmatprep.subr.bf16.mxu0 0
      %419 = vmatpush1.bf16.msra.mxu0 0
      %420 = vmatprep.subr.bf16.mxu0 0
      %421 = vmatpush1.bf16.msra.mxu0 0
      %422 = vmatprep.subr.bf16.mxu0 0
      %423 = vmatpush1.bf16.msra.mxu0 0
      %424 = vmatprep.subr.bf16.mxu0 0
      %425 = vmatpush1.bf16.msra.mxu0 0
      %426 = vmatprep.subr.bf16.mxu0 0
      %427 = vmatpush1.bf16.msra.mxu0 0
      %428 = vmatprep.subr.bf16.mxu0 0
      %429 = vmatpush1.bf16.msra.mxu0 0
      %430 = vmatprep.subr.bf16.mxu0 0
      %431 = vmatpush1.bf16.msra.mxu0 0
      %432 = vmatprep.subr.bf16.mxu0 0
      %433 = vmatpush1.bf16.msra.mxu0 0
      %434 = vmatprep.subr.bf16.mxu0 0
      %435 = vmatpush1.bf16.msra.mxu0 0
      %436 = vmatprep.subr.bf16.mxu0 0
      %437 = vmatpush1.bf16.msra.mxu0 0
      %438 = vmatprep.subr.bf16.mxu0 0
      %439 = vmatpush1.bf16.msra.mxu0 0
      %440 = vmatprep.subr.bf16.mxu0 0
      %441 = vmatpush1.bf16.msra.mxu0 0
      %442 = vmatprep.mubr.bf16.mxu0 0
      %443 = vmatmul.mubr.bf16.gmra.mrb[0].mxu0 %v399
      %v444 = vpop.f32.mrb[0].mxu0
      %v445 = vadd.f32 0.0, %v444
      %v446 = vpop.f32.mrb[0].mxu0
      %v447 = vpop.f32.mrb[0].mxu0
      %v448 = vadd.f32 0.0, %v447
      %v449 = vpop.f32.mrb[0].mxu0
      %450 = vmatprep.mubr.bf16.mxu0 0
      %451 = vmatmul.mubr.bf16.gmra.mrb[0].mxu0 %v402
      %v452 = vpop.f32.mrb[0].mxu0
      %v453 = vadd.f32 0.0, %v452
      %v454 = vpop.f32.mrb[0].mxu0
      %v455 = vpop.f32.mrb[0].mxu0
      %v456 = vadd.f32 0.0, %v455
      %v457 = vpop.f32.mrb[0].mxu0
      %458 = vmatprep.mubr.bf16.mxu0 0
      %459 = vmatmul.mubr.bf16.gmra.mrb[0].mxu0 %v405
      %v460 = vpop.f32.mrb[0].mxu0
      %v461 = vadd.f32 0.0, %v460
      %v462 = vpop.f32.mrb[0].mxu0
      %v463 = vpop.f32.mrb[0].mxu0
      %v464 = vadd.f32 0.0, %v463
      %v465 = vpop.f32.mrb[0].mxu0
      %466 = vmatprep.mubr.bf16.mxu0 0
      %467 = vmatmul.mubr.bf16.gmra.mrb[0].mxu0 %v408
      %v468 = vpop.f32.mrb[0].mxu0
      %v469 = vadd.f32 0.0, %v468
      %v470 = vpop.f32.mrb[0].mxu0
      %v471 = vpop.f32.mrb[0].mxu0
      %v472 = vadd.f32 0.0, %v471
      %v473 = vpop.f32.mrb[0].mxu0
      %474 = vdwg.mxu0
      %v483 = vunpack.c.l.b16 %v243
      %v484 = vunpack.c.l.b16 %v244
      %v485 = vunpack.c.l.b16 %v245
      %v486 = vunpack.c.l.b16 %v246
      %v487 = vunpack.c.l.b16 %v247
      %v488 = vunpack.c.l.b16 %v248
      %v489 = vunpack.c.l.b16 %v249
      %v490 = vunpack.c.l.b16 %v250
      %v491 = vpack.c.b16 %v484, %v483
      %v492 = vpack.c.b16 %v486, %v485
      %v493 = vpack.c.b16 %v488, %v487
      %v494 = vpack.c.b16 %v490, %v489
      %v497 = vunpack.c.l.b16 %v251
      %v498 = vunpack.c.l.b16 %v252
      %v499 = vpack.c.b16 %v498, %v497
      %v502 = vsel %vm397, %v491, 0
      %v505 = vsel %vm397, %v492, 0
      %v508 = vsel %vm397, %v493, 0
      %v511 = vsel %vm397, %v494, 0
      %513 = vmatprep.subr.bf16.mxu0 0
      %514 = vmatpush1.bf16.msra.mxu0 %v499
      %515 = vmatprep.subr.bf16.mxu0 0
      %516 = vmatpush1.bf16.msra.mxu0 0
      %517 = vmatprep.subr.bf16.mxu0 0
      %518 = vmatpush1.bf16.msra.mxu0 0
      %519 = vmatprep.subr.bf16.mxu0 0
      %520 = vmatpush1.bf16.msra.mxu0 0
      %521 = vmatprep.subr.bf16.mxu0 0
      %522 = vmatpush1.bf16.msra.mxu0 0
      %523 = vmatprep.subr.bf16.mxu0 0
      %524 = vmatpush1.bf16.msra.mxu0 0
      %525 = vmatprep.subr.bf16.mxu0 0
      %526 = vmatpush1.bf16.msra.mxu0 0
      %527 = vmatprep.subr.bf16.mxu0 0
      %528 = vmatpush1.bf16.msra.mxu0 0
      %529 = vmatprep.subr.bf16.mxu0 0
      %530 = vmatpush1.bf16.msra.mxu0 0
      %531 = vmatprep.subr.bf16.mxu0 0
      %532 = vmatpush1.bf16.msra.mxu0 0
      %533 = vmatprep.subr.bf16.mxu0 0
      %534 = vmatpush1.bf16.msra.mxu0 0
      %535 = vmatprep.subr.bf16.mxu0 0
      %536 = vmatpush1.bf16.msra.mxu0 0
      %537 = vmatprep.subr.bf16.mxu0 0
      %538 = vmatpush1.bf16.msra.mxu0 0
      %539 = vmatprep.subr.bf16.mxu0 0
      %540 = vmatpush1.bf16.msra.mxu0 0
      %541 = vmatprep.subr.bf16.mxu0 0
      %542 = vmatpush1.bf16.msra.mxu0 0
      %543 = vmatprep.subr.bf16.mxu0 0
      %544 = vmatpush1.bf16.msra.mxu0 0
      %545 = vmatprep.mubr.bf16.mxu0 0
      %546 = vmatmul.mubr.bf16.gmra.mrb[0].mxu0 %v502
      %v547 = vpop.f32.mrb[0].mxu0
      %v548 = vadd.f32 %v445, %v547
      %v549 = vpop.f32.mrb[0].mxu0
      %v550 = vpop.f32.mrb[0].mxu0
      %v551 = vadd.f32 %v448, %v550
      %v552 = vpop.f32.mrb[0].mxu0
      %553 = vmatprep.mubr.bf16.mxu0 0
      %554 = vmatmul.mubr.bf16.gmra.mrb[0].mxu0 %v505
      %v555 = vpop.f32.mrb[0].mxu0
      %v556 = vadd.f32 %v453, %v555
      %v557 = vpop.f32.mrb[0].mxu0
      %v558 = vpop.f32.mrb[0].mxu0
      %v559 = vadd.f32 %v456, %v558
      %v560 = vpop.f32.mrb[0].mxu0
      %561 = vmatprep.mubr.bf16.mxu0 0
      %562 = vmatmul.mubr.bf16.gmra.mrb[0].mxu0 %v508
      %v563 = vpop.f32.mrb[0].mxu0
      %v564 = vadd.f32 %v461, %v563
      %v565 = vpop.f32.mrb[0].mxu0
      %v566 = vpop.f32.mrb[0].mxu0
      %v567 = vadd.f32 %v464, %v566
      %v568 = vpop.f32.mrb[0].mxu0
      %569 = vmatprep.mubr.bf16.mxu0 0
      %570 = vmatmul.mubr.bf16.gmra.mrb[0].mxu0 %v511
      %v571 = vpop.f32.mrb[0].mxu0
      %v572 = vadd.f32 %v469, %v571
      %v573 = vpop.f32.mrb[0].mxu0
      %v574 = vpop.f32.mrb[0].mxu0
      %v575 = vadd.f32 %v472, %v574
      %v576 = vpop.f32.mrb[0].mxu0
      %577 = vdwg.mxu0
      %s578 = scalar_lea.vmem %s230, 8
      %v579 = vld [vmem:[%s578] sm:$0xf]
      %v580 = vld [vmem:[%s578 + $0x8] sm:$0xf]
      %v581 = vld [vmem:[%s578 + $0x10] sm:$0xf]
      %v582 = vld [vmem:[%s578 + $0x18] sm:$0xf]
      %v583 = vld [vmem:[%s578 + $0x20] sm:$0xf]
      %v584 = vld [vmem:[%s578 + $0x28] sm:$0xf]
      %v585 = vld [vmem:[%s578 + $0x30] sm:$0xf]
      %v586 = vld [vmem:[%s578 + $0x38] sm:$0xf]
      %s587 = scalar_lea.vmem %s1, 16
      %v588 = vld [vmem:[%s587] sm:$0xf]
      %v589 = vld [vmem:[%s587 + $0x4] sm:$0xf]
      %v598 = vunpack.c.l.b16 %v579
      %v599 = vunpack.c.l.b16 %v580
      %v600 = vunpack.c.l.b16 %v581
      %v601 = vunpack.c.l.b16 %v582
      %v602 = vunpack.c.l.b16 %v583
      %v603 = vunpack.c.l.b16 %v584
      %v604 = vunpack.c.l.b16 %v585
      %v605 = vunpack.c.l.b16 %v586
      %v606 = vpack.c.b16 %v599, %v598
      %v607 = vpack.c.b16 %v601, %v600
      %v608 = vpack.c.b16 %v603, %v602
      %v609 = vpack.c.b16 %v605, %v604
      %v612 = vunpack.c.l.b16 %v588
      %v613 = vunpack.c.l.b16 %v589
      %v614 = vpack.c.b16 %v613, %v612
      %v617 = vsel %vm397, %v606, 0
      %v620 = vsel %vm397, %v607, 0
      %v623 = vsel %vm397, %v608, 0
      %v626 = vsel %vm397, %v609, 0
      %628 = vmatprep.subr.bf16.mxu0 0
      %629 = vmatpush1.bf16.msra.mxu0 %v614
      %630 = vmatprep.subr.bf16.mxu0 0
      %631 = vmatpush1.bf16.msra.mxu0 0
      %632 = vmatprep.subr.bf16.mxu0 0
      %633 = vmatpush1.bf16.msra.mxu0 0
      %634 = vmatprep.subr.bf16.mxu0 0
      %635 = vmatpush1.bf16.msra.mxu0 0
      %636 = vmatprep.subr.bf16.mxu0 0
      %637 = vmatpush1.bf16.msra.mxu0 0
      %638 = vmatprep.subr.bf16.mxu0 0
      %639 = vmatpush1.bf16.msra.mxu0 0
      %640 = vmatprep.subr.bf16.mxu0 0
      %641 = vmatpush1.bf16.msra.mxu0 0
      %642 = vmatprep.subr.bf16.mxu0 0
      %643 = vmatpush1.bf16.msra.mxu0 0
      %644 = vmatprep.subr.bf16.mxu0 0
      %645 = vmatpush1.bf16.msra.mxu0 0
      %646 = vmatprep.subr.bf16.mxu0 0
      %647 = vmatpush1.bf16.msra.mxu0 0
      %648 = vmatprep.subr.bf16.mxu0 0
      %649 = vmatpush1.bf16.msra.mxu0 0
      %650 = vmatprep.subr.bf16.mxu0 0
      %651 = vmatpush1.bf16.msra.mxu0 0
      %652 = vmatprep.subr.bf16.mxu0 0
      %653 = vmatpush1.bf16.msra.mxu0 0
      %654 = vmatprep.subr.bf16.mxu0 0
      %655 = vmatpush1.bf16.msra.mxu0 0
      %656 = vmatprep.subr.bf16.mxu0 0
      %657 = vmatpush1.bf16.msra.mxu0 0
      %658 = vmatprep.subr.bf16.mxu0 0
      %659 = vmatpush1.bf16.msra.mxu0 0
      %660 = vmatprep.mubr.bf16.mxu0 0
      %661 = vmatmul.mubr.bf16.gmra.mrb[0].mxu0 %v617
      %v662 = vpop.f32.mrb[0].mxu0
      %v663 = vadd.f32 0.0, %v662
      %v664 = vpop.f32.mrb[0].mxu0
      %v665 = vpop.f32.mrb[0].mxu0
      %v666 = vadd.f32 0.0, %v665
      %v667 = vpop.f32.mrb[0].mxu0
      %668 = vmatprep.mubr.bf16.mxu0 0
      %669 = vmatmul.mubr.bf16.gmra.mrb[0].mxu0 %v620
      %v670 = vpop.f32.mrb[0].mxu0
      %v671 = vadd.f32 0.0, %v670
      %v672 = vpop.f32.mrb[0].mxu0
      %v673 = vpop.f32.mrb[0].mxu0
      %v674 = vadd.f32 0.0, %v673
      %v675 = vpop.f32.mrb[0].mxu0
      %676 = vmatprep.mubr.bf16.mxu0 0
      %677 = vmatmul.mubr.bf16.gmra.mrb[0].mxu0 %v623
      %v678 = vpop.f32.mrb[0].mxu0
      %v679 = vadd.f32 0.0, %v678
      %v680 = vpop.f32.mrb[0].mxu0
      %v681 = vpop.f32.mrb[0].mxu0
      %v682 = vadd.f32 0.0, %v681
      %v683 = vpop.f32.mrb[0].mxu0
      %684 = vmatprep.mubr.bf16.mxu0 0
      %685 = vmatmul.mubr.bf16.gmra.mrb[0].mxu0 %v626
      %v686 = vpop.f32.mrb[0].mxu0
      %v687 = vadd.f32 0.0, %v686
      %v688 = vpop.f32.mrb[0].mxu0
      %v689 = vpop.f32.mrb[0].mxu0
      %v690 = vadd.f32 0.0, %v689
      %v691 = vpop.f32.mrb[0].mxu0
      %692 = vdwg.mxu0
      %v693 = vadd.f32 %v548, %v663
      %v694 = vadd.f32 %v551, %v666
      %v695 = vadd.f32 %v556, %v671
      %v696 = vadd.f32 %v559, %v674
      %v697 = vadd.f32 %v564, %v679
      %v698 = vadd.f32 %v567, %v682
      %v699 = vadd.f32 %v572, %v687
      %v700 = vadd.f32 %v575, %v690
      %v701 = vld [vmem:[%s578] sm:$0xf]
      %v702 = vld [vmem:[%s578 + $0x4] sm:$0x1]
      %v703 = vld [vmem:[%s578 + $0x8] sm:$0xf]
      %v704 = vld [vmem:[%s578 + $0xc] sm:$0x1]
      %v705 = vld [vmem:[%s578 + $0x10] sm:$0xf]
      %v706 = vld [vmem:[%s578 + $0x14] sm:$0x1]
      %v707 = vld [vmem:[%s578 + $0x18] sm:$0xf]
      %v708 = vld [vmem:[%s578 + $0x1c] sm:$0x1]
      %v709 = vld [vmem:[%s578 + $0x20] sm:$0xf]
      %v710 = vld [vmem:[%s578 + $0x24] sm:$0x1]
      %v711 = vld [vmem:[%s578 + $0x28] sm:$0xf]
      %v712 = vld [vmem:[%s578 + $0x2c] sm:$0x1]
      %v713 = vld [vmem:[%s578 + $0x30] sm:$0xf]
      %v714 = vld [vmem:[%s578 + $0x34] sm:$0x1]
      %v715 = vld [vmem:[%s578 + $0x38] sm:$0xf]
      %v716 = vld [vmem:[%s578 + $0x3c] sm:$0x1]
      %v718 = vshrl.u32 %v701, 16
      %v720 = vrot.slane %v718, 4
      %v721 = vshll.u32 %v701, 16
      %v723 = vrot.slane %v721, 5
      %v724 = vor.u32 %v720, %v723
      %v725 = vrot.slane %v724, 4
      %v727 = vshll.u32 %v702, 16
      %v729 = vrot.slane %v727, 5
      %v730 = vsel %vm263, %v725, %v729
      %v732 = vshrl.u32 %v703, 16
      %v734 = vrot.slane %v732, 4
      %v735 = vshll.u32 %v703, 16
      %v737 = vrot.slane %v735, 5
      %v738 = vor.u32 %v734, %v737
      %v739 = vrot.slane %v738, 4
      %v741 = vshll.u32 %v704, 16
      %v743 = vrot.slane %v741, 5
      %v744 = vsel %vm263, %v739, %v743
      %v746 = vshrl.u32 %v705, 16
      %v748 = vrot.slane %v746, 4
      %v749 = vshll.u32 %v705, 16
      %v751 = vrot.slane %v749, 5
      %v752 = vor.u32 %v748, %v751
      %v753 = vrot.slane %v752, 4
      %v755 = vshll.u32 %v706, 16
      %v757 = vrot.slane %v755, 5
      %v758 = vsel %vm263, %v753, %v757
      %v760 = vshrl.u32 %v707, 16
      %v762 = vrot.slane %v760, 4
      %v763 = vshll.u32 %v707, 16
      %v765 = vrot.slane %v763, 5
      %v766 = vor.u32 %v762, %v765
      %v767 = vrot.slane %v766, 4
      %v769 = vshll.u32 %v708, 16
      %v771 = vrot.slane %v769, 5
      %v772 = vsel %vm263, %v767, %v771
      %v774 = vshrl.u32 %v709, 16
      %v776 = vrot.slane %v774, 4
      %v777 = vshll.u32 %v709, 16
      %v779 = vrot.slane %v777, 5
      %v780 = vor.u32 %v776, %v779
      %v781 = vrot.slane %v780, 4
      %v783 = vshll.u32 %v710, 16
      %v785 = vrot.slane %v783, 5
      %v786 = vsel %vm263, %v781, %v785
      %v788 = vshrl.u32 %v711, 16
      %v790 = vrot.slane %v788, 4
      %v791 = vshll.u32 %v711, 16
      %v793 = vrot.slane %v791, 5
      %v794 = vor.u32 %v790, %v793
      %v795 = vrot.slane %v794, 4
      %v797 = vshll.u32 %v712, 16
      %v799 = vrot.slane %v797, 5
      %v800 = vsel %vm263, %v795, %v799
      %v802 = vshrl.u32 %v713, 16
      %v804 = vrot.slane %v802, 4
      %v805 = vshll.u32 %v713, 16
      %v807 = vrot.slane %v805, 5
      %v808 = vor.u32 %v804, %v807
      %v809 = vrot.slane %v808, 4
      %v811 = vshll.u32 %v714, 16
      %v813 = vrot.slane %v811, 5
      %v814 = vsel %vm263, %v809, %v813
      %v816 = vshrl.u32 %v715, 16
      %v818 = vrot.slane %v816, 4
      %v819 = vshll.u32 %v715, 16
      %v821 = vrot.slane %v819, 5
      %v822 = vor.u32 %v818, %v821
      %v823 = vrot.slane %v822, 4
      %v825 = vshll.u32 %v716, 16
      %v827 = vrot.slane %v825, 5
      %v828 = vsel %vm263, %v823, %v827
      %s829 = scalar_lea.vmem %s1, 24
      %v830 = vld [vmem:[%s829] sm:$0xf]
      %v831 = vld [vmem:[%s829 + $0x4] sm:$0xf]
      %v832 = vunpack.c.l.b16 %v730
      %v833 = vunpack.c.l.b16 %v744
      %v834 = vunpack.c.l.b16 %v758
      %v835 = vunpack.c.l.b16 %v772
      %v836 = vunpack.c.l.b16 %v786
      %v837 = vunpack.c.l.b16 %v800
      %v838 = vunpack.c.l.b16 %v814
      %v839 = vunpack.c.l.b16 %v828
      %v840 = vpack.c.b16 %v833, %v832
      %v841 = vpack.c.b16 %v835, %v834
      %v842 = vpack.c.b16 %v837, %v836
      %v843 = vpack.c.b16 %v839, %v838
      %v846 = vunpack.c.l.b16 %v830
      %v847 = vunpack.c.l.b16 %v831
      %v848 = vpack.c.b16 %v847, %v846
      %v851 = vsel %vm397, %v840, 0
      %v854 = vsel %vm397, %v841, 0
      %v857 = vsel %vm397, %v842, 0
      %v860 = vsel %vm397, %v843, 0
      %862 = vmatprep.subr.bf16.mxu0 0
      %863 = vmatpush1.bf16.msra.mxu0 %v848
      %864 = vmatprep.subr.bf16.mxu0 0
      %865 = vmatpush1.bf16.msra.mxu0 0
      %866 = vmatprep.subr.bf16.mxu0 0
      %867 = vmatpush1.bf16.msra.mxu0 0
      %868 = vmatprep.subr.bf16.mxu0 0
      %869 = vmatpush1.bf16.msra.mxu0 0
      %870 = vmatprep.subr.bf16.mxu0 0
      %871 = vmatpush1.bf16.msra.mxu0 0
      %872 = vmatprep.subr.bf16.mxu0 0
      %873 = vmatpush1.bf16.msra.mxu0 0
      %874 = vmatprep.subr.bf16.mxu0 0
      %875 = vmatpush1.bf16.msra.mxu0 0
      %876 = vmatprep.subr.bf16.mxu0 0
      %877 = vmatpush1.bf16.msra.mxu0 0
      %878 = vmatprep.subr.bf16.mxu0 0
      %879 = vmatpush1.bf16.msra.mxu0 0
      %880 = vmatprep.subr.bf16.mxu0 0
      %881 = vmatpush1.bf16.msra.mxu0 0
      %882 = vmatprep.subr.bf16.mxu0 0
      %883 = vmatpush1.bf16.msra.mxu0 0
      %884 = vmatprep.subr.bf16.mxu0 0
      %885 = vmatpush1.bf16.msra.mxu0 0
      %886 = vmatprep.subr.bf16.mxu0 0
      %887 = vmatpush1.bf16.msra.mxu0 0
      %888 = vmatprep.subr.bf16.mxu0 0
      %889 = vmatpush1.bf16.msra.mxu0 0
      %890 = vmatprep.subr.bf16.mxu0 0
      %891 = vmatpush1.bf16.msra.mxu0 0
      %892 = vmatprep.subr.bf16.mxu0 0
      %893 = vmatpush1.bf16.msra.mxu0 0
      %894 = vmatprep.mubr.bf16.mxu0 0
      %895 = vmatmul.mubr.bf16.gmra.mrb[0].mxu0 %v851
      %v896 = vpop.f32.mrb[0].mxu0
      %v897 = vadd.f32 0.0, %v896
      %v898 = vpop.f32.mrb[0].mxu0
      %v899 = vpop.f32.mrb[0].mxu0
      %v900 = vadd.f32 0.0, %v899
      %v901 = vpop.f32.mrb[0].mxu0
      %902 = vmatprep.mubr.bf16.mxu0 0
      %903 = vmatmul.mubr.bf16.gmra.mrb[0].mxu0 %v854
      %v904 = vpop.f32.mrb[0].mxu0
      %v905 = vadd.f32 0.0, %v904
      %v906 = vpop.f32.mrb[0].mxu0
      %v907 = vpop.f32.mrb[0].mxu0
      %v908 = vadd.f32 0.0, %v907
      %v909 = vpop.f32.mrb[0].mxu0
      %910 = vmatprep.mubr.bf16.mxu0 0
      %911 = vmatmul.mubr.bf16.gmra.mrb[0].mxu0 %v857
      %v912 = vpop.f32.mrb[0].mxu0
      %v913 = vadd.f32 0.0, %v912
      %v914 = vpop.f32.mrb[0].mxu0
      %v915 = vpop.f32.mrb[0].mxu0
      %v916 = vadd.f32 0.0, %v915
      %v917 = vpop.f32.mrb[0].mxu0
      %918 = vmatprep.mubr.bf16.mxu0 0
      %919 = vmatmul.mubr.bf16.gmra.mrb[0].mxu0 %v860
      %v920 = vpop.f32.mrb[0].mxu0
      %v921 = vadd.f32 0.0, %v920
      %v922 = vpop.f32.mrb[0].mxu0
      %v923 = vpop.f32.mrb[0].mxu0
      %v924 = vadd.f32 0.0, %v923
      %v925 = vpop.f32.mrb[0].mxu0
      %926 = vdwg.mxu0
      %v927 = vadd.f32 %v693, %v897
      %v928 = vadd.f32 %v694, %v900
      %v929 = vadd.f32 %v695, %v905
      %v930 = vadd.f32 %v696, %v908
      %v931 = vadd.f32 %v697, %v913
      %v932 = vadd.f32 %v698, %v916
      %v933 = vadd.f32 %v699, %v921
      %v934 = vadd.f32 %v700, %v924
      %v935 = vld [vmem:[%s2] sm:$0x1]
      %v937 = vlaneseq
      %v938 = vshrl.u32 %v937, 7
      %v939 = vsub.s32 0, %v938
      %v940 = vrot.slane %v935, %v939
      %v942 = vadd.f32 %v927, %v940
      %v943 = vadd.f32 %v928, %v940
      %v944 = vadd.f32 %v929, %v940
      %v945 = vadd.f32 %v930, %v940
      %v946 = vadd.f32 %v931, %v940
      %v947 = vadd.f32 %v932, %v940
      %v948 = vadd.f32 %v933, %v940
      %v949 = vadd.f32 %v934, %v940
      %v950 = vadd.f32 %v942, %v943
      %v951 = vadd.f32 %v950, %v944
      %v952 = vadd.f32 %v951, %v945
      %v953 = vadd.f32 %v952, %v946
      %v954 = vadd.f32 %v953, %v947
      %v955 = vadd.f32 %v954, %v948
      %v956 = vadd.f32 %v955, %v949
      %v957 = vrot.slane %v956, 4
      %v958 = vadd.f32 %v956, %v957
      %v959 = vrot.slane %v958, 2
      %v960 = vadd.f32 %v958, %v959
      %v961 = vrot.slane %v960, 1
      %v962 = vadd.f32 %v960, %v961
      %963 = vst [vmem:[%s238] sm:$0x1] %v962
      %v964 = vmul.f32 %v942, %v942
      %v965 = vmul.f32 %v943, %v943
      %v966 = vmul.f32 %v944, %v944
      %v967 = vmul.f32 %v945, %v945
      %v968 = vmul.f32 %v946, %v946
      %v969 = vmul.f32 %v947, %v947
      %v970 = vmul.f32 %v948, %v948
      %v971 = vmul.f32 %v949, %v949
      %v972 = vadd.f32 %v964, %v965
      %v973 = vadd.f32 %v972, %v966
      %v974 = vadd.f32 %v973, %v967
      %v975 = vadd.f32 %v974, %v968
      %v976 = vadd.f32 %v975, %v969
      %v977 = vadd.f32 %v976, %v970
      %v978 = vadd.f32 %v977, %v971
      %v979 = vrot.slane %v978, 4
      %v980 = vadd.f32 %v978, %v979
      %v981 = vrot.slane %v980, 2
      %v982 = vadd.f32 %v980, %v981
      %v983 = vrot.slane %v982, 1
      %v984 = vadd.f32 %v982, %v983
      %985 = vst [vmem:[%s241] sm:$0x1] %v984
      %v986 = vpack.c.bf16 %v943, %v942
      %v987 = vpack.c.bf16 %v945, %v944
      %v988 = vpack.c.bf16 %v947, %v946
      %v989 = vpack.c.bf16 %v949, %v948
      %v994 = vunpack.c.l.b16 %v986
      %v995 = vunpack.c.h.b16 %v986
      %v996 = vunpack.c.l.b16 %v987
      %v997 = vunpack.c.h.b16 %v987
      %v998 = vunpack.c.l.b16 %v988
      %v999 = vunpack.c.h.b16 %v988
      %v1000 = vunpack.c.l.b16 %v989
      %v1001 = vunpack.c.h.b16 %v989
      %v1002 = vpack.c.b16 %v994, %v994
      %v1003 = vpack.c.b16 %v995, %v995
      %v1004 = vpack.c.b16 %v996, %v996
      %v1005 = vpack.c.b16 %v997, %v997
      %v1006 = vpack.c.b16 %v998, %v998
      %v1007 = vpack.c.b16 %v999, %v999
      %v1008 = vpack.c.b16 %v1000, %v1000
      %v1009 = vpack.c.b16 %v1001, %v1001
      %1018 = vst [vmem:[%s235] sm:$0xf] %v1002
      %1019 = vst [vmem:[%s235 + $0x4] sm:$0xf] %v1003
      %1020 = vst [vmem:[%s235 + $0x8] sm:$0xf] %v1004
      %1021 = vst [vmem:[%s235 + $0xc] sm:$0xf] %v1005
      %1022 = vst [vmem:[%s235 + $0x10] sm:$0xf] %v1006
      %1023 = vst [vmem:[%s235 + $0x14] sm:$0xf] %v1007
      %1024 = vst [vmem:[%s235 + $0x18] sm:$0xf] %v1008
      %1025 = vst [vmem:[%s235 + $0x1c] sm:$0xf] %v1009
      %p1026 = scmp.lt.s32.totalorder %s17, 1
      %s1027 = scalar_select %p1026, %s17, 1
      %s1028 = smul.addr %s1027, 8
      %s1029 = smul.addr %s1028, 4
      %s1030 = scalar_lea.vmem %s3, %s1029
      %p1031 = scmp.lt.s32.totalorder %s17, 1
      %s1032 = scalar_select %p1031, %s17, 1
      %s1033 = scalar_lea.vmem %s4, %s1032
      %p1034 = scmp.lt.s32.totalorder %s17, 1
      %s1035 = scalar_select %p1034, %s17, 1
      %s1036 = scalar_lea.vmem %s5, %s1035
      // Predicated region
      $region33: #{convblock_forward.3} parent=31 // pred_check
        %p1037 = pneg %p103
      $region34: #{convblock_forward.3} parent=31 // pred_check_branch
        %1039 = sbr.rel (%p1037) target = $region36
      $region35: #{convblock_forward.3} parent=31 // pred_region
        _
      $region36: #{convblock_forward.3} parent=31 // pred_fallthru
        _
      // Predicated region
      $region37: #{convblock_forward.3} parent=31 // pred_check
        %p1040 = pneg %p129
      $region38: #{convblock_forward.3} parent=31 // pred_check_branch
        %1042 = sbr.rel (%p1040) target = $region40
      $region39: #{convblock_forward.3} parent=31 // pred_region
        _
      $region40: #{convblock_forward.3} parent=31 // pred_fallthru
        _
      // Predicated region
      $region41: #{convblock_forward.3} parent=31 // pred_check
        %p1043 = pneg %p155
      $region42: #{convblock_forward.3} parent=31 // pred_check_branch
        %1045 = sbr.rel (%p1043) target = $region44
      $region43: #{convblock_forward.3} parent=31 // pred_region
        _
      $region44: #{convblock_forward.3} parent=31 // pred_fallthru
        _
    $region32: #{convblock_forward.3} parent=5 // pred_fallthru
      _
    %p1046 = scmp.le.s32.totalorder 2, %s12
    // Predicated region
    $region45: #{convblock_forward.3} parent=5 // pred_check
      %p1047 = pneg %p1046
    $region46: #{convblock_forward.3} parent=5 // pred_check_branch
      %1049 = sbr.rel (%p1047) target = $region48
    $region47: #{convblock_forward.3} parent=5 // pred_region
      %s1050 = ssub.s32 %s12, 2
      // Predicated region
      $region49: #{convblock_forward.3} parent=47 // pred_check
        %p1051 = pneg %p109
      $region50: #{convblock_forward.3} parent=47 // pred_check_branch
        %1053 = sbr.rel (%p1051) target = $region52
      $region51: #{convblock_forward.3} parent=47 // pred_region
        %p1054 = scmp.lt.s32.totalorder %s18, 1
        %s1055 = scalar_select %p1054, %s18, 1
        %s1056 = smul.addr %s1055, 8
        %s1057 = smul.addr %s1056, 4
        %s1058 = scalar_lea.vmem %s3, %s1057
      $region52: #{convblock_forward.3} parent=47 // pred_fallthru
        _
      // Predicated region
      $region53: #{convblock_forward.3} parent=47 // pred_check
        %p1059 = pneg %p135
      $region54: #{convblock_forward.3} parent=47 // pred_check_branch
        %1061 = sbr.rel (%p1059) target = $region56
      $region55: #{convblock_forward.3} parent=47 // pred_region
        %p1062 = scmp.lt.s32.totalorder %s18, 1
        %s1063 = scalar_select %p1062, %s18, 1
        %s1064 = scalar_lea.vmem %s4, %s1063
      $region56: #{convblock_forward.3} parent=47 // pred_fallthru
        _
      // Predicated region
      $region57: #{convblock_forward.3} parent=47 // pred_check
        %p1065 = pneg %p161
      $region58: #{convblock_forward.3} parent=47 // pred_check_branch
        %1067 = sbr.rel (%p1065) target = $region60
      $region59: #{convblock_forward.3} parent=47 // pred_region
        %p1068 = scmp.lt.s32.totalorder %s18, 1
        %s1069 = scalar_select %p1068, %s18, 1
        %s1070 = scalar_lea.vmem %s5, %s1069
      $region60: #{convblock_forward.3} parent=47 // pred_fallthru
        _
    $region48: #{convblock_forward.3} parent=5 // pred_fallthru
      _
  $region6: #{convblock_forward.3} parent=0 // loop_footer
    %s16 = sadd.s32 1, %s12
  $region7: #{convblock_forward.3} parent=0 // loop_footer_branch
    %11 = sbr.rel target = $region3
  $region8: #{convblock_forward.3} parent=0 // loop_exit
    _

// kernel: convblock_forward.4
$region0: #{convblock_forward.4}
  #allocation0 [shape = 'u32[]', space=smem, size = 0x4, offset = 0x4, fixed_abs, tag = 'smem constant byte address 0x4 - core index']
  #allocation1 [shape = 'u32[144,128]{1,0:T(1,128)}', space=vmem, size = 0x12000, scoped, tag = 'internal scratch']
  #allocation2 [shape = 'bf16[10,10,128]{2,1,0:T(8,128)(2,1)}', space=vmem, size = 0xa000, scoped, tag = 'scratch operand']
  %s0 = inlined_call_operand.vmem [shape: bf16[2,64,128], index: 0, kind: input, shape index: {}]
  %s1 = inlined_call_operand.vmem [shape: f32[1,128], index: 1, kind: input, shape index: {}]
  %s2 = inlined_call_operand.vmem [shape: f32[1,128], index: 2, kind: input, shape index: {}]
  %s3 = inlined_call_operand.vmem [shape: bf16[9,128,128], index: 3, kind: input, shape index: {}]
  %s4 = inlined_call_operand.vmem [shape: f32[1,128], index: 4, kind: input, shape index: {}]
  %s5 = inlined_call_operand.vmem [shape: bf16[2,64,128], index: 5, kind: output, shape index: {0}]
  %s6 = inlined_call_operand.vmem [shape: f32[2,1,128], index: 6, kind: output, shape index: {1}]
  %s7 = inlined_call_operand.vmem [shape: f32[2,1,128], index: 7, kind: output, shape index: {2}]
  %8 = xla_tuple %s5, %s6, %s7
  %s9 = sld [smem:[#allocation0]]
  $region69: #{convblock_forward.4} parent=0
    _
  %s11 = ssub.s32 1, %s9
  %s12 = scalar_select 0, %s11, %s9
  loop: start=0, step=1, limit=4
  $region2: #{convblock_forward.4} parent=0 // loop_pre_header
    _
  $region3: #{convblock_forward.4} parent=0 // loop_header
    %s14 = sphi 0, %s18
    %p15 = scmp.ge.s32.totalorder %s14, 4
    %s24 = sphi 0, %s26
    %s27 = sphi 0, %s24
    %s28 = sphi 0, %s27
    %s44 = sphi 0, %s28
    %s48 = sphi 0, %s48
    %s50 = sphi 0, %s48
    %s51 = sphi 0, %s50
    %s65 = sphi 0, %s51
    %s69 = sphi 0, %s69
    %s71 = sphi 0, %s69
    %s72 = sphi 0, %s71
    %s86 = sphi 0, %s72
    %s90 = sphi 0, %s90
    %s92 = sphi 0, %s90
    %s93 = sphi 0, %s92
    %s107 = sphi 0, %s93
    %s111 = sphi 0, %s111
    %s113 = sphi 0, %s111
    %s114 = sphi 0, %s113
    %s128 = sphi 0, %s114
    %s134 = sphi 0, %s136
    %s137 = sphi 0, %s134
    %s138 = sphi 0, %s137
    %s154 = sphi 0, %s138
    %s160 = sphi 0, %s162
    %s163 = sphi 0, %s160
    %s164 = sphi 0, %s163
    %s180 = sphi 0, %s164
    %s186 = sphi 0, %s188
    %s189 = sphi 0, %s186
    %s190 = sphi 0, %s189
    %s206 = sphi 0, %s190
  $region4: #{convblock_forward.4} parent=0 // loop_header_branch
    %17 = sbr.rel (%p15) target = $region8
  $region5: #{convblock_forward.4} parent=0 // loop_body
    %s19 = ssub.s32 %s14, 1
    %s20 = ssub.s32 %s14, 2
    %s21 = sadd.s32 %s14, 1
    %s22 = ssub.s32 %s14, %s21
    %p23 = scmp.eq.s32.totalorder %s22, 0
    %s25 = sadd.s32 %s24, 1
    %s26 = scalar_select %p23, %s24, %s25
    %p29 = pneg %p23
    %p30 = scmp.eq.s32.totalorder %s14, 1
    %p31 = por %p29, %p30
    %p32 = scmp.ne.s32.totalorder %s24, %s27
    %p33 = scmp.eq.s32.totalorder %s14, 0
    %p34 = por %p32, %p33
    %p35 = scmp.ne.s32.totalorder %s24, %s27
    %p36 = scmp.eq.s32.totalorder %s19, 1
    %p37 = por %p35, %p36
    %p38 = scmp.ne.s32.totalorder %s27, %s28
    %p39 = scmp.eq.s32.totalorder %s19, 0
    %p40 = por %p38, %p39
    %p41 = scmp.ne.s32.totalorder %s27, %s28
    %p42 = scmp.eq.s32.totalorder %s20, 1
    %p43 = por %p41, %p42
    %p45 = scmp.ne.s32.totalorder %s28, %s44
    %p46 = scmp.eq.s32.totalorder %s20, 0
    %p47 = por %p45, %p46
    %s49 = sadd.s32 %s48, 1
    %p52 = scmp.eq.s32.totalorder %s14, 1
    %p53 = scmp.ne.s32.totalorder %s48, %s50
    %p54 = scmp.eq.s32.totalorder %s14, 0
    %p55 = por %p53, %p54
    %p56 = scmp.ne.s32.totalorder %s48, %s50
    %p57 = scmp.eq.s32.totalorder %s19, 1
    %p58 = por %p56, %p57
    %p59 = scmp.ne.s32.totalorder %s50, %s51
    %p60 = scmp.eq.s32.totalorder %s19, 0
    %p61 = por %p59, %p60
    %p62 = scmp.ne.s32.totalorder %s50, %s51
    %p63 = scmp.eq.s32.totalorder %s20, 1
    %p64 = por %p62, %p63
    %p66 = scmp.ne.s32.totalorder %s51, %s65
    %p67 = scmp.eq.s32.totalorder %s20, 0
    %p68 = por %p66, %p67
    %s70 = sadd.s32 %s69, 1
    %p73 = scmp.eq.s32.totalorder %s14, 1
    %p74 = scmp.ne.s32.totalorder %s69, %s71
    %p75 = scmp.eq.s32.totalorder %s14, 0
    %p76 = por %p74, %p75
    %p77 = scmp.ne.s32.totalorder %s69, %s71
    %p78 = scmp.eq.s32.totalorder %s19, 1
    %p79 = por %p77, %p78
    %p80 = scmp.ne.s32.totalorder %s71, %s72
    %p81 = scmp.eq.s32.totalorder %s19, 0
    %p82 = por %p80, %p81
    %p83 = scmp.ne.s32.totalorder %s71, %s72
    %p84 = scmp.eq.s32.totalorder %s20, 1
    %p85 = por %p83, %p84
    %p87 = scmp.ne.s32.totalorder %s72, %s86
    %p88 = scmp.eq.s32.totalorder %s20, 0
    %p89 = por %p87, %p88
    %s91 = sadd.s32 %s90, 1
    %p94 = scmp.eq.s32.totalorder %s14, 1
    %p95 = scmp.ne.s32.totalorder %s90, %s92
    %p96 = scmp.eq.s32.totalorder %s14, 0
    %p97 = por %p95, %p96
    %p98 = scmp.ne.s32.totalorder %s90, %s92
    %p99 = scmp.eq.s32.totalorder %s19, 1
    %p100 = por %p98, %p99
    %p101 = scmp.ne.s32.totalorder %s92, %s93
    %p102 = scmp.eq.s32.totalorder %s19, 0
    %p103 = por %p101, %p102
    %p104 = scmp.ne.s32.totalorder %s92, %s93
    %p105 = scmp.eq.s32.totalorder %s20, 1
    %p106 = por %p104, %p105
    %p108 = scmp.ne.s32.totalorder %s93, %s107
    %p109 = scmp.eq.s32.totalorder %s20, 0
    %p110 = por %p108, %p109
    %s112 = sadd.s32 %s111, 1
    %p115 = scmp.eq.s32.totalorder %s14, 1
    %p116 = scmp.ne.s32.totalorder %s111, %s113
    %p117 = scmp.eq.s32.totalorder %s14, 0
    %p118 = por %p116, %p117
    %p119 = scmp.ne.s32.totalorder %s111, %s113
    %p120 = scmp.eq.s32.totalorder %s19, 1
    %p121 = por %p119, %p120
    %p122 = scmp.ne.s32.totalorder %s113, %s114
    %p123 = scmp.eq.s32.totalorder %s19, 0
    %p124 = por %p122, %p123
    %p125 = scmp.ne.s32.totalorder %s113, %s114
    %p126 = scmp.eq.s32.totalorder %s20, 1
    %p127 = por %p125, %p126
    %p129 = scmp.ne.s32.totalorder %s114, %s128
    %p130 = scmp.eq.s32.totalorder %s20, 0
    %p131 = por %p129, %p130
    %s132 = ssub.s32 %s14, %s21
    %p133 = scmp.eq.s32.totalorder %s132, 0
    %s135 = sadd.s32 %s134, 1
    %s136 = scalar_select %p133, %s134, %s135
    %p139 = pneg %p133
    %p140 = scmp.eq.s32.totalorder %s14, 1
    %p141 = por %p139, %p140
    %p142 = scmp.ne.s32.totalorder %s134, %s137
    %p143 = scmp.eq.s32.totalorder %s14, 0
    %p144 = por %p142, %p143
    %p145 = scmp.ne.s32.totalorder %s134, %s137
    %p146 = scmp.eq.s32.totalorder %s19, 1
    %p147 = por %p145, %p146
    %p148 = scmp.ne.s32.totalorder %s137, %s138
    %p149 = scmp.eq.s32.totalorder %s19, 0
    %p150 = por %p148, %p149
    %p151 = scmp.ne.s32.totalorder %s137, %s138
    %p152 = scmp.eq.s32.totalorder %s20, 1
    %p153 = por %p151, %p152
    %p155 = scmp.ne.s32.totalorder %s138, %s154
    %p156 = scmp.eq.s32.totalorder %s20, 0
    %p157 = por %p155, %p156
    %s158 = ssub.s32 %s14, %s21
    %p159 = scmp.eq.s32.totalorder %s158, 0
    %s161 = sadd.s32 %s160, 1
    %s162 = scalar_select %p159, %s160, %s161
    %p165 = pneg %p159
    %p166 = scmp.eq.s32.totalorder %s14, 1
    %p167 = por %p165, %p166
    %p168 = scmp.ne.s32.totalorder %s160, %s163
    %p169 = scmp.eq.s32.totalorder %s14, 0
    %p170 = por %p168, %p169
    %p171 = scmp.ne.s32.totalorder %s160, %s163
    %p172 = scmp.eq.s32.totalorder %s19, 1
    %p173 = por %p171, %p172
    %p174 = scmp.ne.s32.totalorder %s163, %s164
    %p175 = scmp.eq.s32.totalorder %s19, 0
    %p176 = por %p174, %p175
    %p177 = scmp.ne.s32.totalorder %s163, %s164
    %p178 = scmp.eq.s32.totalorder %s20, 1
    %p179 = por %p177, %p178
    %p181 = scmp.ne.s32.totalorder %s164, %s180
    %p182 = scmp.eq.s32.totalorder %s20, 0
    %p183 = por %p181, %p182
    %s184 = ssub.s32 %s14, %s21
    %p185 = scmp.eq.s32.totalorder %s184, 0
    %s187 = sadd.s32 %s186, 1
    %s188 = scalar_select %p185, %s186, %s187
    %p191 = pneg %p185
    %p192 = scmp.eq.s32.totalorder %s14, 1
    %p193 = por %p191, %p192
    %p194 = scmp.ne.s32.totalorder %s186, %s189
    %p195 = scmp.eq.s32.totalorder %s14, 0
    %p196 = por %p194, %p195
    %p197 = scmp.ne.s32.totalorder %s186, %s189
    %p198 = scmp.eq.s32.totalorder %s19, 1
    %p199 = por %p197, %p198
    %p200 = scmp.ne.s32.totalorder %s189, %s190
    %p201 = scmp.eq.s32.totalorder %s19, 0
    %p202 = por %p200, %p201
    %p203 = scmp.ne.s32.totalorder %s189, %s190
    %p204 = scmp.eq.s32.totalorder %s20, 1
    %p205 = por %p203, %p204
    %p207 = scmp.ne.s32.totalorder %s190, %s206
    %p208 = scmp.eq.s32.totalorder %s20, 0
    %p209 = por %p207, %p208
    %p210 = scmp.le.s32.totalorder 1, %s14
    %p211 = scmp.lt.s32.totalorder %s14, 3
    %p212 = pnand %p210, %p211
    %p213 = pneg %p212
    // Predicated region
    $region9: #{convblock_forward.4} parent=5 // pred_check
      _
    $region10: #{convblock_forward.4} parent=5 // pred_check_branch
      %215 = sbr.rel (%p212) target = $region12
    $region11: #{convblock_forward.4} parent=5 // pred_region
      %s216 = ssub.s32 %s14, 1
      // Predicated region
      $region13: #{convblock_forward.4} parent=11 // pred_check
        %p217 = pneg %p61
      $region14: #{convblock_forward.4} parent=11 // pred_check_branch
        %219 = sbr.rel (%p217) target = $region16
      $region15: #{convblock_forward.4} parent=11 // pred_region
        _
      $region16: #{convblock_forward.4} parent=11 // pred_fallthru
        _
      // Predicated region
      $region17: #{convblock_forward.4} parent=11 // pred_check
        %p220 = pneg %p82
      $region18: #{convblock_forward.4} parent=11 // pred_check_branch
        %222 = sbr.rel (%p220) target = $region20
      $region19: #{convblock_forward.4} parent=11 // pred_region
        _
      $region20: #{convblock_forward.4} parent=11 // pred_fallthru
        _
      // Predicated region
      $region21: #{convblock_forward.4} parent=11 // pred_check
        %p223 = pneg %p103
      $region22: #{convblock_forward.4} parent=11 // pred_check_branch
        %225 = sbr.rel (%p223) target = $region24
      $region23: #{convblock_forward.4} parent=11 // pred_region
        _
      $region24: #{convblock_forward.4} parent=11 // pred_fallthru
        _
      // Predicated region
      $region25: #{convblock_forward.4} parent=11 // pred_check
        %p226 = pneg %p124
      $region26: #{convblock_forward.4} parent=11 // pred_check_branch
        %228 = sbr.rel (%p226) target = $region28
      $region27: #{convblock_forward.4} parent=11 // pred_region
        _
      $region28: #{convblock_forward.4} parent=11 // pred_fallthru
        _
    $region12: #{convblock_forward.4} parent=5 // pred_fallthru
      _
    %p229 = scmp.lt.s32.totalorder %s14, 2
    // Predicated region
    $region29: #{convblock_forward.4} parent=5 // pred_check
      %p230 = pneg %p229
    $region30: #{convblock_forward.4} parent=5 // pred_check_branch
      %232 = sbr.rel (%p230) target = $region32
    $region31: #{convblock_forward.4} parent=5 // pred_region
      // Predicated region
      $region33: #{convblock_forward.4} parent=31 // pred_check
        %p233 = pneg %p34
      $region34: #{convblock_forward.4} parent=31 // pred_check_branch
        %235 = sbr.rel (%p233) target = $region36
      $region35: #{convblock_forward.4} parent=31 // pred_region
        %p236 = scmp.lt.s32.totalorder %s14, 1
        %s237 = scalar_select %p236, %s14, 1
        %s238 = smul.addr %s237, 8
        %s239 = smul.addr %s238, 4
        %s240 = scalar_lea.vmem %s0, %s239
      $region36: #{convblock_forward.4} parent=31 // pred_fallthru
        _
    $region32: #{convblock_forward.4} parent=5 // pred_fallthru
      _
    %p241 = scmp.le.s32.totalorder 1, %s14
    %p242 = scmp.lt.s32.totalorder %s14, 3
    %p243 = pnand %p241, %p242
    %p244 = pneg %p243
    // Predicated region
    $region37: #{convblock_forward.4} parent=5 // pred_check
      _
    $region38: #{convblock_forward.4} parent=5 // pred_check_branch
      %246 = sbr.rel (%p243) target = $region40
    $region39: #{convblock_forward.4} parent=5 // pred_region
      %s247 = ssub.s32 %s14, 1
      %p248 = scmp.lt.s32.totalorder %s19, 1
      %s249 = scalar_select %p248, %s19, 1
      %s250 = smul.addr %s249, 8
      %s251 = smul.addr %s250, 4
      %s252 = scalar_lea.vmem %s0, %s251
      %p253 = pneg %p40
      %p254 = pneg %p37
      %p255 = pneg %p61
      %p256 = pneg %p58
      %p257 = pneg %p82
      %p258 = pneg %p79
      %p259 = pneg %p103
      %p260 = pneg %p100
      %p261 = pneg %p124
      %p262 = pneg %p121
      %p263 = pneg %p150
      %p264 = pneg %p147
      %p265 = scmp.lt.s32.totalorder %s19, 1
      %s266 = scalar_select %p265, %s19, 1
      %s267 = smul.addr %s266, 8
      %s268 = smul.addr %s267, 4
      %s269 = scalar_lea.vmem %s5, %s268
      %p270 = pneg %p176
      %p271 = pneg %p173
      %p272 = scmp.lt.s32.totalorder %s19, 1
      %s273 = scalar_select %p272, %s19, 1
      %s274 = scalar_lea.vmem %s6, %s273
      %p275 = pneg %p202
      %p276 = pneg %p199
      %p277 = scmp.lt.s32.totalorder %s19, 1
      %s278 = scalar_select %p277, %s19, 1
      %s279 = scalar_lea.vmem %s7, %s278
      %p280 = scmp.lt.s32.totalorder %s19, 1
      %s281 = scalar_select %p280, %s19, 1
      %s282 = smul.addr %s281, 8
      %s283 = smul.addr %s282, 4
      %s284 = scalar_lea.vmem %s0, %s283
      %p285 = scmp.lt.s32.totalorder %s19, 1
      %s286 = scalar_select %p285, %s19, 1
      %s287 = smul.addr %s286, 8
      %s288 = smul.addr %s287, 4
      %s289 = scalar_lea.vmem %s5, %s288
      %p290 = scmp.lt.s32.totalorder %s19, 1
      %s291 = scalar_select %p290, %s19, 1
      %s292 = scalar_lea.vmem %s6, %s291
      %p293 = scmp.lt.s32.totalorder %s19, 1
      %s294 = scalar_select %p293, %s19, 1
      %s295 = scalar_lea.vmem %s7, %s294
      %v297 = vld [vmem:[%s284] sm:$0xf]
      %v298 = vld [vmem:[%s284 + $0x4] sm:$0xf]
      %v299 = vld [vmem:[%s284 + $0x8] sm:$0xf]
      %v300 = vld [vmem:[%s284 + $0xc] sm:$0xf]
      %v301 = vld [vmem:[%s284 + $0x10] sm:$0xf]
      %v302 = vld [vmem:[%s284 + $0x14] sm:$0xf]
      %v303 = vld [vmem:[%s284 + $0x18] sm:$0xf]
      %v304 = vld [vmem:[%s284 + $0x1c] sm:$0xf]
      %v305 = vunpack.c.l.bf16 %v297
      %v306 = vunpack.c.l.bf16 %v298
      %v307 = vunpack.c.l.bf16 %v299
      %v308 = vunpack.c.l.bf16 %v300
      %v309 = vunpack.c.l.bf16 %v301
      %v310 = vunpack.c.l.bf16 %v302
      %v311 = vunpack.c.l.bf16 %v303
      %v312 = vunpack.c.l.bf16 %v304
      %v313 = vld [vmem:[%s1] sm:$0x1]
      %v315 = vlaneseq
      %v316 = vshrl.u32 %v315, 7
      %v317 = vsub.s32 0, %v316
      %v318 = vrot.slane %v313, %v317
      %v320 = vmul.f32 %v305, %v318
      %v321 = vmul.f32 %v306, %v318
      %v322 = vmul.f32 %v307, %v318
      %v323 = vmul.f32 %v308, %v318
      %v324 = vmul.f32 %v309, %v318
      %v325 = vmul.f32 %v310, %v318
      %v326 = vmul.f32 %v311, %v318
      %v327 = vmul.f32 %v312, %v318
      %v328 = vld [vmem:[%s2] sm:$0x1]
      %v330 = vlaneseq
      %v331 = vshrl.u32 %v330, 7
      %v332 = vsub.s32 0, %v331
      %v333 = vrot.slane %v328, %v332
      %v335 = vadd.f32 %v320, %v333
      %v336 = vadd.f32 %v321, %v333
      %v337 = vadd.f32 %v322, %v333
      %v338 = vadd.f32 %v323, %v333
      %v339 = vadd.f32 %v324, %v333
      %v340 = vadd.f32 %v325, %v333
      %v341 = vadd.f32 %v326, %v333
      %v342 = vadd.f32 %v327, %v333
      %v343 = vmax.f32 %v335, 0.0
      %v344 = vmax.f32 %v336, 0.0
      %v345 = vmax.f32 %v337, 0.0
      %v346 = vmax.f32 %v338, 0.0
      %v347 = vmax.f32 %v339, 0.0
      %v348 = vmax.f32 %v340, 0.0
      %v349 = vmax.f32 %v341, 0.0
      %v350 = vmax.f32 %v342, 0.0
      %351 = vst [vmem:[#allocation2] sm:$0xf] 0
      %352 = vst [vmem:[#allocation2 + $0x4] sm:$0x1] 0
      %s353 = scalar_lea.vmem [#allocation2], 72
      %354 = vst [vmem:[%s353] sm:$0xf] 0
      %355 = vst [vmem:[%s353 + $0x4] sm:$0x1] 0
      %s356 = scalar_lea.vmem [#allocation2], 8
      %vm357 = vcmask 1040384
      %vm358 = vsmask.f32 256
      %vm359 = vmand %vm357, %vm358
      %v360 = vld [vmem:[%s356] sm:$0x1]
      %v361 = vsel %vm359, 0, %v360
      %362 = vst [vmem:[%s356] sm:$0x1] %v361
      %v363 = vld [vmem:[%s356 + $0x8] sm:$0x1]
      %v364 = vsel %vm359, 0, %v363
      %365 = vst [vmem:[%s356 + $0x8] sm:$0x1] %v364
      %v366 = vld [vmem:[%s356 + $0x10] sm:$0x1]
      %v367 = vsel %vm359, 0, %v366
      %368 = vst [vmem:[%s356 + $0x10] sm:$0x1] %v367
      %v369 = vld [vmem:[%s356 + $0x18] sm:$0x1]
      %v370 = vsel %vm359, 0, %v369
      %371 = vst [vmem:[%s356 + $0x18] sm:$0x1] %v370
      %v372 = vld [vmem:[%s356 + $0x20] sm:$0x1]
      %v373 = vsel %vm359, 0, %v372
      %374 = vst [vmem:[%s356 + $0x20] sm:$0x1] %v373
      %v375 = vld [vmem:[%s356 + $0x28] sm:$0x1]
      %v376 = vsel %vm359, 0, %v375
      %377 = vst [vmem:[%s356 + $0x28] sm:$0x1] %v376
      %v378 = vld [vmem:[%s356 + $0x30] sm:$0x1]
      %v379 = vsel %vm359, 0, %v378
      %380 = vst [vmem:[%s356 + $0x30] sm:$0x1] %v379
      %v381 = vld [vmem:[%s356 + $0x38] sm:$0x1]
      %v382 = vsel %vm359, 0, %v381
      %383 = vst [vmem:[%s356 + $0x38] sm:$0x1] %v382
      %vm384 = vsmask.f32 7938
      %vm385 = vmand %vm357, %vm384
      %v386 = vld [vmem:[%s356 + $0x4] sm:$0x1]
      %v387 = vsel %vm385, 0, %v386
      %388 = vst [vmem:[%s356 + $0x4] sm:$0x1] %v387
      %v389 = vld [vmem:[%s356 + $0xc] sm:$0x1]
      %v390 = vsel %vm385, 0, %v389
      %391 = vst [vmem:[%s356 + $0xc] sm:$0x1] %v390
      %v392 = vld [vmem:[%s356 + $0x14] sm:$0x1]
      %v393 = vsel %vm385, 0, %v392
      %394 = vst [vmem:[%s356 + $0x14] sm:$0x1] %v393
      %v395 = vld [vmem:[%s356 + $0x1c] sm:$0x1]
      %v396 = vsel %vm385, 0, %v395
      %397 = vst [vmem:[%s356 + $0x1c] sm:$0x1] %v396
      %v398 = vld [vmem:[%s356 + $0x24] sm:$0x1]
      %v399 = vsel %vm385, 0, %v398
      %400 = vst [vmem:[%s356 + $0x24] sm:$0x1] %v399
      %v401 = vld [vmem:[%s356 + $0x2c] sm:$0x1]
      %v402 = vsel %vm385, 0, %v401
      %403 = vst [vmem:[%s356 + $0x2c] sm:$0x1] %v402
      %v404 = vld [vmem:[%s356 + $0x34] sm:$0x1]
      %v405 = vsel %vm385, 0, %v404
      %406 = vst [vmem:[%s356 + $0x34] sm:$0x1] %v405
      %v407 = vld [vmem:[%s356 + $0x3c] sm:$0x1]
      %v408 = vsel %vm385, 0, %v407
      %409 = vst [vmem:[%s356 + $0x3c] sm:$0x1] %v408
      %v410 = vpack.c.bf16 %v344, %v343
      %v411 = vpack.c.bf16 %v346, %v345
      %v412 = vpack.c.bf16 %v348, %v347
      %v413 = vpack.c.bf16 %v350, %v349
      %v418 = vunpack.c.l.b16 %v410
      %v419 = vunpack.c.h.b16 %v410
      %v420 = vunpack.c.l.b16 %v411
      %v421 = vunpack.c.h.b16 %v411
      %v422 = vunpack.c.l.b16 %v412
      %v423 = vunpack.c.h.b16 %v412
      %v424 = vunpack.c.l.b16 %v413
      %v425 = vunpack.c.h.b16 %v413
      %v426 = vpack.c.b16 %v418, %v418
      %v427 = vpack.c.b16 %v419, %v419
      %v428 = vpack.c.b16 %v420, %v420
      %v429 = vpack.c.b16 %v421, %v421
      %v430 = vpack.c.b16 %v422, %v422
      %v431 = vpack.c.b16 %v423, %v423
      %v432 = vpack.c.b16 %v424, %v424
      %v433 = vpack.c.b16 %v425, %v425
      %v435 = vshrl.u32 %v426, 16
      %v437 = vrot.slane %v435, 7
      %v438 = vshll.u32 %v426, 16
      %v440 = vor.u32 %v437, %v438
      %v441 = vrot.slane %v437, 4
      %v443 = vshrl.u32 %v427, 16
      %v445 = vrot.slane %v443, 7
      %v446 = vshll.u32 %v427, 16
      %v448 = vor.u32 %v445, %v446
      %v449 = vrot.slane %v445, 4
      %v451 = vshrl.u32 %v428, 16
      %v453 = vrot.slane %v451, 7
      %v454 = vshll.u32 %v428, 16
      %v456 = vor.u32 %v453, %v454
      %v457 = vrot.slane %v453, 4
      %v459 = vshrl.u32 %v429, 16
      %v461 = vrot.slane %v459, 7
      %v462 = vshll.u32 %v429, 16
      %v464 = vor.u32 %v461, %v462
      %v465 = vrot.slane %v461, 4
      %v467 = vshrl.u32 %v430, 16
      %v469 = vrot.slane %v467, 7
      %v470 = vshll.u32 %v430, 16
      %v472 = vor.u32 %v469, %v470
      %v473 = vrot.slane %v469, 4
      %v475 = vshrl.u32 %v431, 16
      %v477 = vrot.slane %v475, 7
      %v478 = vshll.u32 %v431, 16
      %v480 = vor.u32 %v477, %v478
      %v481 = vrot.slane %v477, 4
      %v483 = vshrl.u32 %v432, 16
      %v485 = vrot.slane %v483, 7
      %v486 = vshll.u32 %v432, 16
      %v488 = vor.u32 %v485, %v486
      %v489 = vrot.slane %v485, 4
      %v491 = vshrl.u32 %v433, 16
      %v493 = vrot.slane %v491, 7
      %v494 = vshll.u32 %v433, 16
      %v496 = vor.u32 %v493, %v494
      %v497 = vrot.slane %v493, 4
      %vm514 = vcmask 1043456
      %vm515 = vmand %vm514, %vm384
      %v516 = vld [vmem:[%s356] sm:$0xf]
      %v517 = vsel %vm515, %v440, %v516
      %518 = vst [vmem:[%s356] sm:$0xf] %v517
      %v519 = vld [vmem:[%s356 + $0x4] sm:$0x1]
      %v520 = vsel %vm359, %v441, %v519
      %521 = vst [vmem:[%s356 + $0x4] sm:$0x1] %v520
      %v522 = vld [vmem:[%s356 + $0x8] sm:$0xf]
      %v523 = vsel %vm515, %v448, %v522
      %524 = vst [vmem:[%s356 + $0x8] sm:$0xf] %v523
      %v525 = vld [vmem:[%s356 + $0xc] sm:$0x1]
      %v526 = vsel %vm359, %v449, %v525
      %527 = vst [vmem:[%s356 + $0xc] sm:$0x1] %v526
      %v528 = vld [vmem:[%s356 + $0x10] sm:$0xf]
      %v529 = vsel %vm515, %v456, %v528
      %530 = vst [vmem:[%s356 + $0x10] sm:$0xf] %v529
      %v531 = vld [vmem:[%s356 + $0x14] sm:$0x1]
      %v532 = vsel %vm359, %v457, %v531
      %533 = vst [vmem:[%s356 + $0x14] sm:$0x1] %v532
      %v534 = vld [vmem:[%s356 + $0x18] sm:$0xf]
      %v535 = vsel %vm515, %v464, %v534
      %536 = vst [vmem:[%s356 + $0x18] sm:$0xf] %v535
      %v537 = vld [vmem:[%s356 + $0x1c] sm:$0x1]
      %v538 = vsel %vm359, %v465, %v537
      %539 = vst [vmem:[%s356 + $0x1c] sm:$0x1] %v538
      %v540 = vld [vmem:[%s356 + $0x20] sm:$0xf]
      %v541 = vsel %vm515, %v472, %v540
      %542 = vst [vmem:[%s356 + $0x20] sm:$0xf] %v541
      %v543 = vld [vmem:[%s356 + $0x24] sm:$0x1]
      %v544 = vsel %vm359, %v473, %v543
      %545 = vst [vmem:[%s356 + $0x24] sm:$0x1] %v544
      %v546 = vld [vmem:[%s356 + $0x28] sm:$0xf]
      %v547 = vsel %vm515, %v480, %v546
      %548 = vst [vmem:[%s356 + $0x28] sm:$0xf] %v547
      %v549 = vld [vmem:[%s356 + $0x2c] sm:$0x1]
      %v550 = vsel %vm359, %v481, %v549
      %551 = vst [vmem:[%s356 + $0x2c] sm:$0x1] %v550
      %v552 = vld [vmem:[%s356 + $0x30] sm:$0xf]
      %v553 = vsel %vm515, %v488, %v552
      %554 = vst [vmem:[%s356 + $0x30] sm:$0xf] %v553
      %v555 = vld [vmem:[%s356 + $0x34] sm:$0x1]
      %v556 = vsel %vm359, %v489, %v555
      %557 = vst [vmem:[%s356 + $0x34] sm:$0x1] %v556
      %v558 = vld [vmem:[%s356 + $0x38] sm:$0xf]
      %v559 = vsel %vm515, %v496, %v558
      %560 = vst [vmem:[%s356 + $0x38] sm:$0xf] %v559
      %v561 = vld [vmem:[%s356 + $0x3c] sm:$0x1]
      %v562 = vsel %vm359, %v497, %v561
      %563 = vst [vmem:[%s356 + $0x3c] sm:$0x1] %v562
      %v564 = vld [vmem:[#allocation2] sm:$0xf]
      %v565 = vld [vmem:[#allocation2 + $0x8] sm:$0xf]
      %v566 = vld [vmem:[#allocation2 + $0x10] sm:$0xf]
      %v567 = vld [vmem:[#allocation2 + $0x18] sm:$0xf]
      %v568 = vld [vmem:[#allocation2 + $0x20] sm:$0xf]
      %v569 = vld [vmem:[#allocation2 + $0x28] sm:$0xf]
      %v570 = vld [vmem:[#allocation2 + $0x30] sm:$0xf]
      %v571 = vld [vmem:[#allocation2 + $0x38] sm:$0xf]
      %v572 = vld [vmem:[%s3] sm:$0xf]
      %v573 = vld [vmem:[%s3 + $0x4] sm:$0xf]
      %v574 = vld [vmem:[%s3 + $0x8] sm:$0xf]
      %v575 = vld [vmem:[%s3 + $0xc] sm:$0xf]
      %v576 = vld [vmem:[%s3 + $0x10] sm:$0xf]
      %v577 = vld [vmem:[%s3 + $0x14] sm:$0xf]
      %v578 = vld [vmem:[%s3 + $0x18] sm:$0xf]
      %v579 = vld [vmem:[%s3 + $0x1c] sm:$0xf]
      %v580 = vld [vmem:[%s3 + $0x20] sm:$0xf]
      %v581 = vld [vmem:[%s3 + $0x24] sm:$0xf]
      %v582 = vld [vmem:[%s3 + $0x28] sm:$0xf]
      %v583 = vld [vmem:[%s3 + $0x2c] sm:$0xf]
      %v584 = vld [vmem:[%s3 + $0x30] sm:$0xf]
      %v585 = vld [vmem:[%s3 + $0x34] sm:$0xf]
      %v586 = vld [vmem:[%s3 + $0x38] sm:$0xf]
      %v587 = vld [vmem:[%s3 + $0x3c] sm:$0xf]
      %v588 = vld [vmem:[#allocation2 + $0x4] sm:$0x1]
      %v589 = vld [vmem:[#allocation2 + $0xc] sm:$0x1]
      %v590 = vld [vmem:[#allocation2 + $0x14] sm:$0x1]
      %v591 = vld [vmem:[#allocation2 + $0x1c] sm:$0x1]
      %v592 = vld [vmem:[#allocation2 + $0x24] sm:$0x1]
      %v593 = vld [vmem:[#allocation2 + $0x2c] sm:$0x1]
      %v594 = vld [vmem:[#allocation2 + $0x34] sm:$0x1]
      %v595 = vld [vmem:[#allocation2 + $0x3c] sm:$0x1]
      %vm596 = vsmask.f32 3328
      %vm597 = vsmask.f32 7440
      %vm598 = vmor %vm596, %vm597
      %v600 = vshrl.u32 %v564, 16
      %v602 = vrot.slane %v600, 4
      %v603 = vshll.u32 %v564, 16
      %v605 = vrot.slane %v603, 5
      %v606 = vor.u32 %v602, %v605
      %v607 = vrot.slane %v606, 4
      %v609 = vshll.u32 %v588, 16
      %v611 = vrot.slane %v609, 5
      %v612 = vsel %vm598, %v607, %v611
      %v614 = vshrl.u32 %v565, 16
      %v616 = vrot.slane %v614, 4
      %v617 = vshll.u32 %v565, 16
      %v619 = vrot.slane %v617, 5
      %v620 = vor.u32 %v616, %v619
      %v621 = vrot.slane %v620, 4
      %v623 = vshll.u32 %v589, 16
      %v625 = vrot.slane %v623, 5
      %v626 = vsel %vm598, %v621, %v625
      %v628 = vshrl.u32 %v566, 16
      %v630 = vrot.slane %v628, 4
      %v631 = vshll.u32 %v566, 16
      %v633 = vrot.slane %v631, 5
      %v634 = vor.u32 %v630, %v633
      %v635 = vrot.slane %v634, 4
      %v637 = vshll.u32 %v590, 16
      %v639 = vrot.slane %v637, 5
      %v640 = vsel %vm598, %v635, %v639
      %v642 = vshrl.u32 %v567, 16
      %v644 = vrot.slane %v642, 4
      %v645 = vshll.u32 %v567, 16
      %v647 = vrot.slane %v645, 5
      %v648 = vor.u32 %v644, %v647
      %v649 = vrot.slane %v648, 4
      %v651 = vshll.u32 %v591, 16
      %v653 = vrot.slane %v651, 5
      %v654 = vsel %vm598, %v649, %v653
      %v656 = vshrl.u32 %v568, 16
      %v658 = vrot.slane %v656, 4
      %v659 = vshll.u32 %v568, 16
      %v661 = vrot.slane %v659, 5
      %v662 = vor.u32 %v658, %v661
      %v663 = vrot.slane %v662, 4
      %v665 = vshll.u32 %v592, 16
      %v667 = vrot.slane %v665, 5
      %v668 = vsel %vm598, %v663, %v667
      %v670 = vshrl.u32 %v569, 16
      %v672 = vrot.slane %v670, 4
      %v673 = vshll.u32 %v569, 16
      %v675 = vrot.slane %v673, 5
      %v676 = vor.u32 %v672, %v675
      %v677 = vrot.slane %v676, 4
      %v679 = vshll.u32 %v593, 16
      %v681 = vrot.slane %v679, 5
      %v682 = vsel %vm598, %v677, %v681
      %v684 = vshrl.u32 %v570, 16
      %v686 = vrot.slane %v684, 4
      %v687 = vshll.u32 %v570, 16
      %v689 = vrot.slane %v687, 5
      %v690 = vor.u32 %v686, %v689
      %v691 = vrot.slane %v690, 4
      %v693 = vshll.u32 %v594, 16
      %v695 = vrot.slane %v693, 5
      %v696 = vsel %vm598, %v691, %v695
      %v698 = vshrl.u32 %v571, 16
      %v700 = vrot.slane %v698, 4
      %v701 = vshll.u32 %v571, 16
      %v703 = vrot.slane %v701, 5
      %v704 = vor.u32 %v700, %v703
      %v705 = vrot.slane %v704, 4
      %v707 = vshll.u32 %v595, 16
      %v709 = vrot.slane %v707, 5
      %v710 = vsel %vm598, %v705, %v709
      %s711 = scalar_lea.vmem %s3, 64
      %v712 = vld [vmem:[%s711] sm:$0xf]
      %v713 = vld [vmem:[%s711 + $0x4] sm:$0xf]
      %v714 = vld [vmem:[%s711 + $0x8] sm:$0xf]
      %v715 = vld [vmem:[%s711 + $0xc] sm:$0xf]
      %v716 = vld [vmem:[%s711 + $0x10] sm:$0xf]
      %v717 = vld [vmem:[%s711 + $0x14] sm:$0xf]
      %v718 = vld [vmem:[%s711 + $0x18] sm:$0xf]
      %v719 = vld [vmem:[%s711 + $0x1c] sm:$0xf]
      %v720 = vld [vmem:[%s711 + $0x20] sm:$0xf]
      %v721 = vld [vmem:[%s711 + $0x24] sm:$0xf]
      %v722 = vld [vmem:[%s711 + $0x28] sm:$0xf]
      %v723 = vld [vmem:[%s711 + $0x2c] sm:$0xf]
      %v724 = vld [vmem:[%s711 + $0x30] sm:$0xf]
      %v725 = vld [vmem:[%s711 + $0x34] sm:$0xf]
      %v726 = vld [vmem:[%s711 + $0x38] sm:$0xf]
      %v727 = vld [vmem:[%s711 + $0x3c] sm:$0xf]
      %v728 = vunpack.c.l.b16 %v612
      %v729 = vunpack.c.l.b16 %v626
      %v730 = vunpack.c.l.b16 %v640
      %v731 = vunpack.c.l.b16 %v654
      %v732 = vunpack.c.l.b16 %v668
      %v733 = vunpack.c.l.b16 %v682
      %v734 = vunpack.c.l.b16 %v696
      %v735 = vunpack.c.l.b16 %v710
      %v736 = vpack.c.b16 %v729, %v728
      %v737 = vpack.c.b16 %v731, %v730
      %v738 = vpack.c.b16 %v733, %v732
      %v739 = vpack.c.b16 %v735, %v734
      %v760 = vunpack.c.l.b16 %v712
      %v761 = vunpack.c.l.b16 %v713
      %v762 = vunpack.c.l.b16 %v714
      %v763 = vunpack.c.l.b16 %v715
      %v764 = vunpack.c.l.b16 %v716
      %v765 = vunpack.c.l.b16 %v717
      %v766 = vunpack.c.l.b16 %v718
      %v767 = vunpack.c.l.b16 %v719
      %v768 = vunpack.c.l.b16 %v720
      %v769 = vunpack.c.l.b16 %v721
      %v770 = vunpack.c.l.b16 %v722
      %v771 = vunpack.c.l.b16 %v723
      %v772 = vunpack.c.l.b16 %v724
      %v773 = vunpack.c.l.b16 %v725
      %v774 = vunpack.c.l.b16 %v726
      %v775 = vunpack.c.l.b16 %v727
      %v776 = vpack.c.b16 %v761, %v760
      %v777 = vpack.c.b16 %v763, %v762
      %v778 = vpack.c.b16 %v765, %v764
      %v779 = vpack.c.b16 %v767, %v766
      %v780 = vpack.c.b16 %v769, %v768
      %v781 = vpack.c.b16 %v771, %v770
      %v782 = vpack.c.b16 %v773, %v772
      %v783 = vpack.c.b16 %v775, %v774
      %792 = vmatprep.subr.bf16.mxu0 0
      %793 = vmatpush1.bf16.msra.mxu0 %v776
      %794 = vmatprep.subr.bf16.mxu0 0
      %795 = vmatpush1.bf16.msra.mxu0 %v777
      %796 = vmatprep.subr.bf16.mxu0 0
      %797 = vmatpush1.bf16.msra.mxu0 %v778
      %798 = vmatprep.subr.bf16.mxu0 0
      %799 = vmatpush1.bf16.msra.mxu0 %v779
      %800 = vmatprep.subr.bf16.mxu0 0
      %801 = vmatpush1.bf16.msra.mxu0 %v780
      %802 = vmatprep.subr.bf16.mxu0 0
      %803 = vmatpush1.bf16.msra.mxu0 %v781
      %804 = vmatprep.subr.bf16.mxu0 0
      %805 = vmatpush1.bf16.msra.mxu0 %v782
      %806 = vmatprep.subr.bf16.mxu0 0
      %807 = vmatpush1.bf16.msra.mxu0 %v783
      %808 = vmatprep.subr.bf16.mxu0 0
      %809 = vmatpush1.bf16.msra.mxu0 0
      %810 = vmatprep.subr.bf16.mxu0 0
      %811 = vmatpush1.bf16.msra.mxu0 0
      %812 = vmatprep.subr.bf16.mxu0 0
      %813 = vmatpush1.bf16.msra.mxu0 0
      %814 = vmatprep.subr.bf16.mxu0 0
      %815 = vmatpush1.bf16.msra.mxu0 0
      %816 = vmatprep.subr.bf16.mxu0 0
      %817 = vmatpush1.bf16.msra.mxu0 0
      %818 = vmatprep.subr.bf16.mxu0 0
      %819 = vmatpush1.bf16.msra.mxu0 0
      %820 = vmatprep.subr.bf16.mxu0 0
      %821 = vmatpush1.bf16.msra.mxu0 0
      %822 = vmatprep.subr.bf16.mxu0 0
      %823 = vmatpush1.bf16.msra.mxu0 0
      %824 = vmatprep.mubr.bf16.mxu0 0
      %825 = vmatmul.mubr.bf16.gmra.mrb[0].mxu0 %v736
      %v826 = vpop.f32.mrb[0].mxu0
      %v827 = vadd.f32 0.0, %v826
      %v828 = vpop.f32.mrb[0].mxu0
      %v829 = vpop.f32.mrb[0].mxu0
      %v830 = vadd.f32 0.0, %v829
      %v831 = vpop.f32.mrb[0].mxu0
      %832 = vmatprep.mubr.bf16.mxu0 0
      %833 = vmatmul.mubr.bf16.gmra.mrb[0].mxu0 %v737
      %v834 = vpop.f32.mrb[0].mxu0
      %v835 = vadd.f32 0.0, %v834
      %v836 = vpop.f32.mrb[0].mxu0
      %v837 = vpop.f32.mrb[0].mxu0
      %v838 = vadd.f32 0.0, %v837
      %v839 = vpop.f32.mrb[0].mxu0
      %840 = vmatprep.mubr.bf16.mxu0 0
      %841 = vmatmul.mubr.bf16.gmra.mrb[0].mxu0 %v738
      %v842 = vpop.f32.mrb[0].mxu0
      %v843 = vadd.f32 0.0, %v842
      %v844 = vpop.f32.mrb[0].mxu0
      %v845 = vpop.f32.mrb[0].mxu0
      %v846 = vadd.f32 0.0, %v845
      %v847 = vpop.f32.mrb[0].mxu0
      %848 = vmatprep.mubr.bf16.mxu0 0
      %849 = vmatmul.mubr.bf16.gmra.mrb[0].mxu0 %v739
      %v850 = vpop.f32.mrb[0].mxu0
      %v851 = vadd.f32 0.0, %v850
      %v852 = vpop.f32.mrb[0].mxu0
      %v853 = vpop.f32.mrb[0].mxu0
      %v854 = vadd.f32 0.0, %v853
      %v855 = vpop.f32.mrb[0].mxu0
      %856 = vdwg.mxu0
      %v865 = vunpack.c.l.b16 %v564
      %v866 = vunpack.c.l.b16 %v565
      %v867 = vunpack.c.l.b16 %v566
      %v868 = vunpack.c.l.b16 %v567
      %v869 = vunpack.c.l.b16 %v568
      %v870 = vunpack.c.l.b16 %v569
      %v871 = vunpack.c.l.b16 %v570
      %v872 = vunpack.c.l.b16 %v571
      %v873 = vpack.c.b16 %v866, %v865
      %v874 = vpack.c.b16 %v868, %v867
      %v875 = vpack.c.b16 %v870, %v869
      %v876 = vpack.c.b16 %v872, %v871
      %v897 = vunpack.c.l.b16 %v572
      %v898 = vunpack.c.l.b16 %v573
      %v899 = vunpack.c.l.b16 %v574
      %v900 = vunpack.c.l.b16 %v575
      %v901 = vunpack.c.l.b16 %v576
      %v902 = vunpack.c.l.b16 %v577
      %v903 = vunpack.c.l.b16 %v578
      %v904 = vunpack.c.l.b16 %v579
      %v905 = vunpack.c.l.b16 %v580
      %v906 = vunpack.c.l.b16 %v581
      %v907 = vunpack.c.l.b16 %v582
      %v908 = vunpack.c.l.b16 %v583
      %v909 = vunpack.c.l.b16 %v584
      %v910 = vunpack.c.l.b16 %v585
      %v911 = vunpack.c.l.b16 %v586
      %v912 = vunpack.c.l.b16 %v587
      %v913 = vpack.c.b16 %v898, %v897
      %v914 = vpack.c.b16 %v900, %v899
      %v915 = vpack.c.b16 %v902, %v901
      %v916 = vpack.c.b16 %v904, %v903
      %v917 = vpack.c.b16 %v906, %v905
      %v918 = vpack.c.b16 %v908, %v907
      %v919 = vpack.c.b16 %v910, %v909
      %v920 = vpack.c.b16 %v912, %v911
      %929 = vmatprep.subr.bf16.mxu0 0
      %930 = vmatpush1.bf16.msra.mxu0 %v913
      %931 = vmatprep.subr.bf16.mxu0 0
      %932 = vmatpush1.bf16.msra.mxu0 %v914
      %933 = vmatprep.subr.bf16.mxu0 0
      %934 = vmatpush1.bf16.msra.mxu0 %v915
      %935 = vmatprep.subr.bf16.mxu0 0
      %936 = vmatpush1.bf16.msra.mxu0 %v916
      %937 = vmatprep.subr.bf16.mxu0 0
      %938 = vmatpush1.bf16.msra.mxu0 %v917
      %939 = vmatprep.subr.bf16.mxu0 0
      %940 = vmatpush1.bf16.msra.mxu0 %v918
      %941 = vmatprep.subr.bf16.mxu0 0
      %942 = vmatpush1.bf16.msra.mxu0 %v919
      %943 = vmatprep.subr.bf16.mxu0 0
      %944 = vmatpush1.bf16.msra.mxu0 %v920
      %945 = vmatprep.subr.bf16.mxu0 0
      %946 = vmatpush1.bf16.msra.mxu0 0
      %947 = vmatprep.subr.bf16.mxu0 0
      %948 = vmatpush1.bf16.msra.mxu0 0
      %949 = vmatprep.subr.bf16.mxu0 0
      %950 = vmatpush1.bf16.msra.mxu0 0
      %951 = vmatprep.subr.bf16.mxu0 0
      %952 = vmatpush1.bf16.msra.mxu0 0
      %953 = vmatprep.subr.bf16.mxu0 0
      %954 = vmatpush1.bf16.msra.mxu0 0
      %955 = vmatprep.subr.bf16.mxu0 0
      %956 = vmatpush1.bf16.msra.mxu0 0
      %957 = vmatprep.subr.bf16.mxu0 0
      %958 = vmatpush1.bf16.msra.mxu0 0
      %959 = vmatprep.subr.bf16.mxu0 0
      %960 = vmatpush1.bf16.msra.mxu0 0
      %961 = vmatprep.mubr.bf16.mxu0 0
      %962 = vmatmul.mubr.bf16.gmra.mrb[0].mxu0 %v873
      %v963 = vpop.f32.mrb[0].mxu0
      %v964 = vadd.f32 %v827, %v963
      %v965 = vpop.f32.mrb[0].mxu0
      %v966 = vpop.f32.mrb[0].mxu0
      %v967 = vadd.f32 %v830, %v966
      %v968 = vpop.f32.mrb[0].mxu0
      %969 = vmatprep.mubr.bf16.mxu0 0
      %970 = vmatmul.mubr.bf16.gmra.mrb[0].mxu0 %v874
      %v971 = vpop.f32.mrb[0].mxu0
      %v972 = vadd.f32 %v835, %v971
      %v973 = vpop.f32.mrb[0].mxu0
      %v974 = vpop.f32.mrb[0].mxu0
      %v975 = vadd.f32 %v838, %v974
      %v976 = vpop.f32.mrb[0].mxu0
      %977 = vmatprep.mubr.bf16.mxu0 0
      %978 = vmatmul.mubr.bf16.gmra.mrb[0].mxu0 %v875
      %v979 = vpop.f32.mrb[0].mxu0
      %v980 = vadd.f32 %v843, %v979
      %v981 = vpop.f32.mrb[0].mxu0
      %v982 = vpop.f32.mrb[0].mxu0
      %v983 = vadd.f32 %v846, %v982
      %v984 = vpop.f32.mrb[0].mxu0
      %985 = vmatprep.mubr.bf16.mxu0 0
      %986 = vmatmul.mubr.bf16.gmra.mrb[0].mxu0 %v876
      %v987 = vpop.f32.mrb[0].mxu0
      %v988 = vadd.f32 %v851, %v987
      %v989 = vpop.f32.mrb[0].mxu0
      %v990 = vpop.f32.mrb[0].mxu0
      %v991 = vadd.f32 %v854, %v990
      %v992 = vpop.f32.mrb[0].mxu0
      %993 = vdwg.mxu0
      %v994 = vld [vmem:[#allocation2] sm:$0xe]
      %v995 = vld [vmem:[#allocation2 + $0x8] sm:$0xe]
      %v996 = vld [vmem:[#allocation2 + $0x10] sm:$0xe]
      %v997 = vld [vmem:[#allocation2 + $0x18] sm:$0xe]
      %v998 = vld [vmem:[#allocation2 + $0x20] sm:$0xe]
      %v999 = vld [vmem:[#allocation2 + $0x28] sm:$0xe]
      %v1000 = vld [vmem:[#allocation2 + $0x30] sm:$0xe]
      %v1001 = vld [vmem:[#allocation2 + $0x38] sm:$0xe]
      %vm1018 = vcmask 1042432
      %vm1019 = vcmask 1046532
      %vm1020 = vmor %vm1018, %vm1019
      %v1021 = vrot.slane %v994, 5
      %v1022 = vrot.slane %v1021, 4
      %v1023 = vrot.slane %v588, 5
      %v1024 = vsel %vm1020, %v1022, %v1023
      %v1025 = vrot.slane %v995, 5
      %v1026 = vrot.slane %v1025, 4
      %v1027 = vrot.slane %v589, 5
      %v1028 = vsel %vm1020, %v1026, %v1027
      %v1029 = vrot.slane %v996, 5
      %v1030 = vrot.slane %v1029, 4
      %v1031 = vrot.slane %v590, 5
      %v1032 = vsel %vm1020, %v1030, %v1031
      %v1033 = vrot.slane %v997, 5
      %v1034 = vrot.slane %v1033, 4
      %v1035 = vrot.slane %v591, 5
      %v1036 = vsel %vm1020, %v1034, %v1035
      %v1037 = vrot.slane %v998, 5
      %v1038 = vrot.slane %v1037, 4
      %v1039 = vrot.slane %v592, 5
      %v1040 = vsel %vm1020, %v1038, %v1039
      %v1041 = vrot.slane %v999, 5
      %v1042 = vrot.slane %v1041, 4
      %v1043 = vrot.slane %v593, 5
      %v1044 = vsel %vm1020, %v1042, %v1043
      %v1045 = vrot.slane %v1000, 5
      %v1046 = vrot.slane %v1045, 4
      %v1047 = vrot.slane %v594, 5
      %v1048 = vsel %vm1020, %v1046, %v1047
      %v1049 = vrot.slane %v1001, 5
      %v1050 = vrot.slane %v1049, 4
      %v1051 = vrot.slane %v595, 5
      %v1052 = vsel %vm1020, %v1050, %v1051
      %s1053 = scalar_lea.vmem %s3, 128
      %v1054 = vld [vmem:[%s1053] sm:$0xf]
      %v1055 = vld [vmem:[%s1053 + $0x4] sm:$0xf]
      %v1056 = vld [vmem:[%s1053 + $0x8] sm:$0xf]
      %v1057 = vld [vmem:[%s1053 + $0xc] sm:$0xf]
      %v1058 = vld [vmem:[%s1053 + $0x10] sm:$0xf]
      %v1059 = vld [vmem:[%s1053 + $0x14] sm:$0xf]
      %v1060 = vld [vmem:[%s1053 + $0x18] sm:$0xf]
      %v1061 = vld [vmem:[%s1053 + $0x1c] sm:$0xf]
      %v1062 = vld [vmem:[%s1053 + $0x20] sm:$0xf]
      %v1063 = vld [vmem:[%s1053 + $0x24] sm:$0xf]
      %v1064 = vld [vmem:[%s1053 + $0x28] sm:$0xf]
      %v1065 = vld [vmem:[%s1053 + $0x2c] sm:$0xf]
      %v1066 = vld [vmem:[%s1053 + $0x30] sm:$0xf]
      %v1067 = vld [vmem:[%s1053 + $0x34] sm:$0xf]
      %v1068 = vld [vmem:[%s1053 + $0x38] sm:$0xf]
      %v1069 = vld [vmem:[%s1053 + $0x3c] sm:$0xf]
      %v1070 = vunpack.c.l.b16 %v1024
      %v1071 = vunpack.c.l.b16 %v1028
      %v1072 = vunpack.c.l.b16 %v1032
      %v1073 = vunpack.c.l.b16 %v1036
      %v1074 = vunpack.c.l.b16 %v1040
      %v1075 = vunpack.c.l.b16 %v1044
      %v1076 = vunpack.c.l.b16 %v1048
      %v1077 = vunpack.c.l.b16 %v1052
      %v1078 = vpack.c.b16 %v1071, %v1070
      %v1079 = vpack.c.b16 %v1073, %v1072
      %v1080 = vpack.c.b16 %v1075, %v1074
      %v1081 = vpack.c.b16 %v1077, %v1076
      %v1102 = vunpack.c.l.b16 %v1054
      %v1103 = vunpack.c.l.b16 %v1055
      %v1104 = vunpack.c.l.b16 %v1056
      %v1105 = vunpack.c.l.b16 %v1057
      %v1106 = vunpack.c.l.b16 %v1058
      %v1107 = vunpack.c.l.b16 %v1059
      %v1108 = vunpack.c.l.b16 %v1060
      %v1109 = vunpack.c.l.b16 %v1061
      %v1110 = vunpack.c.l.b16 %v1062
      %v1111 = vunpack.c.l.b16 %v1063
      %v1112 = vunpack.c.l.b16 %v1064
      %v1113 = vunpack.c.l.b16 %v1065
      %v1114 = vunpack.c.l.b16 %v1066
      %v1115 = vunpack.c.l.b16 %v1067
      %v1116 = vunpack.c.l.b16 %v1068
      %v1117 = vunpack.c.l.b16 %v1069
      %v1118 = vpack.c.b16 %v1103, %v1102
      %v1119 = vpack.c.b16 %v1105, %v1104
      %v1120 = vpack.c.b16 %v1107, %v1106
      %v1121 = vpack.c.b16 %v1109, %v1108
      %v1122 = vpack.c.b16 %v1111, %v1110
      %v1123 = vpack.c.b16 %v1113, %v1112
      %v1124 = vpack.c.b16 %v1115, %v1114
      %v1125 = vpack.c.b16 %v1117, %v1116
      %1134 = vmatprep.subr.bf16.mxu0 0
      %1135 = vmatpush1.bf16.msra.mxu0 %v1118
      %1136 = vmatprep.subr.bf16.mxu0 0
      %1137 = vmatpush1.bf16.msra.mxu0 %v1119
      %1138 = vmatprep.subr.bf16.mxu0 0
      %1139 = vmatpush1.bf16.msra.mxu0 %v1120
      %1140 = vmatprep.subr.bf16.mxu0 0
      %1141 = vmatpush1.bf16.msra.mxu0 %v1121
      %1142 = vmatprep.subr.bf16.mxu0 0
      %1143 = vmatpush1.bf16.msra.mxu0 %v1122
      %1144 = vmatprep.subr.bf16.mxu0 0
      %1145 = vmatpush1.bf16.msra.mxu0 %v1123
      %1146 = vmatprep.subr.bf16.mxu0 0
      %1147 = vmatpush1.bf16.msra.mxu0 %v1124
      %1148 = vmatprep.subr.bf16.mxu0 0
      %1149 = vmatpush1.bf16.msra.mxu0 %v1125
      %1150 = vmatprep.subr.bf16.mxu0 0
      %1151 = vmatpush1.bf16.msra.mxu0 0
      %1152 = vmatprep.subr.bf16.mxu0 0
      %1153 = vmatpush1.bf16.msra.mxu0 0
      %1154 = vmatprep.subr.bf16.mxu0 0
      %1155 = vmatpush1.bf16.msra.mxu0 0
      %1156 = vmatprep.subr.bf16.mxu0 0
      %1157 = vmatpush1.bf16.msra.mxu0 0
      %1158 = vmatprep.subr.bf16.mxu0 0
      %1159 = vmatpush1.bf16.msra.mxu0 0
      %1160 = vmatprep.subr.bf16.mxu0 0
      %1161 = vmatpush1.bf16.msra.mxu0 0
      %1162 = vmatprep.subr.bf16.mxu0 0
      %1163 = vmatpush1.bf16.msra.mxu0 0
      %1164 = vmatprep.subr.bf16.mxu0 0
      %1165 = vmatpush1.bf16.msra.mxu0 0
      %1166 = vmatprep.mubr.bf16.mxu0 0
      %1167 = vmatmul.mubr.bf16.gmra.mrb[0].mxu0 %v1078
      %v1168 = vpop.f32.mrb[0].mxu0
      %v1169 = vadd.f32 0.0, %v1168
      %v1170 = vpop.f32.mrb[0].mxu0
      %v1171 = vpop.f32.mrb[0].mxu0
      %v1172 = vadd.f32 0.0, %v1171
      %v1173 = vpop.f32.mrb[0].mxu0
      %1174 = vmatprep.mubr.bf16.mxu0 0
      %1175 = vmatmul.mubr.bf16.gmra.mrb[0].mxu0 %v1079
      %v1176 = vpop.f32.mrb[0].mxu0
      %v1177 = vadd.f32 0.0, %v1176
      %v1178 = vpop.f32.mrb[0].mxu0
      %v1179 = vpop.f32.mrb[0].mxu0
      %v1180 = vadd.f32 0.0, %v1179
      %v1181 = vpop.f32.mrb[0].mxu0
      %1182 = vmatprep.mubr.bf16.mxu0 0
      %1183 = vmatmul.mubr.bf16.gmra.mrb[0].mxu0 %v1080
      %v1184 = vpop.f32.mrb[0].mxu0
      %v1185 = vadd.f32 0.0, %v1184
      %v1186 = vpop.f32.mrb[0].mxu0
      %v1187 = vpop.f32.mrb[0].mxu0
      %v1188 = vadd.f32 0.0, %v1187
      %v1189 = vpop.f32.mrb[0].mxu0
      %1190 = vmatprep.mubr.bf16.mxu0 0
      %1191 = vmatmul.mubr.bf16.gmra.mrb[0].mxu0 %v1081
      %v1192 = vpop.f32.mrb[0].mxu0
      %v1193 = vadd.f32 0.0, %v1192
      %v1194 = vpop.f32.mrb[0].mxu0
      %v1195 = vpop.f32.mrb[0].mxu0
      %v1196 = vadd.f32 0.0, %v1195
      %v1197 = vpop.f32.mrb[0].mxu0
      %1198 = vdwg.mxu0
      %v1199 = vadd.f32 %v964, %v1169
      %v1200 = vadd.f32 %v967, %v1172
      %v1201 = vadd.f32 %v972, %v1177
      %v1202 = vadd.f32 %v975, %v1180
      %v1203 = vadd.f32 %v980, %v1185
      %v1204 = vadd.f32 %v983, %v1188
      %v1205 = vadd.f32 %v988, %v1193
      %v1206 = vadd.f32 %v991, %v1196
      %v1207 = vld [vmem:[%s356] sm:$0xf]
      %v1208 = vld [vmem:[%s356 + $0x8] sm:$0xf]
      %v1209 = vld [vmem:[%s356 + $0x10] sm:$0xf]
      %v1210 = vld [vmem:[%s356 + $0x18] sm:$0xf]
      %v1211 = vld [vmem:[%s356 + $0x20] sm:$0xf]
      %v1212 = vld [vmem:[%s356 + $0x28] sm:$0xf]
      %v1213 = vld [vmem:[%s356 + $0x30] sm:$0xf]
      %v1214 = vld [vmem:[%s356 + $0x38] sm:$0xf]
      %s1215 = scalar_lea.vmem %s3, 192
      %v1216 = vld [vmem:[%s1215] sm:$0xf]
      %v1217 = vld [vmem:[%s1215 + $0x4] sm:$0xf]
      %v1218 = vld [vmem:[%s1215 + $0x8] sm:$0xf]
      %v1219 = vld [vmem:[%s1215 + $0xc] sm:$0xf]
      %v1220 = vld [vmem:[%s1215 + $0x10] sm:$0xf]
      %v1221 = vld [vmem:[%s1215 + $0x14] sm:$0xf]
      %v1222 = vld [vmem:[%s1215 + $0x18] sm:$0xf]
      %v1223 = vld [vmem:[%s1215 + $0x1c] sm:$0xf]
      %v1224 = vld [vmem:[%s1215 + $0x20] sm:$0xf]
      %v1225 = vld [vmem:[%s1215 + $0x24] sm:$0xf]
      %v1226 = vld [vmem:[%s1215 + $0x28] sm:$0xf]
      %v1227 = vld [vmem:[%s1215 + $0x2c] sm:$0xf]
      %v1228 = vld [vmem:[%s1215 + $0x30] sm:$0xf]
      %v1229 = vld [vmem:[%s1215 + $0x34] sm:$0xf]
      %v1230 = vld [vmem:[%s1215 + $0x38] sm:$0xf]
      %v1231 = vld [vmem:[%s1215 + $0x3c] sm:$0xf]
      %v1240 = vunpack.c.l.b16 %v1207
      %v1241 = vunpack.c.l.b16 %v1208
      %v1242 = vunpack.c.l.b16 %v1209
      %v1243 = vunpack.c.l.b16 %v1210
      %v1244 = vunpack.c.l.b16 %v1211
      %v1245 = vunpack.c.l.b16 %v1212
      %v1246 = vunpack.c.l.b16 %v1213
      %v1247 = vunpack.c.l.b16 %v1214
      %v1248 = vpack.c.b16 %v1241, %v1240
      %v1249 = vpack.c.b16 %v1243, %v1242
      %v1250 = vpack.c.b16 %v1245, %v1244
      %v1251 = vpack.c.b16 %v1247, %v1246
      %v1272 = vunpack.c.l.b16 %v1216
      %v1273 = vunpack.c.l.b16 %v1217
      %v1274 = vunpack.c.l.b16 %v1218
      %v1275 = vunpack.c.l.b16 %v1219
      %v1276 = vunpack.c.l.b16 %v1220
      %v1277 = vunpack.c.l.b16 %v1221
      %v1278 = vunpack.c.l.b16 %v1222
      %v1279 = vunpack.c.l.b16 %v1223
      %v1280 = vunpack.c.l.b16 %v1224
      %v1281 = vunpack.c.l.b16 %v1225
      %v1282 = vunpack.c.l.b16 %v1226
      %v1283 = vunpack.c.l.b16 %v1227
      %v1284 = vunpack.c.l.b16 %v1228
      %v1285 = vunpack.c.l.b16 %v1229
      %v1286 = vunpack.c.l.b16 %v1230
      %v1287 = vunpack.c.l.b16 %v1231
      %v1288 = vpack.c.b16 %v1273, %v1272
      %v1289 = vpack.c.b16 %v1275, %v1274
      %v1290 = vpack.c.b16 %v1277, %v1276
      %v1291 = vpack.c.b16 %v1279, %v1278
      %v1292 = vpack.c.b16 %v1281, %v1280
      %v1293 = vpack.c.b16 %v1283, %v1282
      %v1294 = vpack.c.b16 %v1285, %v1284
      %v1295 = vpack.c.b16 %v1287, %v1286
      %1304 = vmatprep.subr.bf16.mxu0 0
      %1305 = vmatpush1.bf16.msra.mxu0 %v1288
      %1306 = vmatprep.subr.bf16.mxu0 0
      %1307 = vmatpush1.bf16.msra.mxu0 %v1289
      %1308 = vmatprep.subr.bf16.mxu0 0
      %1309 = vmatpush1.bf16.msra.mxu0 %v1290
      %1310 = vmatprep.subr.bf16.mxu0 0
      %1311 = vmatpush1.bf16.msra.mxu0 %v1291
      %1312 = vmatprep.subr.bf16.mxu0 0
      %1313 = vmatpush1.bf16.msra.mxu0 %v1292
      %1314 = vmatprep.subr.bf16.mxu0 0
      %1315 = vmatpush1.bf16.msra.mxu0 %v1293
      %1316 = vmatprep.subr.bf16.mxu0 0
      %1317 = vmatpush1.bf16.msra.mxu0 %v1294
      %1318 = vmatprep.subr.bf16.mxu0 0
      %1319 = vmatpush1.bf16.msra.mxu0 %v1295
      %1320 = vmatprep.subr.bf16.mxu0 0
      %1321 = vmatpush1.bf16.msra.mxu0 0
      %1322 = vmatprep.subr.bf16.mxu0 0
      %1323 = vmatpush1.bf16.msra.mxu0 0
      %1324 = vmatprep.subr.bf16.mxu0 0
      %1325 = vmatpush1.bf16.msra.mxu0 0
      %1326 = vmatprep.subr.bf16.mxu0 0
      %1327 = vmatpush1.bf16.msra.mxu0 0
      %1328 = vmatprep.subr.bf16.mxu0 0
      %1329 = vmatpush1.bf16.msra.mxu0 0
      %1330 = vmatprep.subr.bf16.mxu0 0
      %1331 = vmatpush1.bf16.msra.mxu0 0
      %1332 = vmatprep.subr.bf16.mxu0 0
      %1333 = vmatpush1.bf16.msra.mxu0 0
      %1334 = vmatprep.subr.bf16.mxu0 0
      %1335 = vmatpush1.bf16.msra.mxu0 0
      %1336 = vmatprep.mubr.bf16.mxu0 0
      %1337 = vmatmul.mubr.bf16.gmra.mrb[0].mxu0 %v1248
      %v1338 = vpop.f32.mrb[0].mxu0
      %v1339 = vadd.f32 0.0, %v1338
      %v1340 = vpop.f32.mrb[0].mxu0
      %v1341 = vpop.f32.mrb[0].mxu0
      %v1342 = vadd.f32 0.0, %v1341
      %v1343 = vpop.f32.mrb[0].mxu0
      %1344 = vmatprep.mubr.bf16.mxu0 0
      %1345 = vmatmul.mubr.bf16.gmra.mrb[0].mxu0 %v1249
      %v1346 = vpop.f32.mrb[0].mxu0
      %v1347 = vadd.f32 0.0, %v1346
      %v1348 = vpop.f32.mrb[0].mxu0
      %v1349 = vpop.f32.mrb[0].mxu0
      %v1350 = vadd.f32 0.0, %v1349
      %v1351 = vpop.f32.mrb[0].mxu0
      %1352 = vmatprep.mubr.bf16.mxu0 0
      %1353 = vmatmul.mubr.bf16.gmra.mrb[0].mxu0 %v1250
      %v1354 = vpop.f32.mrb[0].mxu0
      %v1355 = vadd.f32 0.0, %v1354
      %v1356 = vpop.f32.mrb[0].mxu0
      %v1357 = vpop.f32.mrb[0].mxu0
      %v1358 = vadd.f32 0.0, %v1357
      %v1359 = vpop.f32.mrb[0].mxu0
      %1360 = vmatprep.mubr.bf16.mxu0 0
      %1361 = vmatmul.mubr.bf16.gmra.mrb[0].mxu0 %v1251
      %v1362 = vpop.f32.mrb[0].mxu0
      %v1363 = vadd.f32 0.0, %v1362
      %v1364 = vpop.f32.mrb[0].mxu0
      %v1365 = vpop.f32.mrb[0].mxu0
      %v1366 = vadd.f32 0.0, %v1365
      %v1367 = vpop.f32.mrb[0].mxu0
      %1368 = vdwg.mxu0
      %v1369 = vadd.f32 %v1199, %v1339
      %v1370 = vadd.f32 %v1200, %v1342
      %v1371 = vadd.f32 %v1201, %v1347
      %v1372 = vadd.f32 %v1202, %v1350
      %v1373 = vadd.f32 %v1203, %v1355
      %v1374 = vadd.f32 %v1204, %v1358
      %v1375 = vadd.f32 %v1205, %v1363
      %v1376 = vadd.f32 %v1206, %v1366
      %v1377 = vld [vmem:[%s356] sm:$0xf]
      %v1378 = vld [vmem:[%s356 + $0x4] sm:$0x1]
      %v1379 = vld [vmem:[%s356 + $0x8] sm:$0xf]
      %v1380 = vld [vmem:[%s356 + $0xc] sm:$0x1]
      %v1381 = vld [vmem:[%s356 + $0x10] sm:$0xf]
      %v1382 = vld [vmem:[%s356 + $0x14] sm:$0x1]
      %v1383 = vld [vmem:[%s356 + $0x18] sm:$0xf]
      %v1384 = vld [vmem:[%s356 + $0x1c] sm:$0x1]
      %v1385 = vld [vmem:[%s356 + $0x20] sm:$0xf]
      %v1386 = vld [vmem:[%s356 + $0x24] sm:$0x1]
      %v1387 = vld [vmem:[%s356 + $0x28] sm:$0xf]
      %v1388 = vld [vmem:[%s356 + $0x2c] sm:$0x1]
      %v1389 = vld [vmem:[%s356 + $0x30] sm:$0xf]
      %v1390 = vld [vmem:[%s356 + $0x34] sm:$0x1]
      %v1391 = vld [vmem:[%s356 + $0x38] sm:$0xf]
      %v1392 = vld [vmem:[%s356 + $0x3c] sm:$0x1]
      %v1394 = vshrl.u32 %v1377, 16
      %v1396 = vrot.slane %v1394, 4
      %v1397 = vshll.u32 %v1377, 16
      %v1399 = vrot.slane %v1397, 5
      %v1400 = vor.u32 %v1396, %v1399
      %v1401 = vrot.slane %v1400, 4
      %v1403 = vshll.u32 %v1378, 16
      %v1405 = vrot.slane %v1403, 5
      %v1406 = vsel %vm598, %v1401, %v1405
      %v1408 = vshrl.u32 %v1379, 16
      %v1410 = vrot.slane %v1408, 4
      %v1411 = vshll.u32 %v1379, 16
      %v1413 = vrot.slane %v1411, 5
      %v1414 = vor.u32 %v1410, %v1413
      %v1415 = vrot.slane %v1414, 4
      %v1417 = vshll.u32 %v1380, 16
      %v1419 = vrot.slane %v1417, 5
      %v1420 = vsel %vm598, %v1415, %v1419
      %v1422 = vshrl.u32 %v1381, 16
      %v1424 = vrot.slane %v1422, 4
      %v1425 = vshll.u32 %v1381, 16
      %v1427 = vrot.slane %v1425, 5
      %v1428 = vor.u32 %v1424, %v1427
      %v1429 = vrot.slane %v1428, 4
      %v1431 = vshll.u32 %v1382, 16
      %v1433 = vrot.slane %v1431, 5
      %v1434 = vsel %vm598, %v1429, %v1433
      %v1436 = vshrl.u32 %v1383, 16
      %v1438 = vrot.slane %v1436, 4
      %v1439 = vshll.u32 %v1383, 16
      %v1441 = vrot.slane %v1439, 5
      %v1442 = vor.u32 %v1438, %v1441
      %v1443 = vrot.slane %v1442, 4
      %v1445 = vshll.u32 %v1384, 16
      %v1447 = vrot.slane %v1445, 5
      %v1448 = vsel %vm598, %v1443, %v1447
      %v1450 = vshrl.u32 %v1385, 16
      %v1452 = vrot.slane %v1450, 4
      %v1453 = vshll.u32 %v1385, 16
      %v1455 = vrot.slane %v1453, 5
      %v1456 = vor.u32 %v1452, %v1455
      %v1457 = vrot.slane %v1456, 4
      %v1459 = vshll.u32 %v1386, 16
      %v1461 = vrot.slane %v1459, 5
      %v1462 = vsel %vm598, %v1457, %v1461
      %v1464 = vshrl.u32 %v1387, 16
      %v1466 = vrot.slane %v1464, 4
      %v1467 = vshll.u32 %v1387, 16
      %v1469 = vrot.slane %v1467, 5
      %v1470 = vor.u32 %v1466, %v1469
      %v1471 = vrot.slane %v1470, 4
      %v1473 = vshll.u32 %v1388, 16
      %v1475 = vrot.slane %v1473, 5
      %v1476 = vsel %vm598, %v1471, %v1475
      %v1478 = vshrl.u32 %v1389, 16
      %v1480 = vrot.slane %v1478, 4
      %v1481 = vshll.u32 %v1389, 16
      %v1483 = vrot.slane %v1481, 5
      %v1484 = vor.u32 %v1480, %v1483
      %v1485 = vrot.slane %v1484, 4
      %v1487 = vshll.u32 %v1390, 16
      %v1489 = vrot.slane %v1487, 5
      %v1490 = vsel %vm598, %v1485, %v1489
      %v1492 = vshrl.u32 %v1391, 16
      %v1494 = vrot.slane %v1492, 4
      %v1495 = vshll.u32 %v1391, 16
      %v1497 = vrot.slane %v1495, 5
      %v1498 = vor.u32 %v1494, %v1497
      %v1499 = vrot.slane %v1498, 4
      %v1501 = vshll.u32 %v1392, 16
      %v1503 = vrot.slane %v1501, 5
      %v1504 = vsel %vm598, %v1499, %v1503
      %s1505 = scalar_lea.vmem %s3, 256
      %v1506 = vld [vmem:[%s1505] sm:$0xf]
      %v1507 = vld [vmem:[%s1505 + $0x4] sm:$0xf]
      %v1508 = vld [vmem:[%s1505 + $0x8] sm:$0xf]
      %v1509 = vld [vmem:[%s1505 + $0xc] sm:$0xf]
      %v1510 = vld [vmem:[%s1505 + $0x10] sm:$0xf]
      %v1511 = vld [vmem:[%s1505 + $0x14] sm:$0xf]
      %v1512 = vld [vmem:[%s1505 + $0x18] sm:$0xf]
      %v1513 = vld [vmem:[%s1505 + $0x1c] sm:$0xf]
      %v1514 = vld [vmem:[%s1505 + $0x20] sm:$0xf]
      %v1515 = vld [vmem:[%s1505 + $0x24] sm:$0xf]
      %v1516 = vld [vmem:[%s1505 + $0x28] sm:$0xf]
      %v1517 = vld [vmem:[%s1505 + $0x2c] sm:$0xf]
      %v1518 = vld [vmem:[%s1505 + $0x30] sm:$0xf]
      %v1519 = vld [vmem:[%s1505 + $0x34] sm:$0xf]
      %v1520 = vld [vmem:[%s1505 + $0x38] sm:$0xf]
      %v1521 = vld [vmem:[%s1505 + $0x3c] sm:$0xf]
      %v1522 = vunpack.c.l.b16 %v1406
      %v1523 = vunpack.c.l.b16 %v1420
      %v1524 = vunpack.c.l.b16 %v1434
      %v1525 = vunpack.c.l.b16 %v1448
      %v1526 = vunpack.c.l.b16 %v1462
      %v1527 = vunpack.c.l.b16 %v1476
      %v1528 = vunpack.c.l.b16 %v1490
      %v1529 = vunpack.c.l.b16 %v1504
      %v1530 = vpack.c.b16 %v1523, %v1522
      %v1531 = vpack.c.b16 %v1525, %v1524
      %v1532 = vpack.c.b16 %v1527, %v1526
      %v1533 = vpack.c.b16 %v1529, %v1528
      %v1554 = vunpack.c.l.b16 %v1506
      %v1555 = vunpack.c.l.b16 %v1507
      %v1556 = vunpack.c.l.b16 %v1508
      %v1557 = vunpack.c.l.b16 %v1509
      %v1558 = vunpack.c.l.b16 %v1510
      %v1559 = vunpack.c.l.b16 %v1511
      %v1560 = vunpack.c.l.b16 %v1512
      %v1561 = vunpack.c.l.b16 %v1513
      %v1562 = vunpack.c.l.b16 %v1514
      %v1563 = vunpack.c.l.b16 %v1515
      %v1564 = vunpack.c.l.b16 %v1516
      %v1565 = vunpack.c.l.b16 %v1517
      %v1566 = vunpack.c.l.b16 %v1518
      %v1567 = vunpack.c.l.b16 %v1519
      %v1568 = vunpack.c.l.b16 %v1520
      %v1569 = vunpack.c.l.b16 %v1521
      %v1570 = vpack.c.b16 %v1555, %v1554
      %v1571 = vpack.c.b16 %v1557, %v1556
      %v1572 = vpack.c.b16 %v1559, %v1558
      %v1573 = vpack.c.b16 %v1561, %v1560
      %v1574 = vpack.c.b16 %v1563, %v1562
      %v1575 = vpack.c.b16 %v1565, %v1564
      %v1576 = vpack.c.b16 %v1567, %v1566
      %v1577 = vpack.c.b16 %v1569, %v1568
      %1586 = vmatprep.subr.bf16.mxu0 0
      %1587 = vmatpush1.bf16.msra.mxu0 %v1570
      %1588 = vmatprep.subr.bf16.mxu0 0
      %1589 = vmatpush1.bf16.msra.mxu0 %v1571
      %1590 = vmatprep.subr.bf16.mxu0 0
      %1591 = vmatpush1.bf16.msra.mxu0 %v1572
      %1592 = vmatprep.subr.bf16.mxu0 0
      %1593 = vmatpush1.bf16.msra.mxu0 %v1573
      %1594 = vmatprep.subr.bf16.mxu0 0
      %1595 = vmatpush1.bf16.msra.mxu0 %v1574
      %1596 = vmatprep.subr.bf16.mxu0 0
      %1597 = vmatpush1.bf16.msra.mxu0 %v1575
      %1598 = vmatprep.subr.bf16.mxu0 0
      %1599 = vmatpush1.bf16.msra.mxu0 %v1576
      %1600 = vmatprep.subr.bf16.mxu0 0
      %1601 = vmatpush1.bf16.msra.mxu0 %v1577
      %1602 = vmatprep.subr.bf16.mxu0 0
      %1603 = vmatpush1.bf16.msra.mxu0 0
      %1604 = vmatprep.subr.bf16.mxu0 0
      %1605 = vmatpush1.bf16.msra.mxu0 0
      %1606 = vmatprep.subr.bf16.mxu0 0
      %1607 = vmatpush1.bf16.msra.mxu0 0
      %1608 = vmatprep.subr.bf16.mxu0 0
      %1609 = vmatpush1.bf16.msra.mxu0 0
      %1610 = vmatprep.subr.bf16.mxu0 0
      %1611 = vmatpush1.bf16.msra.mxu0 0
      %1612 = vmatprep.subr.bf16.mxu0 0
      %1613 = vmatpush1.bf16.msra.mxu0 0
      %1614 = vmatprep.subr.bf16.mxu0 0
      %1615 = vmatpush1.bf16.msra.mxu0 0
      %1616 = vmatprep.subr.bf16.mxu0 0
      %1617 = vmatpush1.bf16.msra.mxu0 0
      %1618 = vmatprep.mubr.bf16.mxu0 0
      %1619 = vmatmul.mubr.bf16.gmra.mrb[0].mxu0 %v1530
      %v1620 = vpop.f32.mrb[0].mxu0
      %v1621 = vadd.f32 0.0, %v1620
      %v1622 = vpop.f32.mrb[0].mxu0
      %v1623 = vpop.f32.mrb[0].mxu0
      %v1624 = vadd.f32 0.0, %v1623
      %v1625 = vpop.f32.mrb[0].mxu0
      %1626 = vmatprep.mubr.bf16.mxu0 0
      %1627 = vmatmul.mubr.bf16.gmra.mrb[0].mxu0 %v1531
      %v1628 = vpop.f32.mrb[0].mxu0
      %v1629 = vadd.f32 0.0, %v1628
      %v1630 = vpop.f32.mrb[0].mxu0
      %v1631 = vpop.f32.mrb[0].mxu0
      %v1632 = vadd.f32 0.0, %v1631
      %v1633 = vpop.f32.mrb[0].mxu0
      %1634 = vmatprep.mubr.bf16.mxu0 0
      %1635 = vmatmul.mubr.bf16.gmra.mrb[0].mxu0 %v1532
      %v1636 = vpop.f32.mrb[0].mxu0
      %v1637 = vadd.f32 0.0, %v1636
      %v1638 = vpop.f32.mrb[0].mxu0
      %v1639 = vpop.f32.mrb[0].mxu0
      %v1640 = vadd.f32 0.0, %v1639
      %v1641 = vpop.f32.mrb[0].mxu0
      %1642 = vmatprep.mubr.bf16.mxu0 0
      %1643 = vmatmul.mubr.bf16.gmra.mrb[0].mxu0 %v1533
      %v1644 = vpop.f32.mrb[0].mxu0
      %v1645 = vadd.f32 0.0, %v1644
      %v1646 = vpop.f32.mrb[0].mxu0
      %v1647 = vpop.f32.mrb[0].mxu0
      %v1648 = vadd.f32 0.0, %v1647
      %v1649 = vpop.f32.mrb[0].mxu0
      %1650 = vdwg.mxu0
      %v1651 = vadd.f32 %v1369, %v1621
      %v1652 = vadd.f32 %v1370, %v1624
      %v1653 = vadd.f32 %v1371, %v1629
      %v1654 = vadd.f32 %v1372, %v1632
      %v1655 = vadd.f32 %v1373, %v1637
      %v1656 = vadd.f32 %v1374, %v1640
      %v1657 = vadd.f32 %v1375, %v1645
      %v1658 = vadd.f32 %v1376, %v1648
      %v1659 = vld [vmem:[%s356] sm:$0xe]
      %v1660 = vld [vmem:[%s356 + $0x8] sm:$0xe]
      %v1661 = vld [vmem:[%s356 + $0x10] sm:$0xe]
      %v1662 = vld [vmem:[%s356 + $0x18] sm:$0xe]
      %v1663 = vld [vmem:[%s356 + $0x20] sm:$0xe]
      %v1664 = vld [vmem:[%s356 + $0x28] sm:$0xe]
      %v1665 = vld [vmem:[%s356 + $0x30] sm:$0xe]
      %v1666 = vld [vmem:[%s356 + $0x38] sm:$0xe]
      %v1683 = vrot.slane %v1659, 5
      %v1684 = vrot.slane %v1683, 4
      %v1685 = vrot.slane %v1378, 5
      %v1686 = vsel %vm1020, %v1684, %v1685
      %v1687 = vrot.slane %v1660, 5
      %v1688 = vrot.slane %v1687, 4
      %v1689 = vrot.slane %v1380, 5
      %v1690 = vsel %vm1020, %v1688, %v1689
      %v1691 = vrot.slane %v1661, 5
      %v1692 = vrot.slane %v1691, 4
      %v1693 = vrot.slane %v1382, 5
      %v1694 = vsel %vm1020, %v1692, %v1693
      %v1695 = vrot.slane %v1662, 5
      %v1696 = vrot.slane %v1695, 4
      %v1697 = vrot.slane %v1384, 5
      %v1698 = vsel %vm1020, %v1696, %v1697
      %v1699 = vrot.slane %v1663, 5
      %v1700 = vrot.slane %v1699, 4
      %v1701 = vrot.slane %v1386, 5
      %v1702 = vsel %vm1020, %v1700, %v1701
      %v1703 = vrot.slane %v1664, 5
      %v1704 = vrot.slane %v1703, 4
      %v1705 = vrot.slane %v1388, 5
      %v1706 = vsel %vm1020, %v1704, %v1705
      %v1707 = vrot.slane %v1665, 5
      %v1708 = vrot.slane %v1707, 4
      %v1709 = vrot.slane %v1390, 5
      %v1710 = vsel %vm1020, %v1708, %v1709
      %v1711 = vrot.slane %v1666, 5
      %v1712 = vrot.slane %v1711, 4
      %v1713 = vrot.slane %v1392, 5
      %v1714 = vsel %vm1020, %v1712, %v1713
      %s1715 = scalar_lea.vmem %s3, 320
      %v1716 = vld [vmem:[%s1715] sm:$0xf]
      %v1717 = vld [vmem:[%s1715 + $0x4] sm:$0xf]
      %v1718 = vld [vmem:[%s1715 + $0x8] sm:$0xf]
      %v1719 = vld [vmem:[%s1715 + $0xc] sm:$0xf]
      %v1720 = vld [vmem:[%s1715 + $0x10] sm:$0xf]
      %v1721 = vld [vmem:[%s1715 + $0x14] sm:$0xf]
      %v1722 = vld [vmem:[%s1715 + $0x18] sm:$0xf]
      %v1723 = vld [vmem:[%s1715 + $0x1c] sm:$0xf]
      %v1724 = vld [vmem:[%s1715 + $0x20] sm:$0xf]
      %v1725 = vld [vmem:[%s1715 + $0x24] sm:$0xf]
      %v1726 = vld [vmem:[%s1715 + $0x28] sm:$0xf]
      %v1727 = vld [vmem:[%s1715 + $0x2c] sm:$0xf]
      %v1728 = vld [vmem:[%s1715 + $0x30] sm:$0xf]
      %v1729 = vld [vmem:[%s1715 + $0x34] sm:$0xf]
      %v1730 = vld [vmem:[%s1715 + $0x38] sm:$0xf]
      %v1731 = vld [vmem:[%s1715 + $0x3c] sm:$0xf]
      %v1732 = vunpack.c.l.b16 %v1686
      %v1733 = vunpack.c.l.b16 %v1690
      %v1734 = vunpack.c.l.b16 %v1694
      %v1735 = vunpack.c.l.b16 %v1698
      %v1736 = vunpack.c.l.b16 %v1702
      %v1737 = vunpack.c.l.b16 %v1706
      %v1738 = vunpack.c.l.b16 %v1710
      %v1739 = vunpack.c.l.b16 %v1714
      %v1740 = vpack.c.b16 %v1733, %v1732
      %v1741 = vpack.c.b16 %v1735, %v1734
      %v1742 = vpack.c.b16 %v1737, %v1736
      %v1743 = vpack.c.b16 %v1739, %v1738
      %v1764 = vunpack.c.l.b16 %v1716
      %v1765 = vunpack.c.l.b16 %v1717
      %v1766 = vunpack.c.l.b16 %v1718
      %v1767 = vunpack.c.l.b16 %v1719
      %v1768 = vunpack.c.l.b16 %v1720
      %v1769 = vunpack.c.l.b16 %v1721
      %v1770 = vunpack.c.l.b16 %v1722
      %v1771 = vunpack.c.l.b16 %v1723
      %v1772 = vunpack.c.l.b16 %v1724
      %v1773 = vunpack.c.l.b16 %v1725
      %v1774 = vunpack.c.l.b16 %v1726
      %v1775 = vunpack.c.l.b16 %v1727
      %v1776 = vunpack.c.l.b16 %v1728
      %v1777 = vunpack.c.l.b16 %v1729
      %v1778 = vunpack.c.l.b16 %v1730
      %v1779 = vunpack.c.l.b16 %v1731
      %v1780 = vpack.c.b16 %v1765, %v1764
      %v1781 = vpack.c.b16 %v1767, %v1766
      %v1782 = vpack.c.b16 %v1769, %v1768
      %v1783 = vpack.c.b16 %v1771, %v1770
      %v1784 = vpack.c.b16 %v1773, %v1772
      %v1785 = vpack.c.b16 %v1775, %v1774
      %v1786 = vpack.c.b16 %v1777, %v1776
      %v1787 = vpack.c.b16 %v1779, %v1778
      %1796 = vmatprep.subr.bf16.mxu0 0
      %1797 = vmatpush1.bf16.msra.mxu0 %v1780
      %1798 = vmatprep.subr.bf16.mxu0 0
      %1799 = vmatpush1.bf16.msra.mxu0 %v1781
      %1800 = vmatprep.subr.bf16.mxu0 0
      %1801 = vmatpush1.bf16.msra.mxu0 %v1782
      %1802 = vmatprep.subr.bf16.mxu0 0
      %1803 = vmatpush1.bf16.msra.mxu0 %v1783
      %1804 = vmatprep.subr.bf16.mxu0 0
      %1805 = vmatpush1.bf16.msra.mxu0 %v1784
      %1806 = vmatprep.subr.bf16.mxu0 0
      %1807 = vmatpush1.bf16.msra.mxu0 %v1785
      %1808 = vmatprep.subr.bf16.mxu0 0
      %1809 = vmatpush1.bf16.msra.mxu0 %v1786
      %1810 = vmatprep.subr.bf16.mxu0 0
      %1811 = vmatpush1.bf16.msra.mxu0 %v1787
      %1812 = vmatprep.subr.bf16.mxu0 0
      %1813 = vmatpush1.bf16.msra.mxu0 0
      %1814 = vmatprep.subr.bf16.mxu0 0
      %1815 = vmatpush1.bf16.msra.mxu0 0
      %1816 = vmatprep.subr.bf16.mxu0 0
      %1817 = vmatpush1.bf16.msra.mxu0 0
      %1818 = vmatprep.subr.bf16.mxu0 0
      %1819 = vmatpush1.bf16.msra.mxu0 0
      %1820 = vmatprep.subr.bf16.mxu0 0
      %1821 = vmatpush1.bf16.msra.mxu0 0
      %1822 = vmatprep.subr.bf16.mxu0 0
      %1823 = vmatpush1.bf16.msra.mxu0 0
      %1824 = vmatprep.subr.bf16.mxu0 0
      %1825 = vmatpush1.bf16.msra.mxu0 0
      %1826 = vmatprep.subr.bf16.mxu0 0
      %1827 = vmatpush1.bf16.msra.mxu0 0
      %1828 = vmatprep.mubr.bf16.mxu0 0
      %1829 = vmatmul.mubr.bf16.gmra.mrb[0].mxu0 %v1740
      %v1830 = vpop.f32.mrb[0].mxu0
      %v1831 = vadd.f32 0.0, %v1830
      %v1832 = vpop.f32.mrb[0].mxu0
      %v1833 = vpop.f32.mrb[0].mxu0
      %v1834 = vadd.f32 0.0, %v1833
      %v1835 = vpop.f32.mrb[0].mxu0
      %1836 = vmatprep.mubr.bf16.mxu0 0
      %1837 = vmatmul.mubr.bf16.gmra.mrb[0].mxu0 %v1741
      %v1838 = vpop.f32.mrb[0].mxu0
      %v1839 = vadd.f32 0.0, %v1838
      %v1840 = vpop.f32.mrb[0].mxu0
      %v1841 = vpop.f32.mrb[0].mxu0
      %v1842 = vadd.f32 0.0, %v1841
      %v1843 = vpop.f32.mrb[0].mxu0
      %1844 = vmatprep.mubr.bf16.mxu0 0
      %1845 = vmatmul.mubr.bf16.gmra.mrb[0].mxu0 %v1742
      %v1846 = vpop.f32.mrb[0].mxu0
      %v1847 = vadd.f32 0.0, %v1846
      %v1848 = vpop.f32.mrb[0].mxu0
      %v1849 = vpop.f32.mrb[0].mxu0
      %v1850 = vadd.f32 0.0, %v1849
      %v1851 = vpop.f32.mrb[0].mxu0
      %1852 = vmatprep.mubr.bf16.mxu0 0
      %1853 = vmatmul.mubr.bf16.gmra.mrb[0].mxu0 %v1743
      %v1854 = vpop.f32.mrb[0].mxu0
      %v1855 = vadd.f32 0.0, %v1854
      %v1856 = vpop.f32.mrb[0].mxu0
      %v1857 = vpop.f32.mrb[0].mxu0
      %v1858 = vadd.f32 0.0, %v1857
      %v1859 = vpop.f32.mrb[0].mxu0
      %1860 = vdwg.mxu0
      %v1861 = vadd.f32 %v1651, %v1831
      %v1862 = vadd.f32 %v1652, %v1834
      %v1863 = vadd.f32 %v1653, %v1839
      %v1864 = vadd.f32 %v1654, %v1842
      %v1865 = vadd.f32 %v1655, %v1847
      %v1866 = vadd.f32 %v1656, %v1850
      %v1867 = vadd.f32 %v1657, %v1855
      %v1868 = vadd.f32 %v1658, %v1858
      %s1869 = scalar_lea.vmem [#allocation2], 16
      %v1870 = vld [vmem:[%s1869] sm:$0xf]
      %v1871 = vld [vmem:[%s1869 + $0x8] sm:$0xf]
      %v1872 = vld [vmem:[%s1869 + $0x10] sm:$0xf]
      %v1873 = vld [vmem:[%s1869 + $0x18] sm:$0xf]
      %v1874 = vld [vmem:[%s1869 + $0x20] sm:$0xf]
      %v1875 = vld [vmem:[%s1869 + $0x28] sm:$0xf]
      %v1876 = vld [vmem:[%s1869 + $0x30] sm:$0xf]
      %v1877 = vld [vmem:[%s1869 + $0x38] sm:$0xf]
      %s1878 = scalar_lea.vmem %s3, 384
      %v1879 = vld [vmem:[%s1878] sm:$0xf]
      %v1880 = vld [vmem:[%s1878 + $0x4] sm:$0xf]
      %v1881 = vld [vmem:[%s1878 + $0x8] sm:$0xf]
      %v1882 = vld [vmem:[%s1878 + $0xc] sm:$0xf]
      %v1883 = vld [vmem:[%s1878 + $0x10] sm:$0xf]
      %v1884 = vld [vmem:[%s1878 + $0x14] sm:$0xf]
      %v1885 = vld [vmem:[%s1878 + $0x18] sm:$0xf]
      %v1886 = vld [vmem:[%s1878 + $0x1c] sm:$0xf]
      %v1887 = vld [vmem:[%s1878 + $0x20] sm:$0xf]
      %v1888 = vld [vmem:[%s1878 + $0x24] sm:$0xf]
      %v1889 = vld [vmem:[%s1878 + $0x28] sm:$0xf]
      %v1890 = vld [vmem:[%s1878 + $0x2c] sm:$0xf]
      %v1891 = vld [vmem:[%s1878 + $0x30] sm:$0xf]
      %v1892 = vld [vmem:[%s1878 + $0x34] sm:$0xf]
      %v1893 = vld [vmem:[%s1878 + $0x38] sm:$0xf]
      %v1894 = vld [vmem:[%s1878 + $0x3c] sm:$0xf]
      %v1903 = vunpack.c.l.b16 %v1870
      %v1904 = vunpack.c.l.b16 %v1871
      %v1905 = vunpack.c.l.b16 %v1872
      %v1906 = vunpack.c.l.b16 %v1873
      %v1907 = vunpack.c.l.b16 %v1874
      %v1908 = vunpack.c.l.b16 %v1875
      %v1909 = vunpack.c.l.b16 %v1876
      %v1910 = vunpack.c.l.b16 %v1877
      %v1911 = vpack.c.b16 %v1904, %v1903
      %v1912 = vpack.c.b16 %v1906, %v1905
      %v1913 = vpack.c.b16 %v1908, %v1907
      %v1914 = vpack.c.b16 %v1910, %v1909
      %v1935 = vunpack.c.l.b16 %v1879
      %v1936 = vunpack.c.l.b16 %v1880
      %v1937 = vunpack.c.l.b16 %v1881
      %v1938 = vunpack.c.l.b16 %v1882
      %v1939 = vunpack.c.l.b16 %v1883
      %v1940 = vunpack.c.l.b16 %v1884
      %v1941 = vunpack.c.l.b16 %v1885
      %v1942 = vunpack.c.l.b16 %v1886
      %v1943 = vunpack.c.l.b16 %v1887
      %v1944 = vunpack.c.l.b16 %v1888
      %v1945 = vunpack.c.l.b16 %v1889
      %v1946 = vunpack.c.l.b16 %v1890
      %v1947 = vunpack.c.l.b16 %v1891
      %v1948 = vunpack.c.l.b16 %v1892
      %v1949 = vunpack.c.l.b16 %v1893
      %v1950 = vunpack.c.l.b16 %v1894
      %v1951 = vpack.c.b16 %v1936, %v1935
      %v1952 = vpack.c.b16 %v1938, %v1937
      %v1953 = vpack.c.b16 %v1940, %v1939
      %v1954 = vpack.c.b16 %v1942, %v1941
      %v1955 = vpack.c.b16 %v1944, %v1943
      %v1956 = vpack.c.b16 %v1946, %v1945
      %v1957 = vpack.c.b16 %v1948, %v1947
      %v1958 = vpack.c.b16 %v1950, %v1949
      %1967 = vmatprep.subr.bf16.mxu0 0
      %1968 = vmatpush1.bf16.msra.mxu0 %v1951
      %1969 = vmatprep.subr.bf16.mxu0 0
      %1970 = vmatpush1.bf16.msra.mxu0 %v1952
      %1971 = vmatprep.subr.bf16.mxu0 0
      %1972 = vmatpush1.bf16.msra.mxu0 %v1953
      %1973 = vmatprep.subr.bf16.mxu0 0
      %1974 = vmatpush1.bf16.msra.mxu0 %v1954
      %1975 = vmatprep.subr.bf16.mxu0 0
      %1976 = vmatpush1.bf16.msra.mxu0 %v1955
      %1977 = vmatprep.subr.bf16.mxu0 0
      %1978 = vmatpush1.bf16.msra.mxu0 %v1956
      %1979 = vmatprep.subr.bf16.mxu0 0
      %1980 = vmatpush1.bf16.msra.mxu0 %v1957
      %1981 = vmatprep.subr.bf16.mxu0 0
      %1982 = vmatpush1.bf16.msra.mxu0 %v1958
      %1983 = vmatprep.subr.bf16.mxu0 0
      %1984 = vmatpush1.bf16.msra.mxu0 0
      %1985 = vmatprep.subr.bf16.mxu0 0
      %1986 = vmatpush1.bf16.msra.mxu0 0
      %1987 = vmatprep.subr.bf16.mxu0 0
      %1988 = vmatpush1.bf16.msra.mxu0 0
      %1989 = vmatprep.subr.bf16.mxu0 0
      %1990 = vmatpush1.bf16.msra.mxu0 0
      %1991 = vmatprep.subr.bf16.mxu0 0
      %1992 = vmatpush1.bf16.msra.mxu0 0
      %1993 = vmatprep.subr.bf16.mxu0 0
      %1994 = vmatpush1.bf16.msra.mxu0 0
      %1995 = vmatprep.subr.bf16.mxu0 0
      %1996 = vmatpush1.bf16.msra.mxu0 0
      %1997 = vmatprep.subr.bf16.mxu0 0
      %1998 = vmatpush1.bf16.msra.mxu0 0
      %1999 = vmatprep.mubr.bf16.mxu0 0
      %2000 = vmatmul.mubr.bf16.gmra.mrb[0].mxu0 %v1911
      %v2001 = vpop.f32.mrb[0].mxu0
      %v2002 = vadd.f32 0.0, %v2001
      %v2003 = vpop.f32.mrb[0].mxu0
      %v2004 = vpop.f32.mrb[0].mxu0
      %v2005 = vadd.f32 0.0, %v2004
      %v2006 = vpop.f32.mrb[0].mxu0
      %2007 = vmatprep.mubr.bf16.mxu0 0
      %2008 = vmatmul.mubr.bf16.gmra.mrb[0].mxu0 %v1912
      %v2009 = vpop.f32.mrb[0].mxu0
      %v2010 = vadd.f32 0.0, %v2009
      %v2011 = vpop.f32.mrb[0].mxu0
      %v2012 = vpop.f32.mrb[0].mxu0
      %v2013 = vadd.f32 0.0, %v2012
      %v2014 = vpop.f32.mrb[0].mxu0
      %2015 = vmatprep.mubr.bf16.mxu0 0
      %2016 = vmatmul.mubr.bf16.gmra.mrb[0].mxu0 %v1913
      %v2017 = vpop.f32.mrb[0].mxu0
      %v2018 = vadd.f32 0.0, %v2017
      %v2019 = vpop.f32.mrb[0].mxu0
      %v2020 = vpop.f32.mrb[0].mxu0
      %v2021 = vadd.f32 0.0, %v2020
      %v2022 = vpop.f32.mrb[0].mxu0
      %2023 = vmatprep.mubr.bf16.mxu0 0
      %2024 = vmatmul.mubr.bf16.gmra.mrb[0].mxu0 %v1914
      %v2025 = vpop.f32.mrb[0].mxu0
      %v2026 = vadd.f32 0.0, %v2025
      %v2027 = vpop.f32.mrb[0].mxu0
      %v2028 = vpop.f32.mrb[0].mxu0
      %v2029 = vadd.f32 0.0, %v2028
      %v2030 = vpop.f32.mrb[0].mxu0
      %2031 = vdwg.mxu0
      %v2032 = vadd.f32 %v1861, %v2002
      %v2033 = vadd.f32 %v1862, %v2005
      %v2034 = vadd.f32 %v1863, %v2010
      %v2035 = vadd.f32 %v1864, %v2013
      %v2036 = vadd.f32 %v1865, %v2018
      %v2037 = vadd.f32 %v1866, %v2021
      %v2038 = vadd.f32 %v1867, %v2026
      %v2039 = vadd.f32 %v1868, %v2029
      %v2040 = vld [vmem:[%s1869] sm:$0xf]
      %v2041 = vld [vmem:[%s1869 + $0x4] sm:$0x1]
      %v2042 = vld [vmem:[%s1869 + $0x8] sm:$0xf]
      %v2043 = vld [vmem:[%s1869 + $0xc] sm:$0x1]
      %v2044 = vld [vmem:[%s1869 + $0x10] sm:$0xf]
      %v2045 = vld [vmem:[%s1869 + $0x14] sm:$0x1]
      %v2046 = vld [vmem:[%s1869 + $0x18] sm:$0xf]
      %v2047 = vld [vmem:[%s1869 + $0x1c] sm:$0x1]
      %v2048 = vld [vmem:[%s1869 + $0x20] sm:$0xf]
      %v2049 = vld [vmem:[%s1869 + $0x24] sm:$0x1]
      %v2050 = vld [vmem:[%s1869 + $0x28] sm:$0xf]
      %v2051 = vld [vmem:[%s1869 + $0x2c] sm:$0x1]
      %v2052 = vld [vmem:[%s1869 + $0x30] sm:$0xf]
      %v2053 = vld [vmem:[%s1869 + $0x34] sm:$0x1]
      %v2054 = vld [vmem:[%s1869 + $0x38] sm:$0xf]
      %v2055 = vld [vmem:[%s1869 + $0x3c] sm:$0x1]
      %v2057 = vshrl.u32 %v2040, 16
      %v2059 = vrot.slane %v2057, 4
      %v2060 = vshll.u32 %v2040, 16
      %v2062 = vrot.slane %v2060, 5
      %v2063 = vor.u32 %v2059, %v2062
      %v2064 = vrot.slane %v2063, 4
      %v2066 = vshll.u32 %v2041, 16
      %v2068 = vrot.slane %v2066, 5
      %v2069 = vsel %vm598, %v2064, %v2068
      %v2071 = vshrl.u32 %v2042, 16
      %v2073 = vrot.slane %v2071, 4
      %v2074 = vshll.u32 %v2042, 16
      %v2076 = vrot.slane %v2074, 5
      %v2077 = vor.u32 %v2073, %v2076
      %v2078 = vrot.slane %v2077, 4
      %v2080 = vshll.u32 %v2043, 16
      %v2082 = vrot.slane %v2080, 5
      %v2083 = vsel %vm598, %v2078, %v2082
      %v2085 = vshrl.u32 %v2044, 16
      %v2087 = vrot.slane %v2085, 4
      %v2088 = vshll.u32 %v2044, 16
      %v2090 = vrot.slane %v2088, 5
      %v2091 = vor.u32 %v2087, %v2090
      %v2092 = vrot.slane %v2091, 4
      %v2094 = vshll.u32 %v2045, 16
      %v2096 = vrot.slane %v2094, 5
      %v2097 = vsel %vm598, %v2092, %v2096
      %v2099 = vshrl.u32 %v2046, 16
      %v2101 = vrot.slane %v2099, 4
      %v2102 = vshll.u32 %v2046, 16
      %v2104 = vrot.slane %v2102, 5
      %v2105 = vor.u32 %v2101, %v2104
      %v2106 = vrot.slane %v2105, 4
      %v2108 = vshll.u32 %v2047, 16
      %v2110 = vrot.slane %v2108, 5
      %v2111 = vsel %vm598, %v2106, %v2110
      %v2113 = vshrl.u32 %v2048, 16
      %v2115 = vrot.slane %v2113, 4
      %v2116 = vshll.u32 %v2048, 16
      %v2118 = vrot.slane %v2116, 5
      %v2119 = vor.u32 %v2115, %v2118
      %v2120 = vrot.slane %v2119, 4
      %v2122 = vshll.u32 %v2049, 16
      %v2124 = vrot.slane %v2122, 5
      %v2125 = vsel %vm598, %v2120, %v2124
      %v2127 = vshrl.u32 %v2050, 16
      %v2129 = vrot.slane %v2127, 4
      %v2130 = vshll.u32 %v2050, 16
      %v2132 = vrot.slane %v2130, 5
      %v2133 = vor.u32 %v2129, %v2132
      %v2134 = vrot.slane %v2133, 4
      %v2136 = vshll.u32 %v2051, 16
      %v2138 = vrot.slane %v2136, 5
      %v2139 = vsel %vm598, %v2134, %v2138
      %v2141 = vshrl.u32 %v2052, 16
      %v2143 = vrot.slane %v2141, 4
      %v2144 = vshll.u32 %v2052, 16
      %v2146 = vrot.slane %v2144, 5
      %v2147 = vor.u32 %v2143, %v2146
      %v2148 = vrot.slane %v2147, 4
      %v2150 = vshll.u32 %v2053, 16
      %v2152 = vrot.slane %v2150, 5
      %v2153 = vsel %vm598, %v2148, %v2152
      %v2155 = vshrl.u32 %v2054, 16
      %v2157 = vrot.slane %v2155, 4
      %v2158 = vshll.u32 %v2054, 16
      %v2160 = vrot.slane %v2158, 5
      %v2161 = vor.u32 %v2157, %v2160
      %v2162 = vrot.slane %v2161, 4
      %v2164 = vshll.u32 %v2055, 16
      %v2166 = vrot.slane %v2164, 5
      %v2167 = vsel %vm598, %v2162, %v2166
      %s2168 = scalar_lea.vmem %s3, 448
      %v2169 = vld [vmem:[%s2168] sm:$0xf]
      %v2170 = vld [vmem:[%s2168 + $0x4] sm:$0xf]
      %v2171 = vld [vmem:[%s2168 + $0x8] sm:$0xf]
      %v2172 = vld [vmem:[%s2168 + $0xc] sm:$0xf]
      %v2173 = vld [vmem:[%s2168 + $0x10] sm:$0xf]
      %v2174 = vld [vmem:[%s2168 + $0x14] sm:$0xf]
      %v2175 = vld [vmem:[%s2168 + $0x18] sm:$0xf]
      %v2176 = vld [vmem:[%s2168 + $0x1c] sm:$0xf]
      %v2177 = vld [vmem:[%s2168 + $0x20] sm:$0xf]
      %v2178 = vld [vmem:[%s2168 + $0x24] sm:$0xf]
      %v2179 = vld [vmem:[%s2168 + $0x28] sm:$0xf]
      %v2180 = vld [vmem:[%s2168 + $0x2c] sm:$0xf]
      %v2181 = vld [vmem:[%s2168 + $0x30] sm:$0xf]
      %v2182 = vld [vmem:[%s2168 + $0x34] sm:$0xf]
      %v2183 = vld [vmem:[%s2168 + $0x38] sm:$0xf]
      %v2184 = vld [vmem:[%s2168 + $0x3c] sm:$0xf]
      %v2185 = vunpack.c.l.b16 %v2069
      %v2186 = vunpack.c.l.b16 %v2083
      %v2187 = vunpack.c.l.b16 %v2097
      %v2188 = vunpack.c.l.b16 %v2111
      %v2189 = vunpack.c.l.b16 %v2125
      %v2190 = vunpack.c.l.b16 %v2139
      %v2191 = vunpack.c.l.b16 %v2153
      %v2192 = vunpack.c.l.b16 %v2167
      %v2193 = vpack.c.b16 %v2186, %v2185
      %v2194 = vpack.c.b16 %v2188, %v2187
      %v2195 = vpack.c.b16 %v2190, %v2189
      %v2196 = vpack.c.b16 %v2192, %v2191
      %v2217 = vunpack.c.l.b16 %v2169
      %v2218 = vunpack.c.l.b16 %v2170
      %v2219 = vunpack.c.l.b16 %v2171
      %v2220 = vunpack.c.l.b16 %v2172
      %v2221 = vunpack.c.l.b16 %v2173
      %v2222 = vunpack.c.l.b16 %v2174
      %v2223 = vunpack.c.l.b16 %v2175
      %v2224 = vunpack.c.l.b16 %v2176
      %v2225 = vunpack.c.l.b16 %v2177
      %v2226 = vunpack.c.l.b16 %v2178
      %v2227 = vunpack.c.l.b16 %v2179
      %v2228 = vunpack.c.l.b16 %v2180
      %v2229 = vunpack.c.l.b16 %v2181
      %v2230 = vunpack.c.l.b16 %v2182
      %v2231 = vunpack.c.l.b16 %v2183
      %v2232 = vunpack.c.l.b16 %v2184
      %v2233 = vpack.c.b16 %v2218, %v2217
      %v2234 = vpack.c.b16 %v2220, %v2219
      %v2235 = vpack.c.b16 %v2222, %v2221
      %v2236 = vpack.c.b16 %v2224, %v2223
      %v2237 = vpack.c.b16 %v2226, %v2225
      %v2238 = vpack.c.b16 %v2228, %v2227
      %v2239 = vpack.c.b16 %v2230, %v2229
      %v2240 = vpack.c.b16 %v2232, %v2231
      %2249 = vmatprep.subr.bf16.mxu0 0
      %2250 = vmatpush1.bf16.msra.mxu0 %v2233
      %2251 = vmatprep.subr.bf16.mxu0 0
      %2252 = vmatpush1.bf16.msra.mxu0 %v2234
      %2253 = vmatprep.subr.bf16.mxu0 0
      %2254 = vmatpush1.bf16.msra.mxu0 %v2235
      %2255 = vmatprep.subr.bf16.mxu0 0
      %2256 = vmatpush1.bf16.msra.mxu0 %v2236
      %2257 = vmatprep.subr.bf16.mxu0 0
      %2258 = vmatpush1.bf16.msra.mxu0 %v2237
      %2259 = vmatprep.subr.bf16.mxu0 0
      %2260 = vmatpush1.bf16.msra.mxu0 %v2238
      %2261 = vmatprep.subr.bf16.mxu0 0
      %2262 = vmatpush1.bf16.msra.mxu0 %v2239
      %2263 = vmatprep.subr.bf16.mxu0 0
      %2264 = vmatpush1.bf16.msra.mxu0 %v2240
      %2265 = vmatprep.subr.bf16.mxu0 0
      %2266 = vmatpush1.bf16.msra.mxu0 0
      %2267 = vmatprep.subr.bf16.mxu0 0
      %2268 = vmatpush1.bf16.msra.mxu0 0
      %2269 = vmatprep.subr.bf16.mxu0 0
      %2270 = vmatpush1.bf16.msra.mxu0 0
      %2271 = vmatprep.subr.bf16.mxu0 0
      %2272 = vmatpush1.bf16.msra.mxu0 0
      %2273 = vmatprep.subr.bf16.mxu0 0
      %2274 = vmatpush1.bf16.msra.mxu0 0
      %2275 = vmatprep.subr.bf16.mxu0 0
      %2276 = vmatpush1.bf16.msra.mxu0 0
      %2277 = vmatprep.subr.bf16.mxu0 0
      %2278 = vmatpush1.bf16.msra.mxu0 0
      %2279 = vmatprep.subr.bf16.mxu0 0
      %2280 = vmatpush1.bf16.msra.mxu0 0
      %2281 = vmatprep.mubr.bf16.mxu0 0
      %2282 = vmatmul.mubr.bf16.gmra.mrb[0].mxu0 %v2193
      %v2283 = vpop.f32.mrb[0].mxu0
      %v2284 = vadd.f32 0.0, %v2283
      %v2285 = vpop.f32.mrb[0].mxu0
      %v2286 = vpop.f32.mrb[0].mxu0
      %v2287 = vadd.f32 0.0, %v2286
      %v2288 = vpop.f32.mrb[0].mxu0
      %2289 = vmatprep.mubr.bf16.mxu0 0
      %2290 = vmatmul.mubr.bf16.gmra.mrb[0].mxu0 %v2194
      %v2291 = vpop.f32.mrb[0].mxu0
      %v2292 = vadd.f32 0.0, %v2291
      %v2293 = vpop.f32.mrb[0].mxu0
      %v2294 = vpop.f32.mrb[0].mxu0
      %v2295 = vadd.f32 0.0, %v2294
      %v2296 = vpop.f32.mrb[0].mxu0
      %2297 = vmatprep.mubr.bf16.mxu0 0
      %2298 = vmatmul.mubr.bf16.gmra.mrb[0].mxu0 %v2195
      %v2299 = vpop.f32.mrb[0].mxu0
      %v2300 = vadd.f32 0.0, %v2299
      %v2301 = vpop.f32.mrb[0].mxu0
      %v2302 = vpop.f32.mrb[0].mxu0
      %v2303 = vadd.f32 0.0, %v2302
      %v2304 = vpop.f32.mrb[0].mxu0
      %2305 = vmatprep.mubr.bf16.mxu0 0
      %2306 = vmatmul.mubr.bf16.gmra.mrb[0].mxu0 %v2196
      %v2307 = vpop.f32.mrb[0].mxu0
      %v2308 = vadd.f32 0.0, %v2307
      %v2309 = vpop.f32.mrb[0].mxu0
      %v2310 = vpop.f32.mrb[0].mxu0
      %v2311 = vadd.f32 0.0, %v2310
      %v2312 = vpop.f32.mrb[0].mxu0
      %2313 = vdwg.mxu0
      %v2314 = vadd.f32 %v2032, %v2284
      %v2315 = vadd.f32 %v2033, %v2287
      %v2316 = vadd.f32 %v2034, %v2292
      %v2317 = vadd.f32 %v2035, %v2295
      %v2318 = vadd.f32 %v2036, %v2300
      %v2319 = vadd.f32 %v2037, %v2303
      %v2320 = vadd.f32 %v2038, %v2308
      %v2321 = vadd.f32 %v2039, %v2311
      %v2322 = vld [vmem:[%s1869] sm:$0xe]
      %v2323 = vld [vmem:[%s1869 + $0x8] sm:$0xe]
      %v2324 = vld [vmem:[%s1869 + $0x10] sm:$0xe]
      %v2325 = vld [vmem:[%s1869 + $0x18] sm:$0xe]
      %v2326 = vld [vmem:[%s1869 + $0x20] sm:$0xe]
      %v2327 = vld [vmem:[%s1869 + $0x28] sm:$0xe]
      %v2328 = vld [vmem:[%s1869 + $0x30] sm:$0xe]
      %v2329 = vld [vmem:[%s1869 + $0x38] sm:$0xe]
      %v2346 = vrot.slane %v2322, 5
      %v2347 = vrot.slane %v2346, 4
      %v2348 = vrot.slane %v2041, 5
      %v2349 = vsel %vm1020, %v2347, %v2348
      %v2350 = vrot.slane %v2323, 5
      %v2351 = vrot.slane %v2350, 4
      %v2352 = vrot.slane %v2043, 5
      %v2353 = vsel %vm1020, %v2351, %v2352
      %v2354 = vrot.slane %v2324, 5
      %v2355 = vrot.slane %v2354, 4
      %v2356 = vrot.slane %v2045, 5
      %v2357 = vsel %vm1020, %v2355, %v2356
      %v2358 = vrot.slane %v2325, 5
      %v2359 = vrot.slane %v2358, 4
      %v2360 = vrot.slane %v2047, 5
      %v2361 = vsel %vm1020, %v2359, %v2360
      %v2362 = vrot.slane %v2326, 5
      %v2363 = vrot.slane %v2362, 4
      %v2364 = vrot.slane %v2049, 5
      %v2365 = vsel %vm1020, %v2363, %v2364
      %v2366 = vrot.slane %v2327, 5
      %v2367 = vrot.slane %v2366, 4
      %v2368 = vrot.slane %v2051, 5
      %v2369 = vsel %vm1020, %v2367, %v2368
      %v2370 = vrot.slane %v2328, 5
      %v2371 = vrot.slane %v2370, 4
      %v2372 = vrot.slane %v2053, 5
      %v2373 = vsel %vm1020, %v2371, %v2372
      %v2374 = vrot.slane %v2329, 5
      %v2375 = vrot.slane %v2374, 4
      %v2376 = vrot.slane %v2055, 5
      %v2377 = vsel %vm1020, %v2375, %v2376
      %s2378 = scalar_lea.vmem %s3, 512
      %v2379 = vld [vmem:[%s2378] sm:$0xf]
      %v2380 = vld [vmem:[%s2378 + $0x4] sm:$0xf]
      %v2381 = vld [vmem:[%s2378 + $0x8] sm:$0xf]
      %v2382 = vld [vmem:[%s2378 + $0xc] sm:$0xf]
      %v2383 = vld [vmem:[%s2378 + $0x10] sm:$0xf]
      %v2384 = vld [vmem:[%s2378 + $0x14] sm:$0xf]
      %v2385 = vld [vmem:[%s2378 + $0x18] sm:$0xf]
      %v2386 = vld [vmem:[%s2378 + $0x1c] sm:$0xf]
      %v2387 = vld [vmem:[%s2378 + $0x20] sm:$0xf]
      %v2388 = vld [vmem:[%s2378 + $0x24] sm:$0xf]
      %v2389 = vld [vmem:[%s2378 + $0x28] sm:$0xf]
      %v2390 = vld [vmem:[%s2378 + $0x2c] sm:$0xf]
      %v2391 = vld [vmem:[%s2378 + $0x30] sm:$0xf]
      %v2392 = vld [vmem:[%s2378 + $0x34] sm:$0xf]
      %v2393 = vld [vmem:[%s2378 + $0x38] sm:$0xf]
      %v2394 = vld [vmem:[%s2378 + $0x3c] sm:$0xf]
      %v2395 = vunpack.c.l.b16 %v2349
      %v2396 = vunpack.c.l.b16 %v2353
      %v2397 = vunpack.c.l.b16 %v2357
      %v2398 = vunpack.c.l.b16 %v2361
      %v2399 = vunpack.c.l.b16 %v2365
      %v2400 = vunpack.c.l.b16 %v2369
      %v2401 = vunpack.c.l.b16 %v2373
      %v2402 = vunpack.c.l.b16 %v2377
      %v2403 = vpack.c.b16 %v2396, %v2395
      %v2404 = vpack.c.b16 %v2398, %v2397
      %v2405 = vpack.c.b16 %v2400, %v2399
      %v2406 = vpack.c.b16 %v2402, %v2401
      %v2427 = vunpack.c.l.b16 %v2379
      %v2428 = vunpack.c.l.b16 %v2380
      %v2429 = vunpack.c.l.b16 %v2381
      %v2430 = vunpack.c.l.b16 %v2382
      %v2431 = vunpack.c.l.b16 %v2383
      %v2432 = vunpack.c.l.b16 %v2384
      %v2433 = vunpack.c.l.b16 %v2385
      %v2434 = vunpack.c.l.b16 %v2386
      %v2435 = vunpack.c.l.b16 %v2387
      %v2436 = vunpack.c.l.b16 %v2388
      %v2437 = vunpack.c.l.b16 %v2389
      %v2438 = vunpack.c.l.b16 %v2390
      %v2439 = vunpack.c.l.b16 %v2391
      %v2440 = vunpack.c.l.b16 %v2392
      %v2441 = vunpack.c.l.b16 %v2393
      %v2442 = vunpack.c.l.b16 %v2394
      %v2443 = vpack.c.b16 %v2428, %v2427
      %v2444 = vpack.c.b16 %v2430, %v2429
      %v2445 = vpack.c.b16 %v2432, %v2431
      %v2446 = vpack.c.b16 %v2434, %v2433
      %v2447 = vpack.c.b16 %v2436, %v2435
      %v2448 = vpack.c.b16 %v2438, %v2437
      %v2449 = vpack.c.b16 %v2440, %v2439
      %v2450 = vpack.c.b16 %v2442, %v2441
      %2459 = vmatprep.subr.bf16.mxu0 0
      %2460 = vmatpush1.bf16.msra.mxu0 %v2443
      %2461 = vmatprep.subr.bf16.mxu0 0
      %2462 = vmatpush1.bf16.msra.mxu0 %v2444
      %2463 = vmatprep.subr.bf16.mxu0 0
      %2464 = vmatpush1.bf16.msra.mxu0 %v2445
      %2465 = vmatprep.subr.bf16.mxu0 0
      %2466 = vmatpush1.bf16.msra.mxu0 %v2446
      %2467 = vmatprep.subr.bf16.mxu0 0
      %2468 = vmatpush1.bf16.msra.mxu0 %v2447
      %2469 = vmatprep.subr.bf16.mxu0 0
      %2470 = vmatpush1.bf16.msra.mxu0 %v2448
      %2471 = vmatprep.subr.bf16.mxu0 0
      %2472 = vmatpush1.bf16.msra.mxu0 %v2449
      %2473 = vmatprep.subr.bf16.mxu0 0
      %2474 = vmatpush1.bf16.msra.mxu0 %v2450
      %2475 = vmatprep.subr.bf16.mxu0 0
      %2476 = vmatpush1.bf16.msra.mxu0 0
      %2477 = vmatprep.subr.bf16.mxu0 0
      %2478 = vmatpush1.bf16.msra.mxu0 0
      %2479 = vmatprep.subr.bf16.mxu0 0
      %2480 = vmatpush1.bf16.msra.mxu0 0
      %2481 = vmatprep.subr.bf16.mxu0 0
      %2482 = vmatpush1.bf16.msra.mxu0 0
      %2483 = vmatprep.subr.bf16.mxu0 0
      %2484 = vmatpush1.bf16.msra.mxu0 0
      %2485 = vmatprep.subr.bf16.mxu0 0
      %2486 = vmatpush1.bf16.msra.mxu0 0
      %2487 = vmatprep.subr.bf16.mxu0 0
      %2488 = vmatpush1.bf16.msra.mxu0 0
      %2489 = vmatprep.subr.bf16.mxu0 0
      %2490 = vmatpush1.bf16.msra.mxu0 0
      %2491 = vmatprep.mubr.bf16.mxu0 0
      %2492 = vmatmul.mubr.bf16.gmra.mrb[0].mxu0 %v2403
      %v2493 = vpop.f32.mrb[0].mxu0
      %v2494 = vadd.f32 0.0, %v2493
      %v2495 = vpop.f32.mrb[0].mxu0
      %v2496 = vpop.f32.mrb[0].mxu0
      %v2497 = vadd.f32 0.0, %v2496
      %v2498 = vpop.f32.mrb[0].mxu0
      %2499 = vmatprep.mubr.bf16.mxu0 0
      %2500 = vmatmul.mubr.bf16.gmra.mrb[0].mxu0 %v2404
      %v2501 = vpop.f32.mrb[0].mxu0
      %v2502 = vadd.f32 0.0, %v2501
      %v2503 = vpop.f32.mrb[0].mxu0
      %v2504 = vpop.f32.mrb[0].mxu0
      %v2505 = vadd.f32 0.0, %v2504
      %v2506 = vpop.f32.mrb[0].mxu0
      %2507 = vmatprep.mubr.bf16.mxu0 0
      %2508 = vmatmul.mubr.bf16.gmra.mrb[0].mxu0 %v2405
      %v2509 = vpop.f32.mrb[0].mxu0
      %v2510 = vadd.f32 0.0, %v2509
      %v2511 = vpop.f32.mrb[0].mxu0
      %v2512 = vpop.f32.mrb[0].mxu0
      %v2513 = vadd.f32 0.0, %v2512
      %v2514 = vpop.f32.mrb[0].mxu0
      %2515 = vmatprep.mubr.bf16.mxu0 0
      %2516 = vmatmul.mubr.bf16.gmra.mrb[0].mxu0 %v2406
      %v2517 = vpop.f32.mrb[0].mxu0
      %v2518 = vadd.f32 0.0, %v2517
      %v2519 = vpop.f32.mrb[0].mxu0
      %v2520 = vpop.f32.mrb[0].mxu0
      %v2521 = vadd.f32 0.0, %v2520
      %v2522 = vpop.f32.mrb[0].mxu0
      %2523 = vdwg.mxu0
      %v2524 = vadd.f32 %v2314, %v2494
      %v2525 = vadd.f32 %v2315, %v2497
      %v2526 = vadd.f32 %v2316, %v2502
      %v2527 = vadd.f32 %v2317, %v2505
      %v2528 = vadd.f32 %v2318, %v2510
      %v2529 = vadd.f32 %v2319, %v2513
      %v2530 = vadd.f32 %v2320, %v2518
      %v2531 = vadd.f32 %v2321, %v2521
      %v2532 = vld [vmem:[%s4] sm:$0x1]
      %v2534 = vlaneseq
      %v2535 = vshrl.u32 %v2534, 7
      %v2536 = vsub.s32 0, %v2535
      %v2537 = vrot.slane %v2532, %v2536
      %v2539 = vadd.f32 %v2524, %v2537
      %v2540 = vadd.f32 %v2525, %v2537
      %v2541 = vadd.f32 %v2526, %v2537
      %v2542 = vadd.f32 %v2527, %v2537
      %v2543 = vadd.f32 %v2528, %v2537
      %v2544 = vadd.f32 %v2529, %v2537
      %v2545 = vadd.f32 %v2530, %v2537
      %v2546 = vadd.f32 %v2531, %v2537
      %v2547 = vadd.f32 %v2539, %v2540
      %v2548 = vadd.f32 %v2547, %v2541
      %v2549 = vadd.f32 %v2548, %v2542
      %v2550 = vadd.f32 %v2549, %v2543
      %v2551 = vadd.f32 %v2550, %v2544
      %v2552 = vadd.f32 %v2551, %v2545
      %v2553 = vadd.f32 %v2552, %v2546
      %v2554 = vrot.slane %v2553, 4
      %v2555 = vadd.f32 %v2553, %v2554
      %v2556 = vrot.slane %v2555, 2
      %v2557 = vadd.f32 %v2555, %v2556
      %v2558 = vrot.slane %v2557, 1
      %v2559 = vadd.f32 %v2557, %v2558
      %2560 = vst [vmem:[%s292] sm:$0x1] %v2559
      %v2561 = vmul.f32 %v2539, %v2539
      %v2562 = vmul.f32 %v2540, %v2540
      %v2563 = vmul.f32 %v2541, %v2541
      %v2564 = vmul.f32 %v2542, %v2542
      %v2565 = vmul.f32 %v2543, %v2543
      %v2566 = vmul.f32 %v2544, %v2544
      %v2567 = vmul.f32 %v2545, %v2545
      %v2568 = vmul.f32 %v2546, %v2546
      %v2569 = vadd.f32 %v2561, %v2562
      %v2570 = vadd.f32 %v2569, %v2563
      %v2571 = vadd.f32 %v2570, %v2564
      %v2572 = vadd.f32 %v2571, %v2565
      %v2573 = vadd.f32 %v2572, %v2566
      %v2574 = vadd.f32 %v2573, %v2567
      %v2575 = vadd.f32 %v2574, %v2568
      %v2576 = vrot.slane %v2575, 4
      %v2577 = vadd.f32 %v2575, %v2576
      %v2578 = vrot.slane %v2577, 2
      %v2579 = vadd.f32 %v2577, %v2578
      %v2580 = vrot.slane %v2579, 1
      %v2581 = vadd.f32 %v2579, %v2580
      %2582 = vst [vmem:[%s295] sm:$0x1] %v2581
      %v2583 = vpack.c.bf16 %v2540, %v2539
      %v2584 = vpack.c.bf16 %v2542, %v2541
      %v2585 = vpack.c.bf16 %v2544, %v2543
      %v2586 = vpack.c.bf16 %v2546, %v2545
      %v2591 = vunpack.c.l.b16 %v2583
      %v2592 = vunpack.c.h.b16 %v2583
      %v2593 = vunpack.c.l.b16 %v2584
      %v2594 = vunpack.c.h.b16 %v2584
      %v2595 = vunpack.c.l.b16 %v2585
      %v2596 = vunpack.c.h.b16 %v2585
      %v2597 = vunpack.c.l.b16 %v2586
      %v2598 = vunpack.c.h.b16 %v2586
      %v2599 = vpack.c.b16 %v2591, %v2591
      %v2600 = vpack.c.b16 %v2592, %v2592
      %v2601 = vpack.c.b16 %v2593, %v2593
      %v2602 = vpack.c.b16 %v2594, %v2594
      %v2603 = vpack.c.b16 %v2595, %v2595
      %v2604 = vpack.c.b16 %v2596, %v2596
      %v2605 = vpack.c.b16 %v2597, %v2597
      %v2606 = vpack.c.b16 %v2598, %v2598
      %2615 = vst [vmem:[%s289] sm:$0xf] %v2599
      %2616 = vst [vmem:[%s289 + $0x4] sm:$0xf] %v2600
      %2617 = vst [vmem:[%s289 + $0x8] sm:$0xf] %v2601
      %2618 = vst [vmem:[%s289 + $0xc] sm:$0xf] %v2602
      %2619 = vst [vmem:[%s289 + $0x10] sm:$0xf] %v2603
      %2620 = vst [vmem:[%s289 + $0x14] sm:$0xf] %v2604
      %2621 = vst [vmem:[%s289 + $0x18] sm:$0xf] %v2605
      %2622 = vst [vmem:[%s289 + $0x1c] sm:$0xf] %v2606
      %p2623 = scmp.lt.s32.totalorder %s19, 1
      %s2624 = scalar_select %p2623, %s19, 1
      %s2625 = smul.addr %s2624, 8
      %s2626 = smul.addr %s2625, 4
      %s2627 = scalar_lea.vmem %s5, %s2626
      %p2628 = scmp.lt.s32.totalorder %s19, 1
      %s2629 = scalar_select %p2628, %s19, 1
      %s2630 = scalar_lea.vmem %s6, %s2629
      %p2631 = scmp.lt.s32.totalorder %s19, 1
      %s2632 = scalar_select %p2631, %s19, 1
      %s2633 = scalar_lea.vmem %s7, %s2632
      // Predicated region
      $region41: #{convblock_forward.4} parent=39 // pred_check
        %p2634 = pneg %p147
      $region42: #{convblock_forward.4} parent=39 // pred_check_branch
        %2636 = sbr.rel (%p2634) target = $region44
      $region43: #{convblock_forward.4} parent=39 // pred_region
        _
      $region44: #{convblock_forward.4} parent=39 // pred_fallthru
        _
      // Predicated region
      $region45: #{convblock_forward.4} parent=39 // pred_check
        %p2637 = pneg %p173
      $region46: #{convblock_forward.4} parent=39 // pred_check_branch
        %2639 = sbr.rel (%p2637) target = $region48
      $region47: #{convblock_forward.4} parent=39 // pred_region
        _
      $region48: #{convblock_forward.4} parent=39 // pred_fallthru
        _
      // Predicated region
      $region49: #{convblock_forward.4} parent=39 // pred_check
        %p2640 = pneg %p199
      $region50: #{convblock_forward.4} parent=39 // pred_check_branch
        %2642 = sbr.rel (%p2640) target = $region52
      $region51: #{convblock_forward.4} parent=39 // pred_region
        _
      $region52: #{convblock_forward.4} parent=39 // pred_fallthru
        _
    $region40: #{convblock_forward.4} parent=5 // pred_fallthru
      _
    %p2643 = scmp.le.s32.totalorder 2, %s14
    // Predicated region
    $region53: #{convblock_forward.4} parent=5 // pred_check
      %p2644 = pneg %p2643
    $region54: #{convblock_forward.4} parent=5 // pred_check_branch
      %2646 = sbr.rel (%p2644) target = $region56
    $region55: #{convblock_forward.4} parent=5 // pred_region
      %s2647 = ssub.s32 %s14, 2
      // Predicated region
      $region57: #{convblock_forward.4} parent=55 // pred_check
        %p2648 = pneg %p153
      $region58: #{convblock_forward.4} parent=55 // pred_check_branch
        %2650 = sbr.rel (%p2648) target = $region60
      $region59: #{convblock_forward.4} parent=55 // pred_region
        %p2651 = scmp.lt.s32.totalorder %s20, 1
        %s2652 = scalar_select %p2651, %s20, 1
        %s2653 = smul.addr %s2652, 8
        %s2654 = smul.addr %s2653, 4
        %s2655 = scalar_lea.vmem %s5, %s2654
      $region60: #{convblock_forward.4} parent=55 // pred_fallthru
        _
      // Predicated region
      $region61: #{convblock_forward.4} parent=55 // pred_check
        %p2656 = pneg %p179
      $region62: #{convblock_forward.4} parent=55 // pred_check_branch
        %2658 = sbr.rel (%p2656) target = $region64
      $region63: #{convblock_forward.4} parent=55 // pred_region
        %p2659 = scmp.lt.s32.totalorder %s20, 1
        %s2660 = scalar_select %p2659, %s20, 1
        %s2661 = scalar_lea.vmem %s6, %s2660
      $region64: #{convblock_forward.4} parent=55 // pred_fallthru
        _
      // Predicated region
      $region65: #{convblock_forward.4} parent=55 // pred_check
        %p2662 = pneg %p205
      $region66: #{convblock_forward.4} parent=55 // pred_check_branch
        %2664 = sbr.rel (%p2662) target = $region68
      $region67: #{convblock_forward.4} parent=55 // pred_region
        %p2665 = scmp.lt.s32.totalorder %s20, 1
        %s2666 = scalar_select %p2665, %s20, 1
        %s2667 = scalar_lea.vmem %s7, %s2666
      $region68: #{convblock_forward.4} parent=55 // pred_fallthru
        _
    $region56: #{convblock_forward.4} parent=5 // pred_fallthru
      _
  $region6: #{convblock_forward.4} parent=0 // loop_footer
    %s18 = sadd.s32 1, %s14
  $region7: #{convblock_forward.4} parent=0 // loop_footer_branch
    %13 = sbr.rel target = $region3
  $region8: #{convblock_forward.4} parent=0 // loop_exit
    _

</llo_original>
